<compile_context>
chip_gen: v7x
topology: tpu7x:2x2x1
jax: 0.10.0
libtpu: 0.0.40
codegen_flags: <defaults>
</compile_context>

<pallas_src>
import jax
import jax.numpy as jnp
from jax.experimental import pallas as pl
from jax.experimental.pallas import tpu as pltpu

# ----------------------------- config (args) ---------------------------------
B = 2            # batch
S = 8            # sequence length
H = 32           # args.hidden_size
VOCAB = 64       # args.vocab_size
N_LAYERS = 2     # args.n_layers
N_HEADS = 4
DH = H // N_HEADS
FF = 4 * H
FEAT_DIM = 128   # Model(feat_dim=128)
IMG_C = 3
IMG_HW = 16
LN_EPS = 1e-12
LOGIT_PAD = 128                # vocab padded to a full 128-lane slab for the output store
MXU_DTYPE = jnp.float32        # set jnp.bfloat16 on v6e/v7x for bf16 MXU operands

PARAM_ORDER = (
    "viz_w", "viz_b", "word_emb", "pos_emb", "type_emb", "emb_ln_g", "emb_ln_b",
    "wqkv", "bqkv", "wo", "bo", "ln1_g", "ln1_b",
    "w_ff1", "b_ff1", "w_ff2", "b_ff2", "ln2_g", "ln2_b",
    "fc1_w", "fc1_b", "cls1_w", "cls1_b", "cls_ln_g", "cls_ln_b",
    "cls2_w_pad", "cls2_b_pad",
    "head1_w", "head1_b", "head2_w", "head2_b",
)
NPARAM = len(PARAM_ORDER)


# ------------------------------ fused kernel ----------------------------------
def _fused_forward_kernel(ids_ref, seg_ref, mask_ref, img_ref, *rest):
    prm = dict(zip(PARAM_ORDER, rest[:NPARAM]))
    logits_ref, feat_ref = rest[NPARAM:]
    f32 = jnp.float32

    def linear(x, wname, bname):
        w = prm[wname][...].astype(MXU_DTYPE)
        return jnp.dot(x.astype(MXU_DTYPE), w, preferred_element_type=f32) + prm[bname][...]

    def layernorm(x, gname, bname):
        mu = jnp.mean(x, axis=-1, keepdims=True)
        xc = x - mu
        var = jnp.mean(xc * xc, axis=-1, keepdims=True)
        return xc * jax.lax.rsqrt(var + LN_EPS) * prm[gname][...] + prm[bname][...]

    def serf(x):                      # SERF(x) = x * erf(softplus(x))
        return x * jax.lax.erf(jax.nn.softplus(x))

    def gelu_exact(x):                # PyTorch nn.GELU default (erf form)
        return 0.5 * x * (1.0 + jax.lax.erf(x * 0.7071067811865476))

    # ---- prepare_input: BERT-style embedding + visual-token overwrite --------
    ids = ids_ref[...]                                                     # [S,1] i32
    one_hot = (ids == jax.lax.broadcasted_iota(jnp.int32, (S, VOCAB), 1)).astype(f32)
    we = jnp.dot(one_hot, prm["word_emb"][...].astype(MXU_DTYPE),
                 preferred_element_type=f32)                               # [S,H]
    segf = seg_ref[...].astype(f32)                                        # [S,1]
    tem = prm["type_emb"][...]
    te = tem[0:1, :] * (1.0 - segf) + tem[1:2, :] * segf                   # [S,H]
    h = layernorm(we + prm["pos_emb"][...] + te, "emb_ln_g", "emb_ln_b")   # [S,H]

    viz = linear(img_ref[0], "viz_w", "viz_b")                             # [1,H]
    row = jax.lax.broadcasted_iota(jnp.int32, (S, 1), 0)
    h = jnp.where(row == 0, jnp.broadcast_to(viz, (S, H)), h)              # token 0 := visual

    bias = (1.0 - mask_ref[0]) * -1e9                                      # [1,S] additive mask
    scale = 1.0 / (DH ** 0.5)
    dn = (((1,), (1,)), ((), ()))                                          # q · kᵀ contraction

    # ---- shared-weight pre-norm transformer block, applied N_LAYERS times ----
    for _ in range(N_LAYERS):
        a = layernorm(h, "ln1_g", "ln1_b")
        qkv = linear(a, "wqkv", "bqkv")                                    # fused QKV [S,3H]
        q, k, v = qkv[:, 0:H], qkv[:, H:2 * H], qkv[:, 2 * H:3 * H]
        ctx_heads = []
        for hd in range(N_HEADS):                                          # static head split
            sl = slice(hd * DH, (hd + 1) * DH)
            s = jax.lax.dot_general(q[:, sl], k[:, sl], dn,
                                    preferred_element_type=f32) * scale + bias
            m = jnp.max(s, axis=-1, keepdims=True)
            p = jnp.exp(s - m)
            p = p * pl.reciprocal(jnp.sum(p, axis=-1, keepdims=True), approx=True)
            ctx_heads.append(jnp.dot(p, v[:, sl], preferred_element_type=f32))
        ctx = jnp.concatenate(ctx_heads, axis=-1)                          # [S,H]
        h = h + linear(ctx, "wo", "bo")
        f = layernorm(h, "ln2_g", "ln2_b")
        f = gelu_exact(linear(f, "w_ff1", "b_ff1"))
        h = h + linear(f, "w_ff2", "b_ff2")

    # ---- MLM head: fc1 + SERF, classifier Linear -> LayerNorm -> Linear(vocab) ----
    pooled_h = serf(linear(h, "fc1_w", "fc1_b"))
    c = layernorm(linear(pooled_h, "cls1_w", "cls1_b"), "cls_ln_g", "cls_ln_b")
    logits_ref[...] = linear(c, "cls2_w_pad", "cls2_b_pad")                # [S,128] lane-dense

    # ---- supcon head: F.normalize(head(h.mean(1)), dim=1) --------------------
    hm = jnp.mean(h, axis=0, keepdims=True)                                # [1,H]
    f1 = serf(linear(hm, "head1_w", "head1_b"))
    f2 = linear(f1, "head2_w", "head2_b")                                  # [1,FEAT_DIM]
    nrm = jnp.sqrt(jnp.sum(f2 * f2, axis=-1, keepdims=True))
    feat_ref[0] = f2 * pl.reciprocal(jnp.maximum(nrm, 1e-12), approx=True)


# ------------------------------ parameters ------------------------------------
def init_params(key):
    def w(k, shape, scale=0.02):
        return (scale * jax.random.normal(k, shape, jnp.float32)).astype(jnp.float32)

    def ones(shape):
        return jnp.ones(shape, jnp.float32)

    def zeros(shape):
        return jnp.zeros(shape, jnp.float32)

    ks = iter(jax.random.split(key, 32))
    p = {}
    # visual projector (stand-in for get_transfer CNN)
    p["viz_w"], p["viz_b"] = w(next(ks), (IMG_C, H)), zeros((1, H))
    # BERT-style embedding
    p["word_emb"] = w(next(ks), (VOCAB, H))
    p["pos_emb"] = w(next(ks), (S, H))
    p["type_emb"] = w(next(ks), (2, H))
    p["emb_ln_g"], p["emb_ln_b"] = ones((1, H)), zeros((1, H))
    # transformer block (pre-norm BertLayer; shared across n_layers like self.blocks)
    wq, wk, wv = w(next(ks), (H, H)), w(next(ks), (H, H)), w(next(ks), (H, H))
    p["wqkv"] = jnp.concatenate([wq, wk, wv], axis=1)                     # fused [H,3H]
    p["bqkv"] = zeros((1, 3 * H))
    p["wo"], p["bo"] = w(next(ks), (H, H)), zeros((1, H))
    p["ln1_g"], p["ln1_b"] = ones((1, H)), zeros((1, H))
    p["w_ff1"], p["b_ff1"] = w(next(ks), (H, FF)), zeros((1, FF))
    p["w_ff2"], p["b_ff2"] = w(next(ks), (FF, H)), zeros((1, H))
    p["ln2_g"], p["ln2_b"] = ones((1, H)), zeros((1, H))
    # Model head: fc1 + SERF, classifier = Linear -> LayerNorm -> Linear(vocab)
    p["fc1_w"], p["fc1_b"] = w(next(ks), (H, H)), zeros((1, H))
    p["cls1_w"], p["cls1_b"] = w(next(ks), (H, H)), zeros((1, H))
    p["cls_ln_g"], p["cls_ln_b"] = ones((1, H)), zeros((1, H))
    cls2_w, cls2_b = w(next(ks), (H, VOCAB)), zeros((1, VOCAB))
    # pad vocab columns to 128 lanes (zero cols, sliced off in the wrapper)
    p["cls2_w_pad"] = jnp.pad(cls2_w, ((0, 0), (0, LOGIT_PAD - VOCAB)))
    p["cls2_b_pad"] = jnp.pad(cls2_b, ((0, 0), (0, LOGIT_PAD - VOCAB)))
    # supcon head: Linear -> SERF -> Linear(feat_dim), then F.normalize
    p["head1_w"], p["head1_b"] = w(next(ks), (H, H)), zeros((1, H))
    p["head2_w"], p["head2_b"] = w(next(ks), (H, FEAT_DIM)), zeros((1, FEAT_DIM))
    return p


# ------------------------------ forward ---------------------------------------
def _const_map(ndim):
    return lambda b, _n=ndim: (0,) * _n


def model_forward(params, img, input_ids, segment_ids, input_mask):
    # Stand-in for the get_transfer CNN: global average pool (the projection to the
    # hidden size happens inside the fused kernel).
    pooled_img = jnp.mean(img, axis=(2, 3)).reshape(B, 1, IMG_C)
    ids = input_ids.astype(jnp.int32).reshape(B * S, 1)
    seg = segment_ids.astype(jnp.int32).reshape(B * S, 1)
    maskf = input_mask.astype(jnp.float32).reshape(B, 1, S)

    weights = [params[name] for name in PARAM_ORDER]

    data_specs = [
        pl.BlockSpec((S, 1), lambda b: (b, 0)),             # input_ids   (per-sample rows)
        pl.BlockSpec((S, 1), lambda b: (b, 0)),             # segment_ids
        pl.BlockSpec((1, 1, S), lambda b: (b, 0, 0)),       # input_mask
        pl.BlockSpec((1, 1, IMG_C), lambda b: (b, 0, 0)),   # pooled image
    ]
    weight_specs = [pl.BlockSpec(wgt.shape, _const_map(wgt.ndim)) for wgt in weights]

    logits_pad, feat3 = pl.pallas_call(
        _fused_forward_kernel,
        out_shape=(
            jax.ShapeDtypeStruct((B * S, LOGIT_PAD), jnp.float32),
            jax.ShapeDtypeStruct((B, 1, FEAT_DIM), jnp.float32),
        ),
        grid=(B,),
        in_specs=data_specs + weight_specs,
        out_specs=(
            pl.BlockSpec((S, LOGIT_PAD), lambda b: (b, 0)),
            pl.BlockSpec((1, 1, FEAT_DIM), lambda b: (b, 0, 0)),
        ),
        compiler_params=pltpu.CompilerParams(dimension_semantics=("parallel",)),
    )(ids, seg, maskf, pooled_img, *weights)

    logits = logits_pad[:, :VOCAB].reshape(B, S, VOCAB)
    feat = feat3.reshape(B, FEAT_DIM)
    return logits, feat


# ------------------------------ main -------------------------------------------
if __name__ == "__main__":
    key = jax.random.PRNGKey(0)
    kp, ki, kids, kseg = jax.random.split(key, 4)

    params = init_params(kp)
    img = jax.random.normal(ki, (B, IMG_C, IMG_HW, IMG_HW), jnp.float32)   # NCHW
    input_ids = jax.random.randint(kids, (B, S), 0, VOCAB, jnp.int32)
    segment_ids = jax.random.randint(kseg, (B, S), 0, 2, jnp.int32)
    input_mask = jnp.ones((B, S), jnp.int32).at[:, -2:].set(0)             # pad last 2 tokens

    fwd = jax.jit(model_forward)
    logits, feat = fwd(params, img, input_ids, segment_ids, input_mask)
    jax.block_until_ready((logits, feat))

    assert logits.shape == (B, S, VOCAB)
    assert feat.shape == (B, FEAT_DIM)
    print("KERNEL_OK")
</pallas_src>

<mosaic_0001>
module attributes {stable_mosaic.version = 11 : i64} {
  func.func @_fused_forward_kernel(%arg0: i32, %arg1: memref<8x1xi32, #tpu.memory_space<vmem>>, %arg2: memref<8x1xi32, #tpu.memory_space<vmem>>, %arg3: memref<1x1x8xf32, #tpu.memory_space<vmem>>, %arg4: memref<1x1x3xf32, #tpu.memory_space<vmem>>, %arg5: memref<3x32xf32, #tpu.memory_space<vmem>>, %arg6: memref<1x32xf32, #tpu.memory_space<vmem>>, %arg7: memref<64x32xf32, #tpu.memory_space<vmem>>, %arg8: memref<8x32xf32, #tpu.memory_space<vmem>>, %arg9: memref<2x32xf32, #tpu.memory_space<vmem>>, %arg10: memref<1x32xf32, #tpu.memory_space<vmem>>, %arg11: memref<1x32xf32, #tpu.memory_space<vmem>>, %arg12: memref<32x96xf32, #tpu.memory_space<vmem>>, %arg13: memref<1x96xf32, #tpu.memory_space<vmem>>, %arg14: memref<32x32xf32, #tpu.memory_space<vmem>>, %arg15: memref<1x32xf32, #tpu.memory_space<vmem>>, %arg16: memref<1x32xf32, #tpu.memory_space<vmem>>, %arg17: memref<1x32xf32, #tpu.memory_space<vmem>>, %arg18: memref<32x128xf32, #tpu.memory_space<vmem>>, %arg19: memref<1x128xf32, #tpu.memory_space<vmem>>, %arg20: memref<128x32xf32, #tpu.memory_space<vmem>>, %arg21: memref<1x32xf32, #tpu.memory_space<vmem>>, %arg22: memref<1x32xf32, #tpu.memory_space<vmem>>, %arg23: memref<1x32xf32, #tpu.memory_space<vmem>>, %arg24: memref<32x32xf32, #tpu.memory_space<vmem>>, %arg25: memref<1x32xf32, #tpu.memory_space<vmem>>, %arg26: memref<32x32xf32, #tpu.memory_space<vmem>>, %arg27: memref<1x32xf32, #tpu.memory_space<vmem>>, %arg28: memref<1x32xf32, #tpu.memory_space<vmem>>, %arg29: memref<1x32xf32, #tpu.memory_space<vmem>>, %arg30: memref<32x128xf32, #tpu.memory_space<vmem>>, %arg31: memref<1x128xf32, #tpu.memory_space<vmem>>, %arg32: memref<32x32xf32, #tpu.memory_space<vmem>>, %arg33: memref<1x32xf32, #tpu.memory_space<vmem>>, %arg34: memref<32x128xf32, #tpu.memory_space<vmem>>, %arg35: memref<1x128xf32, #tpu.memory_space<vmem>>, %arg36: memref<8x128xf32, #tpu.memory_space<vmem>>, %arg37: memref<1x1x128xf32, #tpu.memory_space<vmem>>) attributes {dimension_semantics = [#tpu.dimension_semantics<parallel>], iteration_bounds = array<i64: 2>, scalar_prefetch = 0 : i64, scratch_operands = 0 : i64, tpu.core_type = #tpu.core_type<tc>, window_params = [{transform_indices = @transform_0, window_bounds = array<i64: 8, 1>}, {transform_indices = @transform_1, window_bounds = array<i64: 8, 1>}, {transform_indices = @transform_2, window_bounds = array<i64: 1, 1, 8>}, {transform_indices = @transform_3, window_bounds = array<i64: 1, 1, 3>}, {pipeline_mode = #tpu.pipeline_mode<synchronous>, transform_indices = @transform_4, window_bounds = array<i64: 3, 32>}, {pipeline_mode = #tpu.pipeline_mode<synchronous>, transform_indices = @transform_5, window_bounds = array<i64: 1, 32>}, {pipeline_mode = #tpu.pipeline_mode<synchronous>, transform_indices = @transform_6, window_bounds = array<i64: 64, 32>}, {pipeline_mode = #tpu.pipeline_mode<synchronous>, transform_indices = @transform_7, window_bounds = array<i64: 8, 32>}, {pipeline_mode = #tpu.pipeline_mode<synchronous>, transform_indices = @transform_8, window_bounds = array<i64: 2, 32>}, {pipeline_mode = #tpu.pipeline_mode<synchronous>, transform_indices = @transform_9, window_bounds = array<i64: 1, 32>}, {pipeline_mode = #tpu.pipeline_mode<synchronous>, transform_indices = @transform_10, window_bounds = array<i64: 1, 32>}, {pipeline_mode = #tpu.pipeline_mode<synchronous>, transform_indices = @transform_11, window_bounds = array<i64: 32, 96>}, {pipeline_mode = #tpu.pipeline_mode<synchronous>, transform_indices = @transform_12, window_bounds = array<i64: 1, 96>}, {pipeline_mode = #tpu.pipeline_mode<synchronous>, transform_indices = @transform_13, window_bounds = array<i64: 32, 32>}, {pipeline_mode = #tpu.pipeline_mode<synchronous>, transform_indices = @transform_14, window_bounds = array<i64: 1, 32>}, {pipeline_mode = #tpu.pipeline_mode<synchronous>, transform_indices = @transform_15, window_bounds = array<i64: 1, 32>}, {pipeline_mode = #tpu.pipeline_mode<synchronous>, transform_indices = @transform_16, window_bounds = array<i64: 1, 32>}, {pipeline_mode = #tpu.pipeline_mode<synchronous>, transform_indices = @transform_17, window_bounds = array<i64: 32, 128>}, {pipeline_mode = #tpu.pipeline_mode<synchronous>, transform_indices = @transform_18, window_bounds = array<i64: 1, 128>}, {pipeline_mode = #tpu.pipeline_mode<synchronous>, transform_indices = @transform_19, window_bounds = array<i64: 128, 32>}, {pipeline_mode = #tpu.pipeline_mode<synchronous>, transform_indices = @transform_20, window_bounds = array<i64: 1, 32>}, {pipeline_mode = #tpu.pipeline_mode<synchronous>, transform_indices = @transform_21, window_bounds = array<i64: 1, 32>}, {pipeline_mode = #tpu.pipeline_mode<synchronous>, transform_indices = @transform_22, window_bounds = array<i64: 1, 32>}, {pipeline_mode = #tpu.pipeline_mode<synchronous>, transform_indices = @transform_23, window_bounds = array<i64: 32, 32>}, {pipeline_mode = #tpu.pipeline_mode<synchronous>, transform_indices = @transform_24, window_bounds = array<i64: 1, 32>}, {pipeline_mode = #tpu.pipeline_mode<synchronous>, transform_indices = @transform_25, window_bounds = array<i64: 32, 32>}, {pipeline_mode = #tpu.pipeline_mode<synchronous>, transform_indices = @transform_26, window_bounds = array<i64: 1, 32>}, {pipeline_mode = #tpu.pipeline_mode<synchronous>, transform_indices = @transform_27, window_bounds = array<i64: 1, 32>}, {pipeline_mode = #tpu.pipeline_mode<synchronous>, transform_indices = @transform_28, window_bounds = array<i64: 1, 32>}, {pipeline_mode = #tpu.pipeline_mode<synchronous>, transform_indices = @transform_29, window_bounds = array<i64: 32, 128>}, {pipeline_mode = #tpu.pipeline_mode<synchronous>, transform_indices = @transform_30, window_bounds = array<i64: 1, 128>}, {pipeline_mode = #tpu.pipeline_mode<synchronous>, transform_indices = @transform_31, window_bounds = array<i64: 32, 32>}, {pipeline_mode = #tpu.pipeline_mode<synchronous>, transform_indices = @transform_32, window_bounds = array<i64: 1, 32>}, {pipeline_mode = #tpu.pipeline_mode<synchronous>, transform_indices = @transform_33, window_bounds = array<i64: 32, 128>}, {pipeline_mode = #tpu.pipeline_mode<synchronous>, transform_indices = @transform_34, window_bounds = array<i64: 1, 128>}, {transform_indices = @transform_35, window_bounds = array<i64: 8, 128>}, {transform_indices = @transform_36, window_bounds = array<i64: 1, 1, 128>}]} {
    %c0 = arith.constant 0 : index
    %c0_0 = arith.constant 0 : index
    %0 = vector.load %arg1[%c0, %c0_0] : memref<8x1xi32, #tpu.memory_space<vmem>>, vector<8x1xi32>
    %1 = tpu.iota {dimensions = array<i32: 1>} : vector<8x64xi32>
    %2 = vector.broadcast %0 : vector<8x1xi32> to vector<8x64xi32>
    %3 = arith.cmpi eq, %2, %1 : vector<8x64xi32>
    %4 = arith.extui %3 : vector<8x64xi1> to vector<8x64xi32>
    %5 = arith.sitofp %4 : vector<8x64xi32> to vector<8x64xf32>
    %c0_1 = arith.constant 0 : index
    %c0_2 = arith.constant 0 : index
    %6 = vector.load %arg7[%c0_1, %c0_2] : memref<64x32xf32, #tpu.memory_space<vmem>>, vector<64x32xf32>
    %cst = arith.constant dense<0.000000e+00> : vector<8x32xf32>
    %7 = tpu.matmul %5, %6, %cst {dimension_numbers = #tpu.dot_dimension_numbers<[1], [0], [0], [1], [0, 0, 1, 1], [], []>} : vector<8x64xf32>, vector<64x32xf32>, vector<8x32xf32> -> vector<8x32xf32>
    %c0_3 = arith.constant 0 : index
    %c0_4 = arith.constant 0 : index
    %8 = vector.load %arg2[%c0_3, %c0_4] : memref<8x1xi32, #tpu.memory_space<vmem>>, vector<8x1xi32>
    %9 = arith.sitofp %8 : vector<8x1xi32> to vector<8x1xf32>
    %c0_5 = arith.constant 0 : index
    %c0_6 = arith.constant 0 : index
    %10 = vector.load %arg9[%c0_5, %c0_6] : memref<2x32xf32, #tpu.memory_space<vmem>>, vector<2x32xf32>
    %11 = vector.extract_strided_slice %10 {offsets = [0, 0], sizes = [1, 32], strides = [1, 1]} : vector<2x32xf32> to vector<1x32xf32>
    %cst_7 = arith.constant 1.000000e+00 : f32
    %12 = vector.broadcast %cst_7 : f32 to vector<8x1xf32>
    %13 = arith.subf %12, %9 : vector<8x1xf32>
    %14 = vector.broadcast %11 : vector<1x32xf32> to vector<8x32xf32>
    %15 = vector.broadcast %13 : vector<8x1xf32> to vector<8x32xf32>
    %16 = arith.mulf %14, %15 : vector<8x32xf32>
    %17 = vector.extract_strided_slice %10 {offsets = [1, 0], sizes = [1, 32], strides = [1, 1]} : vector<2x32xf32> to vector<1x32xf32>
    %18 = vector.broadcast %17 : vector<1x32xf32> to vector<8x32xf32>
    %19 = vector.broadcast %9 : vector<8x1xf32> to vector<8x32xf32>
    %20 = arith.mulf %18, %19 : vector<8x32xf32>
    %21 = arith.addf %16, %20 : vector<8x32xf32>
    %c0_8 = arith.constant 0 : index
    %c0_9 = arith.constant 0 : index
    %22 = vector.load %arg8[%c0_8, %c0_9] : memref<8x32xf32, #tpu.memory_space<vmem>>, vector<8x32xf32>
    %23 = arith.addf %7, %22 : vector<8x32xf32>
    %24 = arith.addf %23, %21 : vector<8x32xf32>
    %cst_10 = arith.constant dense<0.000000e+00> : vector<8xf32>
    %25 = vector.multi_reduction <add>, %24, %cst_10 [1] : vector<8x32xf32> to vector<8xf32>
    %26 = vector.shape_cast %25 : vector<8xf32> to vector<8x1xf32>
    %cst_11 = arith.constant 3.200000e+01 : f32
    %27 = vector.broadcast %cst_11 : f32 to vector<8x1xf32>
    %28 = arith.divf %26, %27 : vector<8x1xf32>
    %29 = vector.broadcast %28 : vector<8x1xf32> to vector<8x32xf32>
    %30 = arith.subf %24, %29 : vector<8x32xf32>
    %31 = arith.mulf %30, %30 : vector<8x32xf32>
    %cst_12 = arith.constant dense<0.000000e+00> : vector<8xf32>
    %32 = vector.multi_reduction <add>, %31, %cst_12 [1] : vector<8x32xf32> to vector<8xf32>
    %33 = vector.shape_cast %32 : vector<8xf32> to vector<8x1xf32>
    %cst_13 = arith.constant 3.200000e+01 : f32
    %34 = vector.broadcast %cst_13 : f32 to vector<8x1xf32>
    %35 = arith.divf %33, %34 : vector<8x1xf32>
    %cst_14 = arith.constant 9.99999996E-13 : f32
    %36 = vector.broadcast %cst_14 : f32 to vector<8x1xf32>
    %37 = arith.addf %35, %36 : vector<8x1xf32>
    %38 = math.rsqrt %37 : vector<8x1xf32>
    %39 = vector.broadcast %38 : vector<8x1xf32> to vector<8x32xf32>
    %40 = arith.mulf %30, %39 : vector<8x32xf32>
    %c0_15 = arith.constant 0 : index
    %c0_16 = arith.constant 0 : index
    %41 = vector.load %arg10[%c0_15, %c0_16] : memref<1x32xf32, #tpu.memory_space<vmem>>, vector<1x32xf32>
    %42 = vector.broadcast %41 : vector<1x32xf32> to vector<8x32xf32>
    %43 = arith.mulf %40, %42 : vector<8x32xf32>
    %c0_17 = arith.constant 0 : index
    %c0_18 = arith.constant 0 : index
    %44 = vector.load %arg11[%c0_17, %c0_18] : memref<1x32xf32, #tpu.memory_space<vmem>>, vector<1x32xf32>
    %45 = vector.broadcast %44 : vector<1x32xf32> to vector<8x32xf32>
    %46 = arith.addf %43, %45 : vector<8x32xf32>
    %c0_19 = arith.constant 0 : index
    %c0_20 = arith.constant 0 : index
    %c0_21 = arith.constant 0 : index
    %47 = vector.load %arg4[%c0_19, %c0_20, %c0_21] : memref<1x1x3xf32, #tpu.memory_space<vmem>>, vector<1x1x3xf32>
    %48 = vector.shape_cast %47 : vector<1x1x3xf32> to vector<1x3xf32>
    %c0_22 = arith.constant 0 : index
    %c0_23 = arith.constant 0 : index
    %49 = vector.load %arg5[%c0_22, %c0_23] : memref<3x32xf32, #tpu.memory_space<vmem>>, vector<3x32xf32>
    %cst_24 = arith.constant dense<0.000000e+00> : vector<1x32xf32>
    %50 = tpu.matmul %48, %49, %cst_24 {dimension_numbers = #tpu.dot_dimension_numbers<[1], [0], [0], [1], [0, 0, 1, 1], [], []>} : vector<1x3xf32>, vector<3x32xf32>, vector<1x32xf32> -> vector<1x32xf32>
    %c0_25 = arith.constant 0 : index
    %c0_26 = arith.constant 0 : index
    %51 = vector.load %arg6[%c0_25, %c0_26] : memref<1x32xf32, #tpu.memory_space<vmem>>, vector<1x32xf32>
    %52 = arith.addf %50, %51 : vector<1x32xf32>
    %53 = tpu.iota {dimensions = array<i32: 0>} : vector<8x1xi32>
    %c0_i32 = arith.constant 0 : i32
    %54 = vector.broadcast %c0_i32 : i32 to vector<8x1xi32>
    %55 = arith.cmpi eq, %53, %54 : vector<8x1xi32>
    %56 = vector.shape_cast %52 : vector<1x32xf32> to vector<1x32xf32>
    %57 = vector.broadcast %56 : vector<1x32xf32> to vector<8x32xf32>
    %58 = vector.shape_cast %55 : vector<8x1xi1> to vector<8x1xi1>
    %59 = vector.broadcast %58 : vector<8x1xi1> to vector<8x32xi1>
    %60 = arith.select %59, %57, %46 : vector<8x32xi1>, vector<8x32xf32>
    %c0_27 = arith.constant 0 : index
    %c0_28 = arith.constant 0 : index
    %c0_29 = arith.constant 0 : index
    %61 = vector.load %arg3[%c0_27, %c0_28, %c0_29] : memref<1x1x8xf32, #tpu.memory_space<vmem>>, vector<1x1x8xf32>
    %62 = vector.shape_cast %61 : vector<1x1x8xf32> to vector<1x8xf32>
    %cst_30 = arith.constant 1.000000e+00 : f32
    %63 = vector.broadcast %cst_30 : f32 to vector<1x8xf32>
    %64 = arith.subf %63, %62 : vector<1x8xf32>
    %cst_31 = arith.constant -1.000000e+09 : f32
    %65 = vector.broadcast %cst_31 : f32 to vector<1x8xf32>
    %66 = arith.mulf %64, %65 : vector<1x8xf32>
    %cst_32 = arith.constant dense<0.000000e+00> : vector<8xf32>
    %67 = vector.multi_reduction <add>, %60, %cst_32 [1] : vector<8x32xf32> to vector<8xf32>
    %68 = vector.shape_cast %67 : vector<8xf32> to vector<8x1xf32>
    %cst_33 = arith.constant 3.200000e+01 : f32
    %69 = vector.broadcast %cst_33 : f32 to vector<8x1xf32>
    %70 = arith.divf %68, %69 : vector<8x1xf32>
    %71 = vector.broadcast %70 : vector<8x1xf32> to vector<8x32xf32>
    %72 = arith.subf %60, %71 : vector<8x32xf32>
    %73 = arith.mulf %72, %72 : vector<8x32xf32>
    %cst_34 = arith.constant dense<0.000000e+00> : vector<8xf32>
    %74 = vector.multi_reduction <add>, %73, %cst_34 [1] : vector<8x32xf32> to vector<8xf32>
    %75 = vector.shape_cast %74 : vector<8xf32> to vector<8x1xf32>
    %cst_35 = arith.constant 3.200000e+01 : f32
    %76 = vector.broadcast %cst_35 : f32 to vector<8x1xf32>
    %77 = arith.divf %75, %76 : vector<8x1xf32>
    %cst_36 = arith.constant 9.99999996E-13 : f32
    %78 = vector.broadcast %cst_36 : f32 to vector<8x1xf32>
    %79 = arith.addf %77, %78 : vector<8x1xf32>
    %80 = math.rsqrt %79 : vector<8x1xf32>
    %81 = vector.broadcast %80 : vector<8x1xf32> to vector<8x32xf32>
    %82 = arith.mulf %72, %81 : vector<8x32xf32>
    %c0_37 = arith.constant 0 : index
    %c0_38 = arith.constant 0 : index
    %83 = vector.load %arg16[%c0_37, %c0_38] : memref<1x32xf32, #tpu.memory_space<vmem>>, vector<1x32xf32>
    %84 = vector.broadcast %83 : vector<1x32xf32> to vector<8x32xf32>
    %85 = arith.mulf %82, %84 : vector<8x32xf32>
    %c0_39 = arith.constant 0 : index
    %c0_40 = arith.constant 0 : index
    %86 = vector.load %arg17[%c0_39, %c0_40] : memref<1x32xf32, #tpu.memory_space<vmem>>, vector<1x32xf32>
    %87 = vector.broadcast %86 : vector<1x32xf32> to vector<8x32xf32>
    %88 = arith.addf %85, %87 : vector<8x32xf32>
    %c0_41 = arith.constant 0 : index
    %c0_42 = arith.constant 0 : index
    %89 = vector.load %arg12[%c0_41, %c0_42] : memref<32x96xf32, #tpu.memory_space<vmem>>, vector<32x96xf32>
    %cst_43 = arith.constant dense<0.000000e+00> : vector<8x96xf32>
    %90 = tpu.matmul %88, %89, %cst_43 {dimension_numbers = #tpu.dot_dimension_numbers<[1], [0], [0], [1], [0, 0, 1, 1], [], []>} : vector<8x32xf32>, vector<32x96xf32>, vector<8x96xf32> -> vector<8x96xf32>
    %c0_44 = arith.constant 0 : index
    %c0_45 = arith.constant 0 : index
    %91 = vector.load %arg13[%c0_44, %c0_45] : memref<1x96xf32, #tpu.memory_space<vmem>>, vector<1x96xf32>
    %92 = vector.broadcast %91 : vector<1x96xf32> to vector<8x96xf32>
    %93 = arith.addf %90, %92 : vector<8x96xf32>
    %94 = vector.extract_strided_slice %93 {offsets = [0, 0], sizes = [8, 32], strides = [1, 1]} : vector<8x96xf32> to vector<8x32xf32>
    %95 = vector.extract_strided_slice %93 {offsets = [0, 32], sizes = [8, 32], strides = [1, 1]} : vector<8x96xf32> to vector<8x32xf32>
    %96 = vector.extract_strided_slice %93 {offsets = [0, 64], sizes = [8, 32], strides = [1, 1]} : vector<8x96xf32> to vector<8x32xf32>
    %97 = vector.extract_strided_slice %94 {offsets = [0, 0], sizes = [8, 8], strides = [1, 1]} : vector<8x32xf32> to vector<8x8xf32>
    %98 = vector.extract_strided_slice %95 {offsets = [0, 0], sizes = [8, 8], strides = [1, 1]} : vector<8x32xf32> to vector<8x8xf32>
    %cst_46 = arith.constant dense<0.000000e+00> : vector<8x8xf32>
    %99 = tpu.matmul %97, %98, %cst_46 {dimension_numbers = #tpu.dot_dimension_numbers<[1], [1], [0], [0], [0, 0, 1, 0], [], []>} : vector<8x8xf32>, vector<8x8xf32>, vector<8x8xf32> -> vector<8x8xf32>
    %cst_47 = arith.constant 0.353553385 : f32
    %100 = vector.broadcast %cst_47 : f32 to vector<8x8xf32>
    %101 = arith.mulf %99, %100 : vector<8x8xf32>
    %102 = vector.broadcast %66 : vector<1x8xf32> to vector<8x8xf32>
    %103 = arith.addf %101, %102 : vector<8x8xf32>
    %cst_48 = arith.constant dense<0xFF800000> : vector<8xf32>
    %104 = vector.multi_reduction <maximumf>, %103, %cst_48 [1] : vector<8x8xf32> to vector<8xf32>
    %105 = vector.shape_cast %104 : vector<8xf32> to vector<8x1xf32>
    %106 = vector.broadcast %105 : vector<8x1xf32> to vector<8x8xf32>
    %107 = arith.subf %103, %106 : vector<8x8xf32>
    %108 = math.exp %107 : vector<8x8xf32>
    %cst_49 = arith.constant dense<0.000000e+00> : vector<8xf32>
    %109 = vector.multi_reduction <add>, %108, %cst_49 [1] : vector<8x8xf32> to vector<8xf32>
    %110 = vector.shape_cast %109 : vector<8xf32> to vector<8x1xf32>
    %111 = tpu.reciprocal %110 {approx = true} : vector<8x1xf32> -> vector<8x1xf32>
    %112 = vector.broadcast %111 : vector<8x1xf32> to vector<8x8xf32>
    %113 = arith.mulf %108, %112 : vector<8x8xf32>
    %114 = vector.extract_strided_slice %96 {offsets = [0, 0], sizes = [8, 8], strides = [1, 1]} : vector<8x32xf32> to vector<8x8xf32>
    %cst_50 = arith.constant dense<0.000000e+00> : vector<8x8xf32>
    %115 = tpu.matmul %113, %114, %cst_50 {dimension_numbers = #tpu.dot_dimension_numbers<[1], [0], [0], [1], [0, 0, 1, 1], [], []>} : vector<8x8xf32>, vector<8x8xf32>, vector<8x8xf32> -> vector<8x8xf32>
    %116 = vector.extract_strided_slice %94 {offsets = [0, 8], sizes = [8, 8], strides = [1, 1]} : vector<8x32xf32> to vector<8x8xf32>
    %117 = vector.extract_strided_slice %95 {offsets = [0, 8], sizes = [8, 8], strides = [1, 1]} : vector<8x32xf32> to vector<8x8xf32>
    %cst_51 = arith.constant dense<0.000000e+00> : vector<8x8xf32>
    %118 = tpu.matmul %116, %117, %cst_51 {dimension_numbers = #tpu.dot_dimension_numbers<[1], [1], [0], [0], [0, 0, 1, 0], [], []>} : vector<8x8xf32>, vector<8x8xf32>, vector<8x8xf32> -> vector<8x8xf32>
    %cst_52 = arith.constant 0.353553385 : f32
    %119 = vector.broadcast %cst_52 : f32 to vector<8x8xf32>
    %120 = arith.mulf %118, %119 : vector<8x8xf32>
    %121 = vector.broadcast %66 : vector<1x8xf32> to vector<8x8xf32>
    %122 = arith.addf %120, %121 : vector<8x8xf32>
    %cst_53 = arith.constant dense<0xFF800000> : vector<8xf32>
    %123 = vector.multi_reduction <maximumf>, %122, %cst_53 [1] : vector<8x8xf32> to vector<8xf32>
    %124 = vector.shape_cast %123 : vector<8xf32> to vector<8x1xf32>
    %125 = vector.broadcast %124 : vector<8x1xf32> to vector<8x8xf32>
    %126 = arith.subf %122, %125 : vector<8x8xf32>
    %127 = math.exp %126 : vector<8x8xf32>
    %cst_54 = arith.constant dense<0.000000e+00> : vector<8xf32>
    %128 = vector.multi_reduction <add>, %127, %cst_54 [1] : vector<8x8xf32> to vector<8xf32>
    %129 = vector.shape_cast %128 : vector<8xf32> to vector<8x1xf32>
    %130 = tpu.reciprocal %129 {approx = true} : vector<8x1xf32> -> vector<8x1xf32>
    %131 = vector.broadcast %130 : vector<8x1xf32> to vector<8x8xf32>
    %132 = arith.mulf %127, %131 : vector<8x8xf32>
    %133 = vector.extract_strided_slice %96 {offsets = [0, 8], sizes = [8, 8], strides = [1, 1]} : vector<8x32xf32> to vector<8x8xf32>
    %cst_55 = arith.constant dense<0.000000e+00> : vector<8x8xf32>
    %134 = tpu.matmul %132, %133, %cst_55 {dimension_numbers = #tpu.dot_dimension_numbers<[1], [0], [0], [1], [0, 0, 1, 1], [], []>} : vector<8x8xf32>, vector<8x8xf32>, vector<8x8xf32> -> vector<8x8xf32>
    %135 = vector.extract_strided_slice %94 {offsets = [0, 16], sizes = [8, 8], strides = [1, 1]} : vector<8x32xf32> to vector<8x8xf32>
    %136 = vector.extract_strided_slice %95 {offsets = [0, 16], sizes = [8, 8], strides = [1, 1]} : vector<8x32xf32> to vector<8x8xf32>
    %cst_56 = arith.constant dense<0.000000e+00> : vector<8x8xf32>
    %137 = tpu.matmul %135, %136, %cst_56 {dimension_numbers = #tpu.dot_dimension_numbers<[1], [1], [0], [0], [0, 0, 1, 0], [], []>} : vector<8x8xf32>, vector<8x8xf32>, vector<8x8xf32> -> vector<8x8xf32>
    %cst_57 = arith.constant 0.353553385 : f32
    %138 = vector.broadcast %cst_57 : f32 to vector<8x8xf32>
    %139 = arith.mulf %137, %138 : vector<8x8xf32>
    %140 = vector.broadcast %66 : vector<1x8xf32> to vector<8x8xf32>
    %141 = arith.addf %139, %140 : vector<8x8xf32>
    %cst_58 = arith.constant dense<0xFF800000> : vector<8xf32>
    %142 = vector.multi_reduction <maximumf>, %141, %cst_58 [1] : vector<8x8xf32> to vector<8xf32>
    %143 = vector.shape_cast %142 : vector<8xf32> to vector<8x1xf32>
    %144 = vector.broadcast %143 : vector<8x1xf32> to vector<8x8xf32>
    %145 = arith.subf %141, %144 : vector<8x8xf32>
    %146 = math.exp %145 : vector<8x8xf32>
    %cst_59 = arith.constant dense<0.000000e+00> : vector<8xf32>
    %147 = vector.multi_reduction <add>, %146, %cst_59 [1] : vector<8x8xf32> to vector<8xf32>
    %148 = vector.shape_cast %147 : vector<8xf32> to vector<8x1xf32>
    %149 = tpu.reciprocal %148 {approx = true} : vector<8x1xf32> -> vector<8x1xf32>
    %150 = vector.broadcast %149 : vector<8x1xf32> to vector<8x8xf32>
    %151 = arith.mulf %146, %150 : vector<8x8xf32>
    %152 = vector.extract_strided_slice %96 {offsets = [0, 16], sizes = [8, 8], strides = [1, 1]} : vector<8x32xf32> to vector<8x8xf32>
    %cst_60 = arith.constant dense<0.000000e+00> : vector<8x8xf32>
    %153 = tpu.matmul %151, %152, %cst_60 {dimension_numbers = #tpu.dot_dimension_numbers<[1], [0], [0], [1], [0, 0, 1, 1], [], []>} : vector<8x8xf32>, vector<8x8xf32>, vector<8x8xf32> -> vector<8x8xf32>
    %154 = vector.extract_strided_slice %94 {offsets = [0, 24], sizes = [8, 8], strides = [1, 1]} : vector<8x32xf32> to vector<8x8xf32>
    %155 = vector.extract_strided_slice %95 {offsets = [0, 24], sizes = [8, 8], strides = [1, 1]} : vector<8x32xf32> to vector<8x8xf32>
    %cst_61 = arith.constant dense<0.000000e+00> : vector<8x8xf32>
    %156 = tpu.matmul %154, %155, %cst_61 {dimension_numbers = #tpu.dot_dimension_numbers<[1], [1], [0], [0], [0, 0, 1, 0], [], []>} : vector<8x8xf32>, vector<8x8xf32>, vector<8x8xf32> -> vector<8x8xf32>
    %cst_62 = arith.constant 0.353553385 : f32
    %157 = vector.broadcast %cst_62 : f32 to vector<8x8xf32>
    %158 = arith.mulf %156, %157 : vector<8x8xf32>
    %159 = vector.broadcast %66 : vector<1x8xf32> to vector<8x8xf32>
    %160 = arith.addf %158, %159 : vector<8x8xf32>
    %cst_63 = arith.constant dense<0xFF800000> : vector<8xf32>
    %161 = vector.multi_reduction <maximumf>, %160, %cst_63 [1] : vector<8x8xf32> to vector<8xf32>
    %162 = vector.shape_cast %161 : vector<8xf32> to vector<8x1xf32>
    %163 = vector.broadcast %162 : vector<8x1xf32> to vector<8x8xf32>
    %164 = arith.subf %160, %163 : vector<8x8xf32>
    %165 = math.exp %164 : vector<8x8xf32>
    %cst_64 = arith.constant dense<0.000000e+00> : vector<8xf32>
    %166 = vector.multi_reduction <add>, %165, %cst_64 [1] : vector<8x8xf32> to vector<8xf32>
    %167 = vector.shape_cast %166 : vector<8xf32> to vector<8x1xf32>
    %168 = tpu.reciprocal %167 {approx = true} : vector<8x1xf32> -> vector<8x1xf32>
    %169 = vector.broadcast %168 : vector<8x1xf32> to vector<8x8xf32>
    %170 = arith.mulf %165, %169 : vector<8x8xf32>
    %171 = vector.extract_strided_slice %96 {offsets = [0, 24], sizes = [8, 8], strides = [1, 1]} : vector<8x32xf32> to vector<8x8xf32>
    %cst_65 = arith.constant dense<0.000000e+00> : vector<8x8xf32>
    %172 = tpu.matmul %170, %171, %cst_65 {dimension_numbers = #tpu.dot_dimension_numbers<[1], [0], [0], [1], [0, 0, 1, 1], [], []>} : vector<8x8xf32>, vector<8x8xf32>, vector<8x8xf32> -> vector<8x8xf32>
    %173 = tpu.concatenate %115, %134, %153, %172 in 1 : vector<8x8xf32>, vector<8x8xf32>, vector<8x8xf32>, vector<8x8xf32> -> vector<8x32xf32>
    %c0_66 = arith.constant 0 : index
    %c0_67 = arith.constant 0 : index
    %174 = vector.load %arg14[%c0_66, %c0_67] : memref<32x32xf32, #tpu.memory_space<vmem>>, vector<32x32xf32>
    %cst_68 = arith.constant dense<0.000000e+00> : vector<8x32xf32>
    %175 = tpu.matmul %173, %174, %cst_68 {dimension_numbers = #tpu.dot_dimension_numbers<[1], [0], [0], [1], [0, 0, 1, 1], [], []>} : vector<8x32xf32>, vector<32x32xf32>, vector<8x32xf32> -> vector<8x32xf32>
    %c0_69 = arith.constant 0 : index
    %c0_70 = arith.constant 0 : index
    %176 = vector.load %arg15[%c0_69, %c0_70] : memref<1x32xf32, #tpu.memory_space<vmem>>, vector<1x32xf32>
    %177 = vector.broadcast %176 : vector<1x32xf32> to vector<8x32xf32>
    %178 = arith.addf %175, %177 : vector<8x32xf32>
    %179 = arith.addf %60, %178 : vector<8x32xf32>
    %cst_71 = arith.constant dense<0.000000e+00> : vector<8xf32>
    %180 = vector.multi_reduction <add>, %179, %cst_71 [1] : vector<8x32xf32> to vector<8xf32>
    %181 = vector.shape_cast %180 : vector<8xf32> to vector<8x1xf32>
    %cst_72 = arith.constant 3.200000e+01 : f32
    %182 = vector.broadcast %cst_72 : f32 to vector<8x1xf32>
    %183 = arith.divf %181, %182 : vector<8x1xf32>
    %184 = vector.broadcast %183 : vector<8x1xf32> to vector<8x32xf32>
    %185 = arith.subf %179, %184 : vector<8x32xf32>
    %186 = arith.mulf %185, %185 : vector<8x32xf32>
    %cst_73 = arith.constant dense<0.000000e+00> : vector<8xf32>
    %187 = vector.multi_reduction <add>, %186, %cst_73 [1] : vector<8x32xf32> to vector<8xf32>
    %188 = vector.shape_cast %187 : vector<8xf32> to vector<8x1xf32>
    %cst_74 = arith.constant 3.200000e+01 : f32
    %189 = vector.broadcast %cst_74 : f32 to vector<8x1xf32>
    %190 = arith.divf %188, %189 : vector<8x1xf32>
    %cst_75 = arith.constant 9.99999996E-13 : f32
    %191 = vector.broadcast %cst_75 : f32 to vector<8x1xf32>
    %192 = arith.addf %190, %191 : vector<8x1xf32>
    %193 = math.rsqrt %192 : vector<8x1xf32>
    %194 = vector.broadcast %193 : vector<8x1xf32> to vector<8x32xf32>
    %195 = arith.mulf %185, %194 : vector<8x32xf32>
    %c0_76 = arith.constant 0 : index
    %c0_77 = arith.constant 0 : index
    %196 = vector.load %arg22[%c0_76, %c0_77] : memref<1x32xf32, #tpu.memory_space<vmem>>, vector<1x32xf32>
    %197 = vector.broadcast %196 : vector<1x32xf32> to vector<8x32xf32>
    %198 = arith.mulf %195, %197 : vector<8x32xf32>
    %c0_78 = arith.constant 0 : index
    %c0_79 = arith.constant 0 : index
    %199 = vector.load %arg23[%c0_78, %c0_79] : memref<1x32xf32, #tpu.memory_space<vmem>>, vector<1x32xf32>
    %200 = vector.broadcast %199 : vector<1x32xf32> to vector<8x32xf32>
    %201 = arith.addf %198, %200 : vector<8x32xf32>
    %c0_80 = arith.constant 0 : index
    %c0_81 = arith.constant 0 : index
    %202 = vector.load %arg18[%c0_80, %c0_81] : memref<32x128xf32, #tpu.memory_space<vmem>>, vector<32x128xf32>
    %cst_82 = arith.constant dense<0.000000e+00> : vector<8x128xf32>
    %203 = tpu.matmul %201, %202, %cst_82 {dimension_numbers = #tpu.dot_dimension_numbers<[1], [0], [0], [1], [0, 0, 1, 1], [], []>} : vector<8x32xf32>, vector<32x128xf32>, vector<8x128xf32> -> vector<8x128xf32>
    %c0_83 = arith.constant 0 : index
    %c0_84 = arith.constant 0 : index
    %204 = vector.load %arg19[%c0_83, %c0_84] : memref<1x128xf32, #tpu.memory_space<vmem>>, vector<1x128xf32>
    %205 = vector.broadcast %204 : vector<1x128xf32> to vector<8x128xf32>
    %206 = arith.addf %203, %205 : vector<8x128xf32>
    %cst_85 = arith.constant 5.000000e-01 : f32
    %207 = vector.broadcast %cst_85 : f32 to vector<8x128xf32>
    %208 = arith.mulf %207, %206 : vector<8x128xf32>
    %cst_86 = arith.constant 0.707106769 : f32
    %209 = vector.broadcast %cst_86 : f32 to vector<8x128xf32>
    %210 = arith.mulf %206, %209 : vector<8x128xf32>
    %211 = math.erf %210 : vector<8x128xf32>
    %cst_87 = arith.constant 1.000000e+00 : f32
    %212 = vector.broadcast %cst_87 : f32 to vector<8x128xf32>
    %213 = arith.addf %212, %211 : vector<8x128xf32>
    %214 = arith.mulf %208, %213 : vector<8x128xf32>
    %c0_88 = arith.constant 0 : index
    %c0_89 = arith.constant 0 : index
    %215 = vector.load %arg20[%c0_88, %c0_89] : memref<128x32xf32, #tpu.memory_space<vmem>>, vector<128x32xf32>
    %cst_90 = arith.constant dense<0.000000e+00> : vector<8x32xf32>
    %216 = tpu.matmul %214, %215, %cst_90 {dimension_numbers = #tpu.dot_dimension_numbers<[1], [0], [0], [1], [0, 0, 1, 1], [], []>} : vector<8x128xf32>, vector<128x32xf32>, vector<8x32xf32> -> vector<8x32xf32>
    %c0_91 = arith.constant 0 : index
    %c0_92 = arith.constant 0 : index
    %217 = vector.load %arg21[%c0_91, %c0_92] : memref<1x32xf32, #tpu.memory_space<vmem>>, vector<1x32xf32>
    %218 = vector.broadcast %217 : vector<1x32xf32> to vector<8x32xf32>
    %219 = arith.addf %216, %218 : vector<8x32xf32>
    %220 = arith.addf %179, %219 : vector<8x32xf32>
    %cst_93 = arith.constant dense<0.000000e+00> : vector<8xf32>
    %221 = vector.multi_reduction <add>, %220, %cst_93 [1] : vector<8x32xf32> to vector<8xf32>
    %222 = vector.shape_cast %221 : vector<8xf32> to vector<8x1xf32>
    %cst_94 = arith.constant 3.200000e+01 : f32
    %223 = vector.broadcast %cst_94 : f32 to vector<8x1xf32>
    %224 = arith.divf %222, %223 : vector<8x1xf32>
    %225 = vector.broadcast %224 : vector<8x1xf32> to vector<8x32xf32>
    %226 = arith.subf %220, %225 : vector<8x32xf32>
    %227 = arith.mulf %226, %226 : vector<8x32xf32>
    %cst_95 = arith.constant dense<0.000000e+00> : vector<8xf32>
    %228 = vector.multi_reduction <add>, %227, %cst_95 [1] : vector<8x32xf32> to vector<8xf32>
    %229 = vector.shape_cast %228 : vector<8xf32> to vector<8x1xf32>
    %cst_96 = arith.constant 3.200000e+01 : f32
    %230 = vector.broadcast %cst_96 : f32 to vector<8x1xf32>
    %231 = arith.divf %229, %230 : vector<8x1xf32>
    %cst_97 = arith.constant 9.99999996E-13 : f32
    %232 = vector.broadcast %cst_97 : f32 to vector<8x1xf32>
    %233 = arith.addf %231, %232 : vector<8x1xf32>
    %234 = math.rsqrt %233 : vector<8x1xf32>
    %235 = vector.broadcast %234 : vector<8x1xf32> to vector<8x32xf32>
    %236 = arith.mulf %226, %235 : vector<8x32xf32>
    %c0_98 = arith.constant 0 : index
    %c0_99 = arith.constant 0 : index
    %237 = vector.load %arg16[%c0_98, %c0_99] : memref<1x32xf32, #tpu.memory_space<vmem>>, vector<1x32xf32>
    %238 = vector.broadcast %237 : vector<1x32xf32> to vector<8x32xf32>
    %239 = arith.mulf %236, %238 : vector<8x32xf32>
    %c0_100 = arith.constant 0 : index
    %c0_101 = arith.constant 0 : index
    %240 = vector.load %arg17[%c0_100, %c0_101] : memref<1x32xf32, #tpu.memory_space<vmem>>, vector<1x32xf32>
    %241 = vector.broadcast %240 : vector<1x32xf32> to vector<8x32xf32>
    %242 = arith.addf %239, %241 : vector<8x32xf32>
    %c0_102 = arith.constant 0 : index
    %c0_103 = arith.constant 0 : index
    %243 = vector.load %arg12[%c0_102, %c0_103] : memref<32x96xf32, #tpu.memory_space<vmem>>, vector<32x96xf32>
    %cst_104 = arith.constant dense<0.000000e+00> : vector<8x96xf32>
    %244 = tpu.matmul %242, %243, %cst_104 {dimension_numbers = #tpu.dot_dimension_numbers<[1], [0], [0], [1], [0, 0, 1, 1], [], []>} : vector<8x32xf32>, vector<32x96xf32>, vector<8x96xf32> -> vector<8x96xf32>
    %c0_105 = arith.constant 0 : index
    %c0_106 = arith.constant 0 : index
    %245 = vector.load %arg13[%c0_105, %c0_106] : memref<1x96xf32, #tpu.memory_space<vmem>>, vector<1x96xf32>
    %246 = vector.broadcast %245 : vector<1x96xf32> to vector<8x96xf32>
    %247 = arith.addf %244, %246 : vector<8x96xf32>
    %248 = vector.extract_strided_slice %247 {offsets = [0, 0], sizes = [8, 32], strides = [1, 1]} : vector<8x96xf32> to vector<8x32xf32>
    %249 = vector.extract_strided_slice %247 {offsets = [0, 32], sizes = [8, 32], strides = [1, 1]} : vector<8x96xf32> to vector<8x32xf32>
    %250 = vector.extract_strided_slice %247 {offsets = [0, 64], sizes = [8, 32], strides = [1, 1]} : vector<8x96xf32> to vector<8x32xf32>
    %251 = vector.extract_strided_slice %248 {offsets = [0, 0], sizes = [8, 8], strides = [1, 1]} : vector<8x32xf32> to vector<8x8xf32>
    %252 = vector.extract_strided_slice %249 {offsets = [0, 0], sizes = [8, 8], strides = [1, 1]} : vector<8x32xf32> to vector<8x8xf32>
    %cst_107 = arith.constant dense<0.000000e+00> : vector<8x8xf32>
    %253 = tpu.matmul %251, %252, %cst_107 {dimension_numbers = #tpu.dot_dimension_numbers<[1], [1], [0], [0], [0, 0, 1, 0], [], []>} : vector<8x8xf32>, vector<8x8xf32>, vector<8x8xf32> -> vector<8x8xf32>
    %cst_108 = arith.constant 0.353553385 : f32
    %254 = vector.broadcast %cst_108 : f32 to vector<8x8xf32>
    %255 = arith.mulf %253, %254 : vector<8x8xf32>
    %256 = vector.broadcast %66 : vector<1x8xf32> to vector<8x8xf32>
    %257 = arith.addf %255, %256 : vector<8x8xf32>
    %cst_109 = arith.constant dense<0xFF800000> : vector<8xf32>
    %258 = vector.multi_reduction <maximumf>, %257, %cst_109 [1] : vector<8x8xf32> to vector<8xf32>
    %259 = vector.shape_cast %258 : vector<8xf32> to vector<8x1xf32>
    %260 = vector.broadcast %259 : vector<8x1xf32> to vector<8x8xf32>
    %261 = arith.subf %257, %260 : vector<8x8xf32>
    %262 = math.exp %261 : vector<8x8xf32>
    %cst_110 = arith.constant dense<0.000000e+00> : vector<8xf32>
    %263 = vector.multi_reduction <add>, %262, %cst_110 [1] : vector<8x8xf32> to vector<8xf32>
    %264 = vector.shape_cast %263 : vector<8xf32> to vector<8x1xf32>
    %265 = tpu.reciprocal %264 {approx = true} : vector<8x1xf32> -> vector<8x1xf32>
    %266 = vector.broadcast %265 : vector<8x1xf32> to vector<8x8xf32>
    %267 = arith.mulf %262, %266 : vector<8x8xf32>
    %268 = vector.extract_strided_slice %250 {offsets = [0, 0], sizes = [8, 8], strides = [1, 1]} : vector<8x32xf32> to vector<8x8xf32>
    %cst_111 = arith.constant dense<0.000000e+00> : vector<8x8xf32>
    %269 = tpu.matmul %267, %268, %cst_111 {dimension_numbers = #tpu.dot_dimension_numbers<[1], [0], [0], [1], [0, 0, 1, 1], [], []>} : vector<8x8xf32>, vector<8x8xf32>, vector<8x8xf32> -> vector<8x8xf32>
    %270 = vector.extract_strided_slice %248 {offsets = [0, 8], sizes = [8, 8], strides = [1, 1]} : vector<8x32xf32> to vector<8x8xf32>
    %271 = vector.extract_strided_slice %249 {offsets = [0, 8], sizes = [8, 8], strides = [1, 1]} : vector<8x32xf32> to vector<8x8xf32>
    %cst_112 = arith.constant dense<0.000000e+00> : vector<8x8xf32>
    %272 = tpu.matmul %270, %271, %cst_112 {dimension_numbers = #tpu.dot_dimension_numbers<[1], [1], [0], [0], [0, 0, 1, 0], [], []>} : vector<8x8xf32>, vector<8x8xf32>, vector<8x8xf32> -> vector<8x8xf32>
    %cst_113 = arith.constant 0.353553385 : f32
    %273 = vector.broadcast %cst_113 : f32 to vector<8x8xf32>
    %274 = arith.mulf %272, %273 : vector<8x8xf32>
    %275 = vector.broadcast %66 : vector<1x8xf32> to vector<8x8xf32>
    %276 = arith.addf %274, %275 : vector<8x8xf32>
    %cst_114 = arith.constant dense<0xFF800000> : vector<8xf32>
    %277 = vector.multi_reduction <maximumf>, %276, %cst_114 [1] : vector<8x8xf32> to vector<8xf32>
    %278 = vector.shape_cast %277 : vector<8xf32> to vector<8x1xf32>
    %279 = vector.broadcast %278 : vector<8x1xf32> to vector<8x8xf32>
    %280 = arith.subf %276, %279 : vector<8x8xf32>
    %281 = math.exp %280 : vector<8x8xf32>
    %cst_115 = arith.constant dense<0.000000e+00> : vector<8xf32>
    %282 = vector.multi_reduction <add>, %281, %cst_115 [1] : vector<8x8xf32> to vector<8xf32>
    %283 = vector.shape_cast %282 : vector<8xf32> to vector<8x1xf32>
    %284 = tpu.reciprocal %283 {approx = true} : vector<8x1xf32> -> vector<8x1xf32>
    %285 = vector.broadcast %284 : vector<8x1xf32> to vector<8x8xf32>
    %286 = arith.mulf %281, %285 : vector<8x8xf32>
    %287 = vector.extract_strided_slice %250 {offsets = [0, 8], sizes = [8, 8], strides = [1, 1]} : vector<8x32xf32> to vector<8x8xf32>
    %cst_116 = arith.constant dense<0.000000e+00> : vector<8x8xf32>
    %288 = tpu.matmul %286, %287, %cst_116 {dimension_numbers = #tpu.dot_dimension_numbers<[1], [0], [0], [1], [0, 0, 1, 1], [], []>} : vector<8x8xf32>, vector<8x8xf32>, vector<8x8xf32> -> vector<8x8xf32>
    %289 = vector.extract_strided_slice %248 {offsets = [0, 16], sizes = [8, 8], strides = [1, 1]} : vector<8x32xf32> to vector<8x8xf32>
    %290 = vector.extract_strided_slice %249 {offsets = [0, 16], sizes = [8, 8], strides = [1, 1]} : vector<8x32xf32> to vector<8x8xf32>
    %cst_117 = arith.constant dense<0.000000e+00> : vector<8x8xf32>
    %291 = tpu.matmul %289, %290, %cst_117 {dimension_numbers = #tpu.dot_dimension_numbers<[1], [1], [0], [0], [0, 0, 1, 0], [], []>} : vector<8x8xf32>, vector<8x8xf32>, vector<8x8xf32> -> vector<8x8xf32>
    %cst_118 = arith.constant 0.353553385 : f32
    %292 = vector.broadcast %cst_118 : f32 to vector<8x8xf32>
    %293 = arith.mulf %291, %292 : vector<8x8xf32>
    %294 = vector.broadcast %66 : vector<1x8xf32> to vector<8x8xf32>
    %295 = arith.addf %293, %294 : vector<8x8xf32>
    %cst_119 = arith.constant dense<0xFF800000> : vector<8xf32>
    %296 = vector.multi_reduction <maximumf>, %295, %cst_119 [1] : vector<8x8xf32> to vector<8xf32>
    %297 = vector.shape_cast %296 : vector<8xf32> to vector<8x1xf32>
    %298 = vector.broadcast %297 : vector<8x1xf32> to vector<8x8xf32>
    %299 = arith.subf %295, %298 : vector<8x8xf32>
    %300 = math.exp %299 : vector<8x8xf32>
    %cst_120 = arith.constant dense<0.000000e+00> : vector<8xf32>
    %301 = vector.multi_reduction <add>, %300, %cst_120 [1] : vector<8x8xf32> to vector<8xf32>
    %302 = vector.shape_cast %301 : vector<8xf32> to vector<8x1xf32>
    %303 = tpu.reciprocal %302 {approx = true} : vector<8x1xf32> -> vector<8x1xf32>
    %304 = vector.broadcast %303 : vector<8x1xf32> to vector<8x8xf32>
    %305 = arith.mulf %300, %304 : vector<8x8xf32>
    %306 = vector.extract_strided_slice %250 {offsets = [0, 16], sizes = [8, 8], strides = [1, 1]} : vector<8x32xf32> to vector<8x8xf32>
    %cst_121 = arith.constant dense<0.000000e+00> : vector<8x8xf32>
    %307 = tpu.matmul %305, %306, %cst_121 {dimension_numbers = #tpu.dot_dimension_numbers<[1], [0], [0], [1], [0, 0, 1, 1], [], []>} : vector<8x8xf32>, vector<8x8xf32>, vector<8x8xf32> -> vector<8x8xf32>
    %308 = vector.extract_strided_slice %248 {offsets = [0, 24], sizes = [8, 8], strides = [1, 1]} : vector<8x32xf32> to vector<8x8xf32>
    %309 = vector.extract_strided_slice %249 {offsets = [0, 24], sizes = [8, 8], strides = [1, 1]} : vector<8x32xf32> to vector<8x8xf32>
    %cst_122 = arith.constant dense<0.000000e+00> : vector<8x8xf32>
    %310 = tpu.matmul %308, %309, %cst_122 {dimension_numbers = #tpu.dot_dimension_numbers<[1], [1], [0], [0], [0, 0, 1, 0], [], []>} : vector<8x8xf32>, vector<8x8xf32>, vector<8x8xf32> -> vector<8x8xf32>
    %cst_123 = arith.constant 0.353553385 : f32
    %311 = vector.broadcast %cst_123 : f32 to vector<8x8xf32>
    %312 = arith.mulf %310, %311 : vector<8x8xf32>
    %313 = vector.broadcast %66 : vector<1x8xf32> to vector<8x8xf32>
    %314 = arith.addf %312, %313 : vector<8x8xf32>
    %cst_124 = arith.constant dense<0xFF800000> : vector<8xf32>
    %315 = vector.multi_reduction <maximumf>, %314, %cst_124 [1] : vector<8x8xf32> to vector<8xf32>
    %316 = vector.shape_cast %315 : vector<8xf32> to vector<8x1xf32>
    %317 = vector.broadcast %316 : vector<8x1xf32> to vector<8x8xf32>
    %318 = arith.subf %314, %317 : vector<8x8xf32>
    %319 = math.exp %318 : vector<8x8xf32>
    %cst_125 = arith.constant dense<0.000000e+00> : vector<8xf32>
    %320 = vector.multi_reduction <add>, %319, %cst_125 [1] : vector<8x8xf32> to vector<8xf32>
    %321 = vector.shape_cast %320 : vector<8xf32> to vector<8x1xf32>
    %322 = tpu.reciprocal %321 {approx = true} : vector<8x1xf32> -> vector<8x1xf32>
    %323 = vector.broadcast %322 : vector<8x1xf32> to vector<8x8xf32>
    %324 = arith.mulf %319, %323 : vector<8x8xf32>
    %325 = vector.extract_strided_slice %250 {offsets = [0, 24], sizes = [8, 8], strides = [1, 1]} : vector<8x32xf32> to vector<8x8xf32>
    %cst_126 = arith.constant dense<0.000000e+00> : vector<8x8xf32>
    %326 = tpu.matmul %324, %325, %cst_126 {dimension_numbers = #tpu.dot_dimension_numbers<[1], [0], [0], [1], [0, 0, 1, 1], [], []>} : vector<8x8xf32>, vector<8x8xf32>, vector<8x8xf32> -> vector<8x8xf32>
    %327 = tpu.concatenate %269, %288, %307, %326 in 1 : vector<8x8xf32>, vector<8x8xf32>, vector<8x8xf32>, vector<8x8xf32> -> vector<8x32xf32>
    %c0_127 = arith.constant 0 : index
    %c0_128 = arith.constant 0 : index
    %328 = vector.load %arg14[%c0_127, %c0_128] : memref<32x32xf32, #tpu.memory_space<vmem>>, vector<32x32xf32>
    %cst_129 = arith.constant dense<0.000000e+00> : vector<8x32xf32>
    %329 = tpu.matmul %327, %328, %cst_129 {dimension_numbers = #tpu.dot_dimension_numbers<[1], [0], [0], [1], [0, 0, 1, 1], [], []>} : vector<8x32xf32>, vector<32x32xf32>, vector<8x32xf32> -> vector<8x32xf32>
    %c0_130 = arith.constant 0 : index
    %c0_131 = arith.constant 0 : index
    %330 = vector.load %arg15[%c0_130, %c0_131] : memref<1x32xf32, #tpu.memory_space<vmem>>, vector<1x32xf32>
    %331 = vector.broadcast %330 : vector<1x32xf32> to vector<8x32xf32>
    %332 = arith.addf %329, %331 : vector<8x32xf32>
    %333 = arith.addf %220, %332 : vector<8x32xf32>
    %cst_132 = arith.constant dense<0.000000e+00> : vector<8xf32>
    %334 = vector.multi_reduction <add>, %333, %cst_132 [1] : vector<8x32xf32> to vector<8xf32>
    %335 = vector.shape_cast %334 : vector<8xf32> to vector<8x1xf32>
    %cst_133 = arith.constant 3.200000e+01 : f32
    %336 = vector.broadcast %cst_133 : f32 to vector<8x1xf32>
    %337 = arith.divf %335, %336 : vector<8x1xf32>
    %338 = vector.broadcast %337 : vector<8x1xf32> to vector<8x32xf32>
    %339 = arith.subf %333, %338 : vector<8x32xf32>
    %340 = arith.mulf %339, %339 : vector<8x32xf32>
    %cst_134 = arith.constant dense<0.000000e+00> : vector<8xf32>
    %341 = vector.multi_reduction <add>, %340, %cst_134 [1] : vector<8x32xf32> to vector<8xf32>
    %342 = vector.shape_cast %341 : vector<8xf32> to vector<8x1xf32>
    %cst_135 = arith.constant 3.200000e+01 : f32
    %343 = vector.broadcast %cst_135 : f32 to vector<8x1xf32>
    %344 = arith.divf %342, %343 : vector<8x1xf32>
    %cst_136 = arith.constant 9.99999996E-13 : f32
    %345 = vector.broadcast %cst_136 : f32 to vector<8x1xf32>
    %346 = arith.addf %344, %345 : vector<8x1xf32>
    %347 = math.rsqrt %346 : vector<8x1xf32>
    %348 = vector.broadcast %347 : vector<8x1xf32> to vector<8x32xf32>
    %349 = arith.mulf %339, %348 : vector<8x32xf32>
    %c0_137 = arith.constant 0 : index
    %c0_138 = arith.constant 0 : index
    %350 = vector.load %arg22[%c0_137, %c0_138] : memref<1x32xf32, #tpu.memory_space<vmem>>, vector<1x32xf32>
    %351 = vector.broadcast %350 : vector<1x32xf32> to vector<8x32xf32>
    %352 = arith.mulf %349, %351 : vector<8x32xf32>
    %c0_139 = arith.constant 0 : index
    %c0_140 = arith.constant 0 : index
    %353 = vector.load %arg23[%c0_139, %c0_140] : memref<1x32xf32, #tpu.memory_space<vmem>>, vector<1x32xf32>
    %354 = vector.broadcast %353 : vector<1x32xf32> to vector<8x32xf32>
    %355 = arith.addf %352, %354 : vector<8x32xf32>
    %c0_141 = arith.constant 0 : index
    %c0_142 = arith.constant 0 : index
    %356 = vector.load %arg18[%c0_141, %c0_142] : memref<32x128xf32, #tpu.memory_space<vmem>>, vector<32x128xf32>
    %cst_143 = arith.constant dense<0.000000e+00> : vector<8x128xf32>
    %357 = tpu.matmul %355, %356, %cst_143 {dimension_numbers = #tpu.dot_dimension_numbers<[1], [0], [0], [1], [0, 0, 1, 1], [], []>} : vector<8x32xf32>, vector<32x128xf32>, vector<8x128xf32> -> vector<8x128xf32>
    %c0_144 = arith.constant 0 : index
    %c0_145 = arith.constant 0 : index
    %358 = vector.load %arg19[%c0_144, %c0_145] : memref<1x128xf32, #tpu.memory_space<vmem>>, vector<1x128xf32>
    %359 = vector.broadcast %358 : vector<1x128xf32> to vector<8x128xf32>
    %360 = arith.addf %357, %359 : vector<8x128xf32>
    %cst_146 = arith.constant 5.000000e-01 : f32
    %361 = vector.broadcast %cst_146 : f32 to vector<8x128xf32>
    %362 = arith.mulf %361, %360 : vector<8x128xf32>
    %cst_147 = arith.constant 0.707106769 : f32
    %363 = vector.broadcast %cst_147 : f32 to vector<8x128xf32>
    %364 = arith.mulf %360, %363 : vector<8x128xf32>
    %365 = math.erf %364 : vector<8x128xf32>
    %cst_148 = arith.constant 1.000000e+00 : f32
    %366 = vector.broadcast %cst_148 : f32 to vector<8x128xf32>
    %367 = arith.addf %366, %365 : vector<8x128xf32>
    %368 = arith.mulf %362, %367 : vector<8x128xf32>
    %c0_149 = arith.constant 0 : index
    %c0_150 = arith.constant 0 : index
    %369 = vector.load %arg20[%c0_149, %c0_150] : memref<128x32xf32, #tpu.memory_space<vmem>>, vector<128x32xf32>
    %cst_151 = arith.constant dense<0.000000e+00> : vector<8x32xf32>
    %370 = tpu.matmul %368, %369, %cst_151 {dimension_numbers = #tpu.dot_dimension_numbers<[1], [0], [0], [1], [0, 0, 1, 1], [], []>} : vector<8x128xf32>, vector<128x32xf32>, vector<8x32xf32> -> vector<8x32xf32>
    %c0_152 = arith.constant 0 : index
    %c0_153 = arith.constant 0 : index
    %371 = vector.load %arg21[%c0_152, %c0_153] : memref<1x32xf32, #tpu.memory_space<vmem>>, vector<1x32xf32>
    %372 = vector.broadcast %371 : vector<1x32xf32> to vector<8x32xf32>
    %373 = arith.addf %370, %372 : vector<8x32xf32>
    %374 = arith.addf %333, %373 : vector<8x32xf32>
    %c0_154 = arith.constant 0 : index
    %c0_155 = arith.constant 0 : index
    %375 = vector.load %arg24[%c0_154, %c0_155] : memref<32x32xf32, #tpu.memory_space<vmem>>, vector<32x32xf32>
    %cst_156 = arith.constant dense<0.000000e+00> : vector<8x32xf32>
    %376 = tpu.matmul %374, %375, %cst_156 {dimension_numbers = #tpu.dot_dimension_numbers<[1], [0], [0], [1], [0, 0, 1, 1], [], []>} : vector<8x32xf32>, vector<32x32xf32>, vector<8x32xf32> -> vector<8x32xf32>
    %c0_157 = arith.constant 0 : index
    %c0_158 = arith.constant 0 : index
    %377 = vector.load %arg25[%c0_157, %c0_158] : memref<1x32xf32, #tpu.memory_space<vmem>>, vector<1x32xf32>
    %378 = vector.broadcast %377 : vector<1x32xf32> to vector<8x32xf32>
    %379 = arith.addf %376, %378 : vector<8x32xf32>
    %cst_159 = arith.constant 0.000000e+00 : f32
    %380 = vector.broadcast %cst_159 : f32 to vector<8x32xf32>
    %381 = arith.maximumf %379, %380 : vector<8x32xf32>
    %382 = vector.broadcast %cst_159 : f32 to vector<8x32xf32>
    %383 = arith.subf %379, %382 : vector<8x32xf32>
    %384 = arith.cmpf one, %383, %383 : vector<8x32xf32>
    %385 = vector.broadcast %cst_159 : f32 to vector<8x32xf32>
    %386 = arith.addf %379, %385 : vector<8x32xf32>
    %387 = math.absf %383 : vector<8x32xf32>
    %cst_160 = arith.constant 0.000000e+00 : f32
    %388 = vector.broadcast %cst_160 : f32 to vector<8x32xf32>
    %389 = arith.subf %388, %387 : vector<8x32xf32>
    %390 = math.exp %389 : vector<8x32xf32>
    %391 = math.log1p %390 : vector<8x32xf32>
    %392 = arith.addf %381, %391 : vector<8x32xf32>
    %393 = arith.select %384, %386, %392 : vector<8x32xi1>, vector<8x32xf32>
    %394 = math.erf %393 : vector<8x32xf32>
    %395 = arith.mulf %379, %394 : vector<8x32xf32>
    %c0_161 = arith.constant 0 : index
    %c0_162 = arith.constant 0 : index
    %396 = vector.load %arg26[%c0_161, %c0_162] : memref<32x32xf32, #tpu.memory_space<vmem>>, vector<32x32xf32>
    %cst_163 = arith.constant dense<0.000000e+00> : vector<8x32xf32>
    %397 = tpu.matmul %395, %396, %cst_163 {dimension_numbers = #tpu.dot_dimension_numbers<[1], [0], [0], [1], [0, 0, 1, 1], [], []>} : vector<8x32xf32>, vector<32x32xf32>, vector<8x32xf32> -> vector<8x32xf32>
    %c0_164 = arith.constant 0 : index
    %c0_165 = arith.constant 0 : index
    %398 = vector.load %arg27[%c0_164, %c0_165] : memref<1x32xf32, #tpu.memory_space<vmem>>, vector<1x32xf32>
    %399 = vector.broadcast %398 : vector<1x32xf32> to vector<8x32xf32>
    %400 = arith.addf %397, %399 : vector<8x32xf32>
    %cst_166 = arith.constant dense<0.000000e+00> : vector<8xf32>
    %401 = vector.multi_reduction <add>, %400, %cst_166 [1] : vector<8x32xf32> to vector<8xf32>
    %402 = vector.shape_cast %401 : vector<8xf32> to vector<8x1xf32>
    %cst_167 = arith.constant 3.200000e+01 : f32
    %403 = vector.broadcast %cst_167 : f32 to vector<8x1xf32>
    %404 = arith.divf %402, %403 : vector<8x1xf32>
    %405 = vector.broadcast %404 : vector<8x1xf32> to vector<8x32xf32>
    %406 = arith.subf %400, %405 : vector<8x32xf32>
    %407 = arith.mulf %406, %406 : vector<8x32xf32>
    %cst_168 = arith.constant dense<0.000000e+00> : vector<8xf32>
    %408 = vector.multi_reduction <add>, %407, %cst_168 [1] : vector<8x32xf32> to vector<8xf32>
    %409 = vector.shape_cast %408 : vector<8xf32> to vector<8x1xf32>
    %cst_169 = arith.constant 3.200000e+01 : f32
    %410 = vector.broadcast %cst_169 : f32 to vector<8x1xf32>
    %411 = arith.divf %409, %410 : vector<8x1xf32>
    %cst_170 = arith.constant 9.99999996E-13 : f32
    %412 = vector.broadcast %cst_170 : f32 to vector<8x1xf32>
    %413 = arith.addf %411, %412 : vector<8x1xf32>
    %414 = math.rsqrt %413 : vector<8x1xf32>
    %415 = vector.broadcast %414 : vector<8x1xf32> to vector<8x32xf32>
    %416 = arith.mulf %406, %415 : vector<8x32xf32>
    %c0_171 = arith.constant 0 : index
    %c0_172 = arith.constant 0 : index
    %417 = vector.load %arg28[%c0_171, %c0_172] : memref<1x32xf32, #tpu.memory_space<vmem>>, vector<1x32xf32>
    %418 = vector.broadcast %417 : vector<1x32xf32> to vector<8x32xf32>
    %419 = arith.mulf %416, %418 : vector<8x32xf32>
    %c0_173 = arith.constant 0 : index
    %c0_174 = arith.constant 0 : index
    %420 = vector.load %arg29[%c0_173, %c0_174] : memref<1x32xf32, #tpu.memory_space<vmem>>, vector<1x32xf32>
    %421 = vector.broadcast %420 : vector<1x32xf32> to vector<8x32xf32>
    %422 = arith.addf %419, %421 : vector<8x32xf32>
    %c0_175 = arith.constant 0 : index
    %c0_176 = arith.constant 0 : index
    %423 = vector.load %arg30[%c0_175, %c0_176] : memref<32x128xf32, #tpu.memory_space<vmem>>, vector<32x128xf32>
    %cst_177 = arith.constant dense<0.000000e+00> : vector<8x128xf32>
    %424 = tpu.matmul %422, %423, %cst_177 {dimension_numbers = #tpu.dot_dimension_numbers<[1], [0], [0], [1], [0, 0, 1, 1], [], []>} : vector<8x32xf32>, vector<32x128xf32>, vector<8x128xf32> -> vector<8x128xf32>
    %c0_178 = arith.constant 0 : index
    %c0_179 = arith.constant 0 : index
    %425 = vector.load %arg31[%c0_178, %c0_179] : memref<1x128xf32, #tpu.memory_space<vmem>>, vector<1x128xf32>
    %426 = vector.broadcast %425 : vector<1x128xf32> to vector<8x128xf32>
    %427 = arith.addf %424, %426 : vector<8x128xf32>
    %c0_180 = arith.constant 0 : index
    %c0_181 = arith.constant 0 : index
    %428 = vector.load %arg36[%c0_180, %c0_181] : memref<8x128xf32, #tpu.memory_space<vmem>>, vector<8x128xf32>
    tpu.vector_store %arg36[%c0_180, %c0_181], %427 {strides = array<i32>} : memref<8x128xf32, #tpu.memory_space<vmem>>, vector<8x128xf32>,
    %cst_182 = arith.constant dense<0.000000e+00> : vector<32xf32>
    %429 = vector.multi_reduction <add>, %374, %cst_182 [0] : vector<8x32xf32> to vector<32xf32>
    %430 = vector.shape_cast %429 : vector<32xf32> to vector<1x32xf32>
    %cst_183 = arith.constant 8.000000e+00 : f32
    %431 = vector.broadcast %cst_183 : f32 to vector<1x32xf32>
    %432 = arith.divf %430, %431 : vector<1x32xf32>
    %c0_184 = arith.constant 0 : index
    %c0_185 = arith.constant 0 : index
    %433 = vector.load %arg32[%c0_184, %c0_185] : memref<32x32xf32, #tpu.memory_space<vmem>>, vector<32x32xf32>
    %cst_186 = arith.constant dense<0.000000e+00> : vector<1x32xf32>
    %434 = tpu.matmul %432, %433, %cst_186 {dimension_numbers = #tpu.dot_dimension_numbers<[1], [0], [0], [1], [0, 0, 1, 1], [], []>} : vector<1x32xf32>, vector<32x32xf32>, vector<1x32xf32> -> vector<1x32xf32>
    %c0_187 = arith.constant 0 : index
    %c0_188 = arith.constant 0 : index
    %435 = vector.load %arg33[%c0_187, %c0_188] : memref<1x32xf32, #tpu.memory_space<vmem>>, vector<1x32xf32>
    %436 = arith.addf %434, %435 : vector<1x32xf32>
    %cst_189 = arith.constant 0.000000e+00 : f32
    %437 = vector.broadcast %cst_189 : f32 to vector<1x32xf32>
    %438 = arith.maximumf %436, %437 : vector<1x32xf32>
    %439 = vector.broadcast %cst_189 : f32 to vector<1x32xf32>
    %440 = arith.subf %436, %439 : vector<1x32xf32>
    %441 = arith.cmpf one, %440, %440 : vector<1x32xf32>
    %442 = vector.broadcast %cst_189 : f32 to vector<1x32xf32>
    %443 = arith.addf %436, %442 : vector<1x32xf32>
    %444 = math.absf %440 : vector<1x32xf32>
    %cst_190 = arith.constant 0.000000e+00 : f32
    %445 = vector.broadcast %cst_190 : f32 to vector<1x32xf32>
    %446 = arith.subf %445, %444 : vector<1x32xf32>
    %447 = math.exp %446 : vector<1x32xf32>
    %448 = math.log1p %447 : vector<1x32xf32>
    %449 = arith.addf %438, %448 : vector<1x32xf32>
    %450 = arith.select %441, %443, %449 : vector<1x32xi1>, vector<1x32xf32>
    %451 = math.erf %450 : vector<1x32xf32>
    %452 = arith.mulf %436, %451 : vector<1x32xf32>
    %c0_191 = arith.constant 0 : index
    %c0_192 = arith.constant 0 : index
    %453 = vector.load %arg34[%c0_191, %c0_192] : memref<32x128xf32, #tpu.memory_space<vmem>>, vector<32x128xf32>
    %cst_193 = arith.constant dense<0.000000e+00> : vector<1x128xf32>
    %454 = tpu.matmul %452, %453, %cst_193 {dimension_numbers = #tpu.dot_dimension_numbers<[1], [0], [0], [1], [0, 0, 1, 1], [], []>} : vector<1x32xf32>, vector<32x128xf32>, vector<1x128xf32> -> vector<1x128xf32>
    %c0_194 = arith.constant 0 : index
    %c0_195 = arith.constant 0 : index
    %455 = vector.load %arg35[%c0_194, %c0_195] : memref<1x128xf32, #tpu.memory_space<vmem>>, vector<1x128xf32>
    %456 = arith.addf %454, %455 : vector<1x128xf32>
    %457 = arith.mulf %456, %456 : vector<1x128xf32>
    %cst_196 = arith.constant dense<0.000000e+00> : vector<1xf32>
    %458 = vector.multi_reduction <add>, %457, %cst_196 [1] : vector<1x128xf32> to vector<1xf32>
    %459 = vector.shape_cast %458 : vector<1xf32> to vector<1x1xf32>
    %460 = math.sqrt %459 : vector<1x1xf32>
    %cst_197 = arith.constant 9.99999996E-13 : f32
    %461 = vector.broadcast %cst_197 : f32 to vector<1x1xf32>
    %462 = arith.maximumf %460, %461 : vector<1x1xf32>
    %463 = tpu.reciprocal %462 {approx = true} : vector<1x1xf32> -> vector<1x1xf32>
    %464 = vector.broadcast %463 : vector<1x1xf32> to vector<1x128xf32>
    %465 = arith.mulf %456, %464 : vector<1x128xf32>
    %c0_198 = arith.constant 0 : index
    %c0_199 = arith.constant 0 : index
    %c0_200 = arith.constant 0 : index
    %466 = vector.load %arg37[%c0_198, %c0_199, %c0_200] : memref<1x1x128xf32, #tpu.memory_space<vmem>>, vector<1x1x128xf32>
    %467 = vector.shape_cast %466 : vector<1x1x128xf32> to vector<1x128xf32>
    %468 = vector.shape_cast %465 : vector<1x128xf32> to vector<1x1x128xf32>
    tpu.vector_store %arg37[%c0_198, %c0_199, %c0_200], %468 {strides = array<i32>} : memref<1x1x128xf32, #tpu.memory_space<vmem>>, vector<1x1x128xf32>,
    return
  }
  func.func @transform_0(%arg0: i32) -> (i32, i32) {
    %c0_i32 = arith.constant 0 : i32
    %c0_i32_0 = arith.constant 0 : i32
    return %arg0, %c0_i32 : i32, i32
  }
  func.func @transform_1(%arg0: i32) -> (i32, i32) {
    %c0_i32 = arith.constant 0 : i32
    %c0_i32_0 = arith.constant 0 : i32
    return %arg0, %c0_i32 : i32, i32
  }
  func.func @transform_2(%arg0: i32) -> (i32, i32, i32) {
    %c0_i32 = arith.constant 0 : i32
    %c0_i32_0 = arith.constant 0 : i32
    %c0_i32_1 = arith.constant 0 : i32
    return %arg0, %c0_i32, %c0_i32_0 : i32, i32, i32
  }
  func.func @transform_3(%arg0: i32) -> (i32, i32, i32) {
    %c0_i32 = arith.constant 0 : i32
    %c0_i32_0 = arith.constant 0 : i32
    %c0_i32_1 = arith.constant 0 : i32
    return %arg0, %c0_i32, %c0_i32_0 : i32, i32, i32
  }
  func.func @transform_4(%arg0: i32) -> (i32, i32) {
    %c0_i32 = arith.constant 0 : i32
    %c0_i32_0 = arith.constant 0 : i32
    %c0_i32_1 = arith.constant 0 : i32
    return %c0_i32, %c0_i32_0 : i32, i32
  }
  func.func @transform_5(%arg0: i32) -> (i32, i32) {
    %c0_i32 = arith.constant 0 : i32
    %c0_i32_0 = arith.constant 0 : i32
    %c0_i32_1 = arith.constant 0 : i32
    return %c0_i32, %c0_i32_0 : i32, i32
  }
  func.func @transform_6(%arg0: i32) -> (i32, i32) {
    %c0_i32 = arith.constant 0 : i32
    %c0_i32_0 = arith.constant 0 : i32
    %c0_i32_1 = arith.constant 0 : i32
    return %c0_i32, %c0_i32_0 : i32, i32
  }
  func.func @transform_7(%arg0: i32) -> (i32, i32) {
    %c0_i32 = arith.constant 0 : i32
    %c0_i32_0 = arith.constant 0 : i32
    %c0_i32_1 = arith.constant 0 : i32
    return %c0_i32, %c0_i32_0 : i32, i32
  }
  func.func @transform_8(%arg0: i32) -> (i32, i32) {
    %c0_i32 = arith.constant 0 : i32
    %c0_i32_0 = arith.constant 0 : i32
    %c0_i32_1 = arith.constant 0 : i32
    return %c0_i32, %c0_i32_0 : i32, i32
  }
  func.func @transform_9(%arg0: i32) -> (i32, i32) {
    %c0_i32 = arith.constant 0 : i32
    %c0_i32_0 = arith.constant 0 : i32
    %c0_i32_1 = arith.constant 0 : i32
    return %c0_i32, %c0_i32_0 : i32, i32
  }
  func.func @transform_10(%arg0: i32) -> (i32, i32) {
    %c0_i32 = arith.constant 0 : i32
    %c0_i32_0 = arith.constant 0 : i32
    %c0_i32_1 = arith.constant 0 : i32
    return %c0_i32, %c0_i32_0 : i32, i32
  }
  func.func @transform_11(%arg0: i32) -> (i32, i32) {
    %c0_i32 = arith.constant 0 : i32
    %c0_i32_0 = arith.constant 0 : i32
    %c0_i32_1 = arith.constant 0 : i32
    return %c0_i32, %c0_i32_0 : i32, i32
  }
  func.func @transform_12(%arg0: i32) -> (i32, i32) {
    %c0_i32 = arith.constant 0 : i32
    %c0_i32_0 = arith.constant 0 : i32
    %c0_i32_1 = arith.constant 0 : i32
    return %c0_i32, %c0_i32_0 : i32, i32
  }
  func.func @transform_13(%arg0: i32) -> (i32, i32) {
    %c0_i32 = arith.constant 0 : i32
    %c0_i32_0 = arith.constant 0 : i32
    %c0_i32_1 = arith.constant 0 : i32
    return %c0_i32, %c0_i32_0 : i32, i32
  }
  func.func @transform_14(%arg0: i32) -> (i32, i32) {
    %c0_i32 = arith.constant 0 : i32
    %c0_i32_0 = arith.constant 0 : i32
    %c0_i32_1 = arith.constant 0 : i32
    return %c0_i32, %c0_i32_0 : i32, i32
  }
  func.func @transform_15(%arg0: i32) -> (i32, i32) {
    %c0_i32 = arith.constant 0 : i32
    %c0_i32_0 = arith.constant 0 : i32
    %c0_i32_1 = arith.constant 0 : i32
    return %c0_i32, %c0_i32_0 : i32, i32
  }
  func.func @transform_16(%arg0: i32) -> (i32, i32) {
    %c0_i32 = arith.constant 0 : i32
    %c0_i32_0 = arith.constant 0 : i32
    %c0_i32_1 = arith.constant 0 : i32
    return %c0_i32, %c0_i32_0 : i32, i32
  }
  func.func @transform_17(%arg0: i32) -> (i32, i32) {
    %c0_i32 = arith.constant 0 : i32
    %c0_i32_0 = arith.constant 0 : i32
    %c0_i32_1 = arith.constant 0 : i32
    return %c0_i32, %c0_i32_0 : i32, i32
  }
  func.func @transform_18(%arg0: i32) -> (i32, i32) {
    %c0_i32 = arith.constant 0 : i32
    %c0_i32_0 = arith.constant 0 : i32
    %c0_i32_1 = arith.constant 0 : i32
    return %c0_i32, %c0_i32_0 : i32, i32
  }
  func.func @transform_19(%arg0: i32) -> (i32, i32) {
    %c0_i32 = arith.constant 0 : i32
    %c0_i32_0 = arith.constant 0 : i32
    %c0_i32_1 = arith.constant 0 : i32
    return %c0_i32, %c0_i32_0 : i32, i32
  }
  func.func @transform_20(%arg0: i32) -> (i32, i32) {
    %c0_i32 = arith.constant 0 : i32
    %c0_i32_0 = arith.constant 0 : i32
    %c0_i32_1 = arith.constant 0 : i32
    return %c0_i32, %c0_i32_0 : i32, i32
  }
  func.func @transform_21(%arg0: i32) -> (i32, i32) {
    %c0_i32 = arith.constant 0 : i32
    %c0_i32_0 = arith.constant 0 : i32
    %c0_i32_1 = arith.constant 0 : i32
    return %c0_i32, %c0_i32_0 : i32, i32
  }
  func.func @transform_22(%arg0: i32) -> (i32, i32) {
    %c0_i32 = arith.constant 0 : i32
    %c0_i32_0 = arith.constant 0 : i32
    %c0_i32_1 = arith.constant 0 : i32
    return %c0_i32, %c0_i32_0 : i32, i32
  }
  func.func @transform_23(%arg0: i32) -> (i32, i32) {
    %c0_i32 = arith.constant 0 : i32
    %c0_i32_0 = arith.constant 0 : i32
    %c0_i32_1 = arith.constant 0 : i32
    return %c0_i32, %c0_i32_0 : i32, i32
  }
  func.func @transform_24(%arg0: i32) -> (i32, i32) {
    %c0_i32 = arith.constant 0 : i32
    %c0_i32_0 = arith.constant 0 : i32
    %c0_i32_1 = arith.constant 0 : i32
    return %c0_i32, %c0_i32_0 : i32, i32
  }
  func.func @transform_25(%arg0: i32) -> (i32, i32) {
    %c0_i32 = arith.constant 0 : i32
    %c0_i32_0 = arith.constant 0 : i32
    %c0_i32_1 = arith.constant 0 : i32
    return %c0_i32, %c0_i32_0 : i32, i32
  }
  func.func @transform_26(%arg0: i32) -> (i32, i32) {
    %c0_i32 = arith.constant 0 : i32
    %c0_i32_0 = arith.constant 0 : i32
    %c0_i32_1 = arith.constant 0 : i32
    return %c0_i32, %c0_i32_0 : i32, i32
  }
  func.func @transform_27(%arg0: i32) -> (i32, i32) {
    %c0_i32 = arith.constant 0 : i32
    %c0_i32_0 = arith.constant 0 : i32
    %c0_i32_1 = arith.constant 0 : i32
    return %c0_i32, %c0_i32_0 : i32, i32
  }
  func.func @transform_28(%arg0: i32) -> (i32, i32) {
    %c0_i32 = arith.constant 0 : i32
    %c0_i32_0 = arith.constant 0 : i32
    %c0_i32_1 = arith.constant 0 : i32
    return %c0_i32, %c0_i32_0 : i32, i32
  }
  func.func @transform_29(%arg0: i32) -> (i32, i32) {
    %c0_i32 = arith.constant 0 : i32
    %c0_i32_0 = arith.constant 0 : i32
    %c0_i32_1 = arith.constant 0 : i32
    return %c0_i32, %c0_i32_0 : i32, i32
  }
  func.func @transform_30(%arg0: i32) -> (i32, i32) {
    %c0_i32 = arith.constant 0 : i32
    %c0_i32_0 = arith.constant 0 : i32
    %c0_i32_1 = arith.constant 0 : i32
    return %c0_i32, %c0_i32_0 : i32, i32
  }
  func.func @transform_31(%arg0: i32) -> (i32, i32) {
    %c0_i32 = arith.constant 0 : i32
    %c0_i32_0 = arith.constant 0 : i32
    %c0_i32_1 = arith.constant 0 : i32
    return %c0_i32, %c0_i32_0 : i32, i32
  }
  func.func @transform_32(%arg0: i32) -> (i32, i32) {
    %c0_i32 = arith.constant 0 : i32
    %c0_i32_0 = arith.constant 0 : i32
    %c0_i32_1 = arith.constant 0 : i32
    return %c0_i32, %c0_i32_0 : i32, i32
  }
  func.func @transform_33(%arg0: i32) -> (i32, i32) {
    %c0_i32 = arith.constant 0 : i32
    %c0_i32_0 = arith.constant 0 : i32
    %c0_i32_1 = arith.constant 0 : i32
    return %c0_i32, %c0_i32_0 : i32, i32
  }
  func.func @transform_34(%arg0: i32) -> (i32, i32) {
    %c0_i32 = arith.constant 0 : i32
    %c0_i32_0 = arith.constant 0 : i32
    %c0_i32_1 = arith.constant 0 : i32
    return %c0_i32, %c0_i32_0 : i32, i32
  }
  func.func @transform_35(%arg0: i32) -> (i32, i32) {
    %c0_i32 = arith.constant 0 : i32
    %c0_i32_0 = arith.constant 0 : i32
    return %arg0, %c0_i32 : i32, i32
  }
  func.func @transform_36(%arg0: i32) -> (i32, i32, i32) {
    %c0_i32 = arith.constant 0 : i32
    %c0_i32_0 = arith.constant 0 : i32
    %c0_i32_1 = arith.constant 0 : i32
    return %arg0, %c0_i32, %c0_i32_0 : i32, i32, i32
  }
}

</mosaic_0001>

<llo_original>
// kernel: model_forward.1
$region0: #{model_forward.1}
  #allocation0 [shape = 'u32[]', space=smem, size = 0x4, offset = 0x4, fixed_abs, tag = 'smem constant byte address 0x4 - core index']
  #allocation1 [shape = 'u32[144,128]{1,0:T(1,128)}', space=vmem, size = 0x12000, scoped, tag = 'internal scratch']
  %s0 = inlined_call_operand.smem [shape: u32[37], index: -1, kind: input, shape index: {}]
  %s1 = sld [smem:[%s0]]
  %s2 = scalar_lea.smem %s0, 1
  %s3 = sld [smem:[%s2]]
  %s4 = scalar_lea.smem %s0, 2
  %s5 = sld [smem:[%s4]]
  %s6 = scalar_lea.smem %s0, 3
  %s7 = sld [smem:[%s6]]
  %s8 = scalar_lea.smem %s0, 4
  %s9 = sld [smem:[%s8]]
  %s10 = scalar_lea.smem %s0, 5
  %s11 = sld [smem:[%s10]]
  %s12 = scalar_lea.smem %s0, 6
  %s13 = sld [smem:[%s12]]
  %s14 = scalar_lea.smem %s0, 7
  %s15 = sld [smem:[%s14]]
  %s16 = scalar_lea.smem %s0, 8
  %s17 = sld [smem:[%s16]]
  %s18 = scalar_lea.smem %s0, 9
  %s19 = sld [smem:[%s18]]
  %s20 = scalar_lea.smem %s0, 10
  %s21 = sld [smem:[%s20]]
  %s22 = scalar_lea.smem %s0, 11
  %s23 = sld [smem:[%s22]]
  %s24 = scalar_lea.smem %s0, 12
  %s25 = sld [smem:[%s24]]
  %s26 = scalar_lea.smem %s0, 13
  %s27 = sld [smem:[%s26]]
  %s28 = scalar_lea.smem %s0, 14
  %s29 = sld [smem:[%s28]]
  %s30 = scalar_lea.smem %s0, 15
  %s31 = sld [smem:[%s30]]
  %s32 = scalar_lea.smem %s0, 16
  %s33 = sld [smem:[%s32]]
  %s34 = scalar_lea.smem %s0, 17
  %s35 = sld [smem:[%s34]]
  %s36 = scalar_lea.smem %s0, 18
  %s37 = sld [smem:[%s36]]
  %s38 = scalar_lea.smem %s0, 19
  %s39 = sld [smem:[%s38]]
  %s40 = scalar_lea.smem %s0, 20
  %s41 = sld [smem:[%s40]]
  %s42 = scalar_lea.smem %s0, 21
  %s43 = sld [smem:[%s42]]
  %s44 = scalar_lea.smem %s0, 22
  %s45 = sld [smem:[%s44]]
  %s46 = scalar_lea.smem %s0, 23
  %s47 = sld [smem:[%s46]]
  %s48 = scalar_lea.smem %s0, 24
  %s49 = sld [smem:[%s48]]
  %s50 = scalar_lea.smem %s0, 25
  %s51 = sld [smem:[%s50]]
  %s52 = scalar_lea.smem %s0, 26
  %s53 = sld [smem:[%s52]]
  %s54 = scalar_lea.smem %s0, 27
  %s55 = sld [smem:[%s54]]
  %s56 = scalar_lea.smem %s0, 28
  %s57 = sld [smem:[%s56]]
  %s58 = scalar_lea.smem %s0, 29
  %s59 = sld [smem:[%s58]]
  %s60 = scalar_lea.smem %s0, 30
  %s61 = sld [smem:[%s60]]
  %s62 = scalar_lea.smem %s0, 31
  %s63 = sld [smem:[%s62]]
  %s64 = scalar_lea.smem %s0, 32
  %s65 = sld [smem:[%s64]]
  %s66 = scalar_lea.smem %s0, 33
  %s67 = sld [smem:[%s66]]
  %s68 = scalar_lea.smem %s0, 34
  %s69 = sld [smem:[%s68]]
  %s70 = scalar_lea.smem %s0, 35
  %s71 = sld [smem:[%s70]]
  %s72 = scalar_lea.smem %s0, 36
  %s73 = sld [smem:[%s72]]
  %74 = xla_tuple %s71, %s73
  %s75 = sld [smem:[#allocation0]]
  $region181: #{model_forward.1} parent=0
    _
  %s77 = ssub.s32 1, %s75
  %s78 = scalar_select 0, %s77, %s75
  $region1: #{model_forward.1} parent=0
    #allocation2 [shape = 'u8[1024]{0}', space=vmem, size = 0x400, scoped, tag = 'output window, operand 1']
    #allocation3 [shape = 's32[2]{0}', space=sflag, size = 0x8, scoped, tag = 'scoped memory for model_forward.1']
    %79 = vsyncpa [#allocation3], 0
    %s80 = scalar_lea.sflag [#allocation3], 1
    %81 = vsyncpa %s80, 0
    loop: start=0, step=1, limit=4
    $region2: #{model_forward.1} parent=1 // loop_pre_header
      _
    $region3: #{model_forward.1} parent=1 // loop_header
      %s83 = sphi 0, %s87
      %p84 = scmp.ge.s32.totalorder %s83, 4
      %s93 = sphi 0, %s95
      %s96 = sphi 0, %s93
      %s97 = sphi 0, %s96
      %s113 = sphi 0, %s97
      %s119 = sphi 0, %s121
      %s122 = sphi 0, %s119
      %s123 = sphi 0, %s122
      %s139 = sphi 0, %s123
      %s145 = sphi 0, %s147
      %s148 = sphi 0, %s145
      %s149 = sphi 0, %s148
      %s165 = sphi 0, %s149
      %s171 = sphi 0, %s173
      %s174 = sphi 0, %s171
      %s175 = sphi 0, %s174
      %s191 = sphi 0, %s175
      %s195 = sphi 0, %s195
      %s197 = sphi 0, %s195
      %s198 = sphi 0, %s197
      %s212 = sphi 0, %s198
      %s216 = sphi 0, %s216
      %s218 = sphi 0, %s216
      %s219 = sphi 0, %s218
      %s233 = sphi 0, %s219
      %s237 = sphi 0, %s237
      %s239 = sphi 0, %s237
      %s240 = sphi 0, %s239
      %s254 = sphi 0, %s240
      %s258 = sphi 0, %s258
      %s260 = sphi 0, %s258
      %s261 = sphi 0, %s260
      %s275 = sphi 0, %s261
      %s279 = sphi 0, %s279
      %s281 = sphi 0, %s279
      %s282 = sphi 0, %s281
      %s296 = sphi 0, %s282
      %s300 = sphi 0, %s300
      %s302 = sphi 0, %s300
      %s303 = sphi 0, %s302
      %s317 = sphi 0, %s303
      %s321 = sphi 0, %s321
      %s323 = sphi 0, %s321
      %s324 = sphi 0, %s323
      %s338 = sphi 0, %s324
      %s342 = sphi 0, %s342
      %s344 = sphi 0, %s342
      %s345 = sphi 0, %s344
      %s359 = sphi 0, %s345
      %s363 = sphi 0, %s363
      %s365 = sphi 0, %s363
      %s366 = sphi 0, %s365
      %s380 = sphi 0, %s366
      %s384 = sphi 0, %s384
      %s386 = sphi 0, %s384
      %s387 = sphi 0, %s386
      %s401 = sphi 0, %s387
      %s405 = sphi 0, %s405
      %s407 = sphi 0, %s405
      %s408 = sphi 0, %s407
      %s422 = sphi 0, %s408
      %s426 = sphi 0, %s426
      %s428 = sphi 0, %s426
      %s429 = sphi 0, %s428
      %s443 = sphi 0, %s429
      %s447 = sphi 0, %s447
      %s449 = sphi 0, %s447
      %s450 = sphi 0, %s449
      %s464 = sphi 0, %s450
      %s468 = sphi 0, %s468
      %s470 = sphi 0, %s468
      %s471 = sphi 0, %s470
      %s485 = sphi 0, %s471
      %s489 = sphi 0, %s489
      %s491 = sphi 0, %s489
      %s492 = sphi 0, %s491
      %s506 = sphi 0, %s492
      %s510 = sphi 0, %s510
      %s512 = sphi 0, %s510
      %s513 = sphi 0, %s512
      %s527 = sphi 0, %s513
      %s531 = sphi 0, %s531
      %s533 = sphi 0, %s531
      %s534 = sphi 0, %s533
      %s548 = sphi 0, %s534
      %s552 = sphi 0, %s552
      %s554 = sphi 0, %s552
      %s555 = sphi 0, %s554
      %s569 = sphi 0, %s555
      %s573 = sphi 0, %s573
      %s575 = sphi 0, %s573
      %s576 = sphi 0, %s575
      %s590 = sphi 0, %s576
      %s594 = sphi 0, %s594
      %s596 = sphi 0, %s594
      %s597 = sphi 0, %s596
      %s611 = sphi 0, %s597
      %s615 = sphi 0, %s615
      %s617 = sphi 0, %s615
      %s618 = sphi 0, %s617
      %s632 = sphi 0, %s618
      %s636 = sphi 0, %s636
      %s638 = sphi 0, %s636
      %s639 = sphi 0, %s638
      %s653 = sphi 0, %s639
      %s657 = sphi 0, %s657
      %s659 = sphi 0, %s657
      %s660 = sphi 0, %s659
      %s674 = sphi 0, %s660
      %s678 = sphi 0, %s678
      %s680 = sphi 0, %s678
      %s681 = sphi 0, %s680
      %s695 = sphi 0, %s681
      %s699 = sphi 0, %s699
      %s701 = sphi 0, %s699
      %s702 = sphi 0, %s701
      %s716 = sphi 0, %s702
      %s720 = sphi 0, %s720
      %s722 = sphi 0, %s720
      %s723 = sphi 0, %s722
      %s737 = sphi 0, %s723
      %s741 = sphi 0, %s741
      %s743 = sphi 0, %s741
      %s744 = sphi 0, %s743
      %s758 = sphi 0, %s744
      %s762 = sphi 0, %s762
      %s764 = sphi 0, %s762
      %s765 = sphi 0, %s764
      %s779 = sphi 0, %s765
      %s783 = sphi 0, %s783
      %s785 = sphi 0, %s783
      %s786 = sphi 0, %s785
      %s800 = sphi 0, %s786
      %s804 = sphi 0, %s804
      %s806 = sphi 0, %s804
      %s807 = sphi 0, %s806
      %s821 = sphi 0, %s807
      %s825 = sphi 0, %s825
      %s827 = sphi 0, %s825
      %s828 = sphi 0, %s827
      %s842 = sphi 0, %s828
      %s848 = sphi 0, %s850
      %s851 = sphi 0, %s848
      %s852 = sphi 0, %s851
      %s868 = sphi 0, %s852
      %s874 = sphi 0, %s876
      %s877 = sphi 0, %s874
      %s878 = sphi 0, %s877
      %s894 = sphi 0, %s878
    $region4: #{model_forward.1} parent=1 // loop_header_branch
      %86 = sbr.rel (%p84) target = $region8
    $region5: #{model_forward.1} parent=1 // loop_body
      %s88 = ssub.s32 %s83, 1
      %s89 = ssub.s32 %s83, 2
      %s90 = sadd.s32 %s83, 1
      %s91 = ssub.s32 %s83, %s90
      %p92 = scmp.eq.s32.totalorder %s91, 0
      %s94 = sadd.s32 %s93, 1
      %s95 = scalar_select %p92, %s93, %s94
      %p98 = pneg %p92
      %p99 = scmp.eq.s32.totalorder %s83, 1
      %p100 = por %p98, %p99
      %p101 = scmp.ne.s32.totalorder %s93, %s96
      %p102 = scmp.eq.s32.totalorder %s83, 0
      %p103 = por %p101, %p102
      %p104 = scmp.ne.s32.totalorder %s93, %s96
      %p105 = scmp.eq.s32.totalorder %s88, 1
      %p106 = por %p104, %p105
      %p107 = scmp.ne.s32.totalorder %s96, %s97
      %p108 = scmp.eq.s32.totalorder %s88, 0
      %p109 = por %p107, %p108
      %p110 = scmp.ne.s32.totalorder %s96, %s97
      %p111 = scmp.eq.s32.totalorder %s89, 1
      %p112 = por %p110, %p111
      %p114 = scmp.ne.s32.totalorder %s97, %s113
      %p115 = scmp.eq.s32.totalorder %s89, 0
      %p116 = por %p114, %p115
      %s117 = ssub.s32 %s83, %s90
      %p118 = scmp.eq.s32.totalorder %s117, 0
      %s120 = sadd.s32 %s119, 1
      %s121 = scalar_select %p118, %s119, %s120
      %p124 = pneg %p118
      %p125 = scmp.eq.s32.totalorder %s83, 1
      %p126 = por %p124, %p125
      %p127 = scmp.ne.s32.totalorder %s119, %s122
      %p128 = scmp.eq.s32.totalorder %s83, 0
      %p129 = por %p127, %p128
      %p130 = scmp.ne.s32.totalorder %s119, %s122
      %p131 = scmp.eq.s32.totalorder %s88, 1
      %p132 = por %p130, %p131
      %p133 = scmp.ne.s32.totalorder %s122, %s123
      %p134 = scmp.eq.s32.totalorder %s88, 0
      %p135 = por %p133, %p134
      %p136 = scmp.ne.s32.totalorder %s122, %s123
      %p137 = scmp.eq.s32.totalorder %s89, 1
      %p138 = por %p136, %p137
      %p140 = scmp.ne.s32.totalorder %s123, %s139
      %p141 = scmp.eq.s32.totalorder %s89, 0
      %p142 = por %p140, %p141
      %s143 = ssub.s32 %s83, %s90
      %p144 = scmp.eq.s32.totalorder %s143, 0
      %s146 = sadd.s32 %s145, 1
      %s147 = scalar_select %p144, %s145, %s146
      %p150 = pneg %p144
      %p151 = scmp.eq.s32.totalorder %s83, 1
      %p152 = por %p150, %p151
      %p153 = scmp.ne.s32.totalorder %s145, %s148
      %p154 = scmp.eq.s32.totalorder %s83, 0
      %p155 = por %p153, %p154
      %p156 = scmp.ne.s32.totalorder %s145, %s148
      %p157 = scmp.eq.s32.totalorder %s88, 1
      %p158 = por %p156, %p157
      %p159 = scmp.ne.s32.totalorder %s148, %s149
      %p160 = scmp.eq.s32.totalorder %s88, 0
      %p161 = por %p159, %p160
      %p162 = scmp.ne.s32.totalorder %s148, %s149
      %p163 = scmp.eq.s32.totalorder %s89, 1
      %p164 = por %p162, %p163
      %p166 = scmp.ne.s32.totalorder %s149, %s165
      %p167 = scmp.eq.s32.totalorder %s89, 0
      %p168 = por %p166, %p167
      %s169 = ssub.s32 %s83, %s90
      %p170 = scmp.eq.s32.totalorder %s169, 0
      %s172 = sadd.s32 %s171, 1
      %s173 = scalar_select %p170, %s171, %s172
      %p176 = pneg %p170
      %p177 = scmp.eq.s32.totalorder %s83, 1
      %p178 = por %p176, %p177
      %p179 = scmp.ne.s32.totalorder %s171, %s174
      %p180 = scmp.eq.s32.totalorder %s83, 0
      %p181 = por %p179, %p180
      %p182 = scmp.ne.s32.totalorder %s171, %s174
      %p183 = scmp.eq.s32.totalorder %s88, 1
      %p184 = por %p182, %p183
      %p185 = scmp.ne.s32.totalorder %s174, %s175
      %p186 = scmp.eq.s32.totalorder %s88, 0
      %p187 = por %p185, %p186
      %p188 = scmp.ne.s32.totalorder %s174, %s175
      %p189 = scmp.eq.s32.totalorder %s89, 1
      %p190 = por %p188, %p189
      %p192 = scmp.ne.s32.totalorder %s175, %s191
      %p193 = scmp.eq.s32.totalorder %s89, 0
      %p194 = por %p192, %p193
      %s196 = sadd.s32 %s195, 1
      %p199 = scmp.eq.s32.totalorder %s83, 1
      %p200 = scmp.ne.s32.totalorder %s195, %s197
      %p201 = scmp.eq.s32.totalorder %s83, 0
      %p202 = por %p200, %p201
      %p203 = scmp.ne.s32.totalorder %s195, %s197
      %p204 = scmp.eq.s32.totalorder %s88, 1
      %p205 = por %p203, %p204
      %p206 = scmp.ne.s32.totalorder %s197, %s198
      %p207 = scmp.eq.s32.totalorder %s88, 0
      %p208 = por %p206, %p207
      %p209 = scmp.ne.s32.totalorder %s197, %s198
      %p210 = scmp.eq.s32.totalorder %s89, 1
      %p211 = por %p209, %p210
      %p213 = scmp.ne.s32.totalorder %s198, %s212
      %p214 = scmp.eq.s32.totalorder %s89, 0
      %p215 = por %p213, %p214
      %s217 = sadd.s32 %s216, 1
      %p220 = scmp.eq.s32.totalorder %s83, 1
      %p221 = scmp.ne.s32.totalorder %s216, %s218
      %p222 = scmp.eq.s32.totalorder %s83, 0
      %p223 = por %p221, %p222
      %p224 = scmp.ne.s32.totalorder %s216, %s218
      %p225 = scmp.eq.s32.totalorder %s88, 1
      %p226 = por %p224, %p225
      %p227 = scmp.ne.s32.totalorder %s218, %s219
      %p228 = scmp.eq.s32.totalorder %s88, 0
      %p229 = por %p227, %p228
      %p230 = scmp.ne.s32.totalorder %s218, %s219
      %p231 = scmp.eq.s32.totalorder %s89, 1
      %p232 = por %p230, %p231
      %p234 = scmp.ne.s32.totalorder %s219, %s233
      %p235 = scmp.eq.s32.totalorder %s89, 0
      %p236 = por %p234, %p235
      %s238 = sadd.s32 %s237, 1
      %p241 = scmp.eq.s32.totalorder %s83, 1
      %p242 = scmp.ne.s32.totalorder %s237, %s239
      %p243 = scmp.eq.s32.totalorder %s83, 0
      %p244 = por %p242, %p243
      %p245 = scmp.ne.s32.totalorder %s237, %s239
      %p246 = scmp.eq.s32.totalorder %s88, 1
      %p247 = por %p245, %p246
      %p248 = scmp.ne.s32.totalorder %s239, %s240
      %p249 = scmp.eq.s32.totalorder %s88, 0
      %p250 = por %p248, %p249
      %p251 = scmp.ne.s32.totalorder %s239, %s240
      %p252 = scmp.eq.s32.totalorder %s89, 1
      %p253 = por %p251, %p252
      %p255 = scmp.ne.s32.totalorder %s240, %s254
      %p256 = scmp.eq.s32.totalorder %s89, 0
      %p257 = por %p255, %p256
      %s259 = sadd.s32 %s258, 1
      %p262 = scmp.eq.s32.totalorder %s83, 1
      %p263 = scmp.ne.s32.totalorder %s258, %s260
      %p264 = scmp.eq.s32.totalorder %s83, 0
      %p265 = por %p263, %p264
      %p266 = scmp.ne.s32.totalorder %s258, %s260
      %p267 = scmp.eq.s32.totalorder %s88, 1
      %p268 = por %p266, %p267
      %p269 = scmp.ne.s32.totalorder %s260, %s261
      %p270 = scmp.eq.s32.totalorder %s88, 0
      %p271 = por %p269, %p270
      %p272 = scmp.ne.s32.totalorder %s260, %s261
      %p273 = scmp.eq.s32.totalorder %s89, 1
      %p274 = por %p272, %p273
      %p276 = scmp.ne.s32.totalorder %s261, %s275
      %p277 = scmp.eq.s32.totalorder %s89, 0
      %p278 = por %p276, %p277
      %s280 = sadd.s32 %s279, 1
      %p283 = scmp.eq.s32.totalorder %s83, 1
      %p284 = scmp.ne.s32.totalorder %s279, %s281
      %p285 = scmp.eq.s32.totalorder %s83, 0
      %p286 = por %p284, %p285
      %p287 = scmp.ne.s32.totalorder %s279, %s281
      %p288 = scmp.eq.s32.totalorder %s88, 1
      %p289 = por %p287, %p288
      %p290 = scmp.ne.s32.totalorder %s281, %s282
      %p291 = scmp.eq.s32.totalorder %s88, 0
      %p292 = por %p290, %p291
      %p293 = scmp.ne.s32.totalorder %s281, %s282
      %p294 = scmp.eq.s32.totalorder %s89, 1
      %p295 = por %p293, %p294
      %p297 = scmp.ne.s32.totalorder %s282, %s296
      %p298 = scmp.eq.s32.totalorder %s89, 0
      %p299 = por %p297, %p298
      %s301 = sadd.s32 %s300, 1
      %p304 = scmp.eq.s32.totalorder %s83, 1
      %p305 = scmp.ne.s32.totalorder %s300, %s302
      %p306 = scmp.eq.s32.totalorder %s83, 0
      %p307 = por %p305, %p306
      %p308 = scmp.ne.s32.totalorder %s300, %s302
      %p309 = scmp.eq.s32.totalorder %s88, 1
      %p310 = por %p308, %p309
      %p311 = scmp.ne.s32.totalorder %s302, %s303
      %p312 = scmp.eq.s32.totalorder %s88, 0
      %p313 = por %p311, %p312
      %p314 = scmp.ne.s32.totalorder %s302, %s303
      %p315 = scmp.eq.s32.totalorder %s89, 1
      %p316 = por %p314, %p315
      %p318 = scmp.ne.s32.totalorder %s303, %s317
      %p319 = scmp.eq.s32.totalorder %s89, 0
      %p320 = por %p318, %p319
      %s322 = sadd.s32 %s321, 1
      %p325 = scmp.eq.s32.totalorder %s83, 1
      %p326 = scmp.ne.s32.totalorder %s321, %s323
      %p327 = scmp.eq.s32.totalorder %s83, 0
      %p328 = por %p326, %p327
      %p329 = scmp.ne.s32.totalorder %s321, %s323
      %p330 = scmp.eq.s32.totalorder %s88, 1
      %p331 = por %p329, %p330
      %p332 = scmp.ne.s32.totalorder %s323, %s324
      %p333 = scmp.eq.s32.totalorder %s88, 0
      %p334 = por %p332, %p333
      %p335 = scmp.ne.s32.totalorder %s323, %s324
      %p336 = scmp.eq.s32.totalorder %s89, 1
      %p337 = por %p335, %p336
      %p339 = scmp.ne.s32.totalorder %s324, %s338
      %p340 = scmp.eq.s32.totalorder %s89, 0
      %p341 = por %p339, %p340
      %s343 = sadd.s32 %s342, 1
      %p346 = scmp.eq.s32.totalorder %s83, 1
      %p347 = scmp.ne.s32.totalorder %s342, %s344
      %p348 = scmp.eq.s32.totalorder %s83, 0
      %p349 = por %p347, %p348
      %p350 = scmp.ne.s32.totalorder %s342, %s344
      %p351 = scmp.eq.s32.totalorder %s88, 1
      %p352 = por %p350, %p351
      %p353 = scmp.ne.s32.totalorder %s344, %s345
      %p354 = scmp.eq.s32.totalorder %s88, 0
      %p355 = por %p353, %p354
      %p356 = scmp.ne.s32.totalorder %s344, %s345
      %p357 = scmp.eq.s32.totalorder %s89, 1
      %p358 = por %p356, %p357
      %p360 = scmp.ne.s32.totalorder %s345, %s359
      %p361 = scmp.eq.s32.totalorder %s89, 0
      %p362 = por %p360, %p361
      %s364 = sadd.s32 %s363, 1
      %p367 = scmp.eq.s32.totalorder %s83, 1
      %p368 = scmp.ne.s32.totalorder %s363, %s365
      %p369 = scmp.eq.s32.totalorder %s83, 0
      %p370 = por %p368, %p369
      %p371 = scmp.ne.s32.totalorder %s363, %s365
      %p372 = scmp.eq.s32.totalorder %s88, 1
      %p373 = por %p371, %p372
      %p374 = scmp.ne.s32.totalorder %s365, %s366
      %p375 = scmp.eq.s32.totalorder %s88, 0
      %p376 = por %p374, %p375
      %p377 = scmp.ne.s32.totalorder %s365, %s366
      %p378 = scmp.eq.s32.totalorder %s89, 1
      %p379 = por %p377, %p378
      %p381 = scmp.ne.s32.totalorder %s366, %s380
      %p382 = scmp.eq.s32.totalorder %s89, 0
      %p383 = por %p381, %p382
      %s385 = sadd.s32 %s384, 1
      %p388 = scmp.eq.s32.totalorder %s83, 1
      %p389 = scmp.ne.s32.totalorder %s384, %s386
      %p390 = scmp.eq.s32.totalorder %s83, 0
      %p391 = por %p389, %p390
      %p392 = scmp.ne.s32.totalorder %s384, %s386
      %p393 = scmp.eq.s32.totalorder %s88, 1
      %p394 = por %p392, %p393
      %p395 = scmp.ne.s32.totalorder %s386, %s387
      %p396 = scmp.eq.s32.totalorder %s88, 0
      %p397 = por %p395, %p396
      %p398 = scmp.ne.s32.totalorder %s386, %s387
      %p399 = scmp.eq.s32.totalorder %s89, 1
      %p400 = por %p398, %p399
      %p402 = scmp.ne.s32.totalorder %s387, %s401
      %p403 = scmp.eq.s32.totalorder %s89, 0
      %p404 = por %p402, %p403
      %s406 = sadd.s32 %s405, 1
      %p409 = scmp.eq.s32.totalorder %s83, 1
      %p410 = scmp.ne.s32.totalorder %s405, %s407
      %p411 = scmp.eq.s32.totalorder %s83, 0
      %p412 = por %p410, %p411
      %p413 = scmp.ne.s32.totalorder %s405, %s407
      %p414 = scmp.eq.s32.totalorder %s88, 1
      %p415 = por %p413, %p414
      %p416 = scmp.ne.s32.totalorder %s407, %s408
      %p417 = scmp.eq.s32.totalorder %s88, 0
      %p418 = por %p416, %p417
      %p419 = scmp.ne.s32.totalorder %s407, %s408
      %p420 = scmp.eq.s32.totalorder %s89, 1
      %p421 = por %p419, %p420
      %p423 = scmp.ne.s32.totalorder %s408, %s422
      %p424 = scmp.eq.s32.totalorder %s89, 0
      %p425 = por %p423, %p424
      %s427 = sadd.s32 %s426, 1
      %p430 = scmp.eq.s32.totalorder %s83, 1
      %p431 = scmp.ne.s32.totalorder %s426, %s428
      %p432 = scmp.eq.s32.totalorder %s83, 0
      %p433 = por %p431, %p432
      %p434 = scmp.ne.s32.totalorder %s426, %s428
      %p435 = scmp.eq.s32.totalorder %s88, 1
      %p436 = por %p434, %p435
      %p437 = scmp.ne.s32.totalorder %s428, %s429
      %p438 = scmp.eq.s32.totalorder %s88, 0
      %p439 = por %p437, %p438
      %p440 = scmp.ne.s32.totalorder %s428, %s429
      %p441 = scmp.eq.s32.totalorder %s89, 1
      %p442 = por %p440, %p441
      %p444 = scmp.ne.s32.totalorder %s429, %s443
      %p445 = scmp.eq.s32.totalorder %s89, 0
      %p446 = por %p444, %p445
      %s448 = sadd.s32 %s447, 1
      %p451 = scmp.eq.s32.totalorder %s83, 1
      %p452 = scmp.ne.s32.totalorder %s447, %s449
      %p453 = scmp.eq.s32.totalorder %s83, 0
      %p454 = por %p452, %p453
      %p455 = scmp.ne.s32.totalorder %s447, %s449
      %p456 = scmp.eq.s32.totalorder %s88, 1
      %p457 = por %p455, %p456
      %p458 = scmp.ne.s32.totalorder %s449, %s450
      %p459 = scmp.eq.s32.totalorder %s88, 0
      %p460 = por %p458, %p459
      %p461 = scmp.ne.s32.totalorder %s449, %s450
      %p462 = scmp.eq.s32.totalorder %s89, 1
      %p463 = por %p461, %p462
      %p465 = scmp.ne.s32.totalorder %s450, %s464
      %p466 = scmp.eq.s32.totalorder %s89, 0
      %p467 = por %p465, %p466
      %s469 = sadd.s32 %s468, 1
      %p472 = scmp.eq.s32.totalorder %s83, 1
      %p473 = scmp.ne.s32.totalorder %s468, %s470
      %p474 = scmp.eq.s32.totalorder %s83, 0
      %p475 = por %p473, %p474
      %p476 = scmp.ne.s32.totalorder %s468, %s470
      %p477 = scmp.eq.s32.totalorder %s88, 1
      %p478 = por %p476, %p477
      %p479 = scmp.ne.s32.totalorder %s470, %s471
      %p480 = scmp.eq.s32.totalorder %s88, 0
      %p481 = por %p479, %p480
      %p482 = scmp.ne.s32.totalorder %s470, %s471
      %p483 = scmp.eq.s32.totalorder %s89, 1
      %p484 = por %p482, %p483
      %p486 = scmp.ne.s32.totalorder %s471, %s485
      %p487 = scmp.eq.s32.totalorder %s89, 0
      %p488 = por %p486, %p487
      %s490 = sadd.s32 %s489, 1
      %p493 = scmp.eq.s32.totalorder %s83, 1
      %p494 = scmp.ne.s32.totalorder %s489, %s491
      %p495 = scmp.eq.s32.totalorder %s83, 0
      %p496 = por %p494, %p495
      %p497 = scmp.ne.s32.totalorder %s489, %s491
      %p498 = scmp.eq.s32.totalorder %s88, 1
      %p499 = por %p497, %p498
      %p500 = scmp.ne.s32.totalorder %s491, %s492
      %p501 = scmp.eq.s32.totalorder %s88, 0
      %p502 = por %p500, %p501
      %p503 = scmp.ne.s32.totalorder %s491, %s492
      %p504 = scmp.eq.s32.totalorder %s89, 1
      %p505 = por %p503, %p504
      %p507 = scmp.ne.s32.totalorder %s492, %s506
      %p508 = scmp.eq.s32.totalorder %s89, 0
      %p509 = por %p507, %p508
      %s511 = sadd.s32 %s510, 1
      %p514 = scmp.eq.s32.totalorder %s83, 1
      %p515 = scmp.ne.s32.totalorder %s510, %s512
      %p516 = scmp.eq.s32.totalorder %s83, 0
      %p517 = por %p515, %p516
      %p518 = scmp.ne.s32.totalorder %s510, %s512
      %p519 = scmp.eq.s32.totalorder %s88, 1
      %p520 = por %p518, %p519
      %p521 = scmp.ne.s32.totalorder %s512, %s513
      %p522 = scmp.eq.s32.totalorder %s88, 0
      %p523 = por %p521, %p522
      %p524 = scmp.ne.s32.totalorder %s512, %s513
      %p525 = scmp.eq.s32.totalorder %s89, 1
      %p526 = por %p524, %p525
      %p528 = scmp.ne.s32.totalorder %s513, %s527
      %p529 = scmp.eq.s32.totalorder %s89, 0
      %p530 = por %p528, %p529
      %s532 = sadd.s32 %s531, 1
      %p535 = scmp.eq.s32.totalorder %s83, 1
      %p536 = scmp.ne.s32.totalorder %s531, %s533
      %p537 = scmp.eq.s32.totalorder %s83, 0
      %p538 = por %p536, %p537
      %p539 = scmp.ne.s32.totalorder %s531, %s533
      %p540 = scmp.eq.s32.totalorder %s88, 1
      %p541 = por %p539, %p540
      %p542 = scmp.ne.s32.totalorder %s533, %s534
      %p543 = scmp.eq.s32.totalorder %s88, 0
      %p544 = por %p542, %p543
      %p545 = scmp.ne.s32.totalorder %s533, %s534
      %p546 = scmp.eq.s32.totalorder %s89, 1
      %p547 = por %p545, %p546
      %p549 = scmp.ne.s32.totalorder %s534, %s548
      %p550 = scmp.eq.s32.totalorder %s89, 0
      %p551 = por %p549, %p550
      %s553 = sadd.s32 %s552, 1
      %p556 = scmp.eq.s32.totalorder %s83, 1
      %p557 = scmp.ne.s32.totalorder %s552, %s554
      %p558 = scmp.eq.s32.totalorder %s83, 0
      %p559 = por %p557, %p558
      %p560 = scmp.ne.s32.totalorder %s552, %s554
      %p561 = scmp.eq.s32.totalorder %s88, 1
      %p562 = por %p560, %p561
      %p563 = scmp.ne.s32.totalorder %s554, %s555
      %p564 = scmp.eq.s32.totalorder %s88, 0
      %p565 = por %p563, %p564
      %p566 = scmp.ne.s32.totalorder %s554, %s555
      %p567 = scmp.eq.s32.totalorder %s89, 1
      %p568 = por %p566, %p567
      %p570 = scmp.ne.s32.totalorder %s555, %s569
      %p571 = scmp.eq.s32.totalorder %s89, 0
      %p572 = por %p570, %p571
      %s574 = sadd.s32 %s573, 1
      %p577 = scmp.eq.s32.totalorder %s83, 1
      %p578 = scmp.ne.s32.totalorder %s573, %s575
      %p579 = scmp.eq.s32.totalorder %s83, 0
      %p580 = por %p578, %p579
      %p581 = scmp.ne.s32.totalorder %s573, %s575
      %p582 = scmp.eq.s32.totalorder %s88, 1
      %p583 = por %p581, %p582
      %p584 = scmp.ne.s32.totalorder %s575, %s576
      %p585 = scmp.eq.s32.totalorder %s88, 0
      %p586 = por %p584, %p585
      %p587 = scmp.ne.s32.totalorder %s575, %s576
      %p588 = scmp.eq.s32.totalorder %s89, 1
      %p589 = por %p587, %p588
      %p591 = scmp.ne.s32.totalorder %s576, %s590
      %p592 = scmp.eq.s32.totalorder %s89, 0
      %p593 = por %p591, %p592
      %s595 = sadd.s32 %s594, 1
      %p598 = scmp.eq.s32.totalorder %s83, 1
      %p599 = scmp.ne.s32.totalorder %s594, %s596
      %p600 = scmp.eq.s32.totalorder %s83, 0
      %p601 = por %p599, %p600
      %p602 = scmp.ne.s32.totalorder %s594, %s596
      %p603 = scmp.eq.s32.totalorder %s88, 1
      %p604 = por %p602, %p603
      %p605 = scmp.ne.s32.totalorder %s596, %s597
      %p606 = scmp.eq.s32.totalorder %s88, 0
      %p607 = por %p605, %p606
      %p608 = scmp.ne.s32.totalorder %s596, %s597
      %p609 = scmp.eq.s32.totalorder %s89, 1
      %p610 = por %p608, %p609
      %p612 = scmp.ne.s32.totalorder %s597, %s611
      %p613 = scmp.eq.s32.totalorder %s89, 0
      %p614 = por %p612, %p613
      %s616 = sadd.s32 %s615, 1
      %p619 = scmp.eq.s32.totalorder %s83, 1
      %p620 = scmp.ne.s32.totalorder %s615, %s617
      %p621 = scmp.eq.s32.totalorder %s83, 0
      %p622 = por %p620, %p621
      %p623 = scmp.ne.s32.totalorder %s615, %s617
      %p624 = scmp.eq.s32.totalorder %s88, 1
      %p625 = por %p623, %p624
      %p626 = scmp.ne.s32.totalorder %s617, %s618
      %p627 = scmp.eq.s32.totalorder %s88, 0
      %p628 = por %p626, %p627
      %p629 = scmp.ne.s32.totalorder %s617, %s618
      %p630 = scmp.eq.s32.totalorder %s89, 1
      %p631 = por %p629, %p630
      %p633 = scmp.ne.s32.totalorder %s618, %s632
      %p634 = scmp.eq.s32.totalorder %s89, 0
      %p635 = por %p633, %p634
      %s637 = sadd.s32 %s636, 1
      %p640 = scmp.eq.s32.totalorder %s83, 1
      %p641 = scmp.ne.s32.totalorder %s636, %s638
      %p642 = scmp.eq.s32.totalorder %s83, 0
      %p643 = por %p641, %p642
      %p644 = scmp.ne.s32.totalorder %s636, %s638
      %p645 = scmp.eq.s32.totalorder %s88, 1
      %p646 = por %p644, %p645
      %p647 = scmp.ne.s32.totalorder %s638, %s639
      %p648 = scmp.eq.s32.totalorder %s88, 0
      %p649 = por %p647, %p648
      %p650 = scmp.ne.s32.totalorder %s638, %s639
      %p651 = scmp.eq.s32.totalorder %s89, 1
      %p652 = por %p650, %p651
      %p654 = scmp.ne.s32.totalorder %s639, %s653
      %p655 = scmp.eq.s32.totalorder %s89, 0
      %p656 = por %p654, %p655
      %s658 = sadd.s32 %s657, 1
      %p661 = scmp.eq.s32.totalorder %s83, 1
      %p662 = scmp.ne.s32.totalorder %s657, %s659
      %p663 = scmp.eq.s32.totalorder %s83, 0
      %p664 = por %p662, %p663
      %p665 = scmp.ne.s32.totalorder %s657, %s659
      %p666 = scmp.eq.s32.totalorder %s88, 1
      %p667 = por %p665, %p666
      %p668 = scmp.ne.s32.totalorder %s659, %s660
      %p669 = scmp.eq.s32.totalorder %s88, 0
      %p670 = por %p668, %p669
      %p671 = scmp.ne.s32.totalorder %s659, %s660
      %p672 = scmp.eq.s32.totalorder %s89, 1
      %p673 = por %p671, %p672
      %p675 = scmp.ne.s32.totalorder %s660, %s674
      %p676 = scmp.eq.s32.totalorder %s89, 0
      %p677 = por %p675, %p676
      %s679 = sadd.s32 %s678, 1
      %p682 = scmp.eq.s32.totalorder %s83, 1
      %p683 = scmp.ne.s32.totalorder %s678, %s680
      %p684 = scmp.eq.s32.totalorder %s83, 0
      %p685 = por %p683, %p684
      %p686 = scmp.ne.s32.totalorder %s678, %s680
      %p687 = scmp.eq.s32.totalorder %s88, 1
      %p688 = por %p686, %p687
      %p689 = scmp.ne.s32.totalorder %s680, %s681
      %p690 = scmp.eq.s32.totalorder %s88, 0
      %p691 = por %p689, %p690
      %p692 = scmp.ne.s32.totalorder %s680, %s681
      %p693 = scmp.eq.s32.totalorder %s89, 1
      %p694 = por %p692, %p693
      %p696 = scmp.ne.s32.totalorder %s681, %s695
      %p697 = scmp.eq.s32.totalorder %s89, 0
      %p698 = por %p696, %p697
      %s700 = sadd.s32 %s699, 1
      %p703 = scmp.eq.s32.totalorder %s83, 1
      %p704 = scmp.ne.s32.totalorder %s699, %s701
      %p705 = scmp.eq.s32.totalorder %s83, 0
      %p706 = por %p704, %p705
      %p707 = scmp.ne.s32.totalorder %s699, %s701
      %p708 = scmp.eq.s32.totalorder %s88, 1
      %p709 = por %p707, %p708
      %p710 = scmp.ne.s32.totalorder %s701, %s702
      %p711 = scmp.eq.s32.totalorder %s88, 0
      %p712 = por %p710, %p711
      %p713 = scmp.ne.s32.totalorder %s701, %s702
      %p714 = scmp.eq.s32.totalorder %s89, 1
      %p715 = por %p713, %p714
      %p717 = scmp.ne.s32.totalorder %s702, %s716
      %p718 = scmp.eq.s32.totalorder %s89, 0
      %p719 = por %p717, %p718
      %s721 = sadd.s32 %s720, 1
      %p724 = scmp.eq.s32.totalorder %s83, 1
      %p725 = scmp.ne.s32.totalorder %s720, %s722
      %p726 = scmp.eq.s32.totalorder %s83, 0
      %p727 = por %p725, %p726
      %p728 = scmp.ne.s32.totalorder %s720, %s722
      %p729 = scmp.eq.s32.totalorder %s88, 1
      %p730 = por %p728, %p729
      %p731 = scmp.ne.s32.totalorder %s722, %s723
      %p732 = scmp.eq.s32.totalorder %s88, 0
      %p733 = por %p731, %p732
      %p734 = scmp.ne.s32.totalorder %s722, %s723
      %p735 = scmp.eq.s32.totalorder %s89, 1
      %p736 = por %p734, %p735
      %p738 = scmp.ne.s32.totalorder %s723, %s737
      %p739 = scmp.eq.s32.totalorder %s89, 0
      %p740 = por %p738, %p739
      %s742 = sadd.s32 %s741, 1
      %p745 = scmp.eq.s32.totalorder %s83, 1
      %p746 = scmp.ne.s32.totalorder %s741, %s743
      %p747 = scmp.eq.s32.totalorder %s83, 0
      %p748 = por %p746, %p747
      %p749 = scmp.ne.s32.totalorder %s741, %s743
      %p750 = scmp.eq.s32.totalorder %s88, 1
      %p751 = por %p749, %p750
      %p752 = scmp.ne.s32.totalorder %s743, %s744
      %p753 = scmp.eq.s32.totalorder %s88, 0
      %p754 = por %p752, %p753
      %p755 = scmp.ne.s32.totalorder %s743, %s744
      %p756 = scmp.eq.s32.totalorder %s89, 1
      %p757 = por %p755, %p756
      %p759 = scmp.ne.s32.totalorder %s744, %s758
      %p760 = scmp.eq.s32.totalorder %s89, 0
      %p761 = por %p759, %p760
      %s763 = sadd.s32 %s762, 1
      %p766 = scmp.eq.s32.totalorder %s83, 1
      %p767 = scmp.ne.s32.totalorder %s762, %s764
      %p768 = scmp.eq.s32.totalorder %s83, 0
      %p769 = por %p767, %p768
      %p770 = scmp.ne.s32.totalorder %s762, %s764
      %p771 = scmp.eq.s32.totalorder %s88, 1
      %p772 = por %p770, %p771
      %p773 = scmp.ne.s32.totalorder %s764, %s765
      %p774 = scmp.eq.s32.totalorder %s88, 0
      %p775 = por %p773, %p774
      %p776 = scmp.ne.s32.totalorder %s764, %s765
      %p777 = scmp.eq.s32.totalorder %s89, 1
      %p778 = por %p776, %p777
      %p780 = scmp.ne.s32.totalorder %s765, %s779
      %p781 = scmp.eq.s32.totalorder %s89, 0
      %p782 = por %p780, %p781
      %s784 = sadd.s32 %s783, 1
      %p787 = scmp.eq.s32.totalorder %s83, 1
      %p788 = scmp.ne.s32.totalorder %s783, %s785
      %p789 = scmp.eq.s32.totalorder %s83, 0
      %p790 = por %p788, %p789
      %p791 = scmp.ne.s32.totalorder %s783, %s785
      %p792 = scmp.eq.s32.totalorder %s88, 1
      %p793 = por %p791, %p792
      %p794 = scmp.ne.s32.totalorder %s785, %s786
      %p795 = scmp.eq.s32.totalorder %s88, 0
      %p796 = por %p794, %p795
      %p797 = scmp.ne.s32.totalorder %s785, %s786
      %p798 = scmp.eq.s32.totalorder %s89, 1
      %p799 = por %p797, %p798
      %p801 = scmp.ne.s32.totalorder %s786, %s800
      %p802 = scmp.eq.s32.totalorder %s89, 0
      %p803 = por %p801, %p802
      %s805 = sadd.s32 %s804, 1
      %p808 = scmp.eq.s32.totalorder %s83, 1
      %p809 = scmp.ne.s32.totalorder %s804, %s806
      %p810 = scmp.eq.s32.totalorder %s83, 0
      %p811 = por %p809, %p810
      %p812 = scmp.ne.s32.totalorder %s804, %s806
      %p813 = scmp.eq.s32.totalorder %s88, 1
      %p814 = por %p812, %p813
      %p815 = scmp.ne.s32.totalorder %s806, %s807
      %p816 = scmp.eq.s32.totalorder %s88, 0
      %p817 = por %p815, %p816
      %p818 = scmp.ne.s32.totalorder %s806, %s807
      %p819 = scmp.eq.s32.totalorder %s89, 1
      %p820 = por %p818, %p819
      %p822 = scmp.ne.s32.totalorder %s807, %s821
      %p823 = scmp.eq.s32.totalorder %s89, 0
      %p824 = por %p822, %p823
      %s826 = sadd.s32 %s825, 1
      %p829 = scmp.eq.s32.totalorder %s83, 1
      %p830 = scmp.ne.s32.totalorder %s825, %s827
      %p831 = scmp.eq.s32.totalorder %s83, 0
      %p832 = por %p830, %p831
      %p833 = scmp.ne.s32.totalorder %s825, %s827
      %p834 = scmp.eq.s32.totalorder %s88, 1
      %p835 = por %p833, %p834
      %p836 = scmp.ne.s32.totalorder %s827, %s828
      %p837 = scmp.eq.s32.totalorder %s88, 0
      %p838 = por %p836, %p837
      %p839 = scmp.ne.s32.totalorder %s827, %s828
      %p840 = scmp.eq.s32.totalorder %s89, 1
      %p841 = por %p839, %p840
      %p843 = scmp.ne.s32.totalorder %s828, %s842
      %p844 = scmp.eq.s32.totalorder %s89, 0
      %p845 = por %p843, %p844
      %s846 = ssub.s32 %s83, %s90
      %p847 = scmp.eq.s32.totalorder %s846, 0
      %s849 = sadd.s32 %s848, 1
      %s850 = scalar_select %p847, %s848, %s849
      %p853 = pneg %p847
      %p854 = scmp.eq.s32.totalorder %s83, 1
      %p855 = por %p853, %p854
      %p856 = scmp.ne.s32.totalorder %s848, %s851
      %p857 = scmp.eq.s32.totalorder %s83, 0
      %p858 = por %p856, %p857
      %p859 = scmp.ne.s32.totalorder %s848, %s851
      %p860 = scmp.eq.s32.totalorder %s88, 1
      %p861 = por %p859, %p860
      %p862 = scmp.ne.s32.totalorder %s851, %s852
      %p863 = scmp.eq.s32.totalorder %s88, 0
      %p864 = por %p862, %p863
      %p865 = scmp.ne.s32.totalorder %s851, %s852
      %p866 = scmp.eq.s32.totalorder %s89, 1
      %p867 = por %p865, %p866
      %p869 = scmp.ne.s32.totalorder %s852, %s868
      %p870 = scmp.eq.s32.totalorder %s89, 0
      %p871 = por %p869, %p870
      %s872 = ssub.s32 %s83, %s90
      %p873 = scmp.eq.s32.totalorder %s872, 0
      %s875 = sadd.s32 %s874, 1
      %s876 = scalar_select %p873, %s874, %s875
      %p879 = pneg %p873
      %p880 = scmp.eq.s32.totalorder %s83, 1
      %p881 = por %p879, %p880
      %p882 = scmp.ne.s32.totalorder %s874, %s877
      %p883 = scmp.eq.s32.totalorder %s83, 0
      %p884 = por %p882, %p883
      %p885 = scmp.ne.s32.totalorder %s874, %s877
      %p886 = scmp.eq.s32.totalorder %s88, 1
      %p887 = por %p885, %p886
      %p888 = scmp.ne.s32.totalorder %s877, %s878
      %p889 = scmp.eq.s32.totalorder %s88, 0
      %p890 = por %p888, %p889
      %p891 = scmp.ne.s32.totalorder %s877, %s878
      %p892 = scmp.eq.s32.totalorder %s89, 1
      %p893 = por %p891, %p892
      %p895 = scmp.ne.s32.totalorder %s878, %s894
      %p896 = scmp.eq.s32.totalorder %s89, 0
      %p897 = por %p895, %p896
      %p898 = scmp.le.s32.totalorder 1, %s83
      %p899 = scmp.lt.s32.totalorder %s83, 3
      %p900 = pnand %p898, %p899
      %p901 = pneg %p900
      // Predicated region
      $region9: #{model_forward.1} parent=5 // pred_check
        _
      $region10: #{model_forward.1} parent=5 // pred_check_branch
        %903 = sbr.rel (%p900) target = $region12
      $region11: #{model_forward.1} parent=5 // pred_region
        %s904 = ssub.s32 %s83, 1
        // Predicated region
        $region13: #{model_forward.1} parent=11 // pred_check
          %p905 = pneg %p208
        $region14: #{model_forward.1} parent=11 // pred_check_branch
          %907 = sbr.rel (%p905) target = $region16
        $region15: #{model_forward.1} parent=11 // pred_region
          _
        $region16: #{model_forward.1} parent=11 // pred_fallthru
          _
        // Predicated region
        $region17: #{model_forward.1} parent=11 // pred_check
          %p908 = pneg %p229
        $region18: #{model_forward.1} parent=11 // pred_check_branch
          %910 = sbr.rel (%p908) target = $region20
        $region19: #{model_forward.1} parent=11 // pred_region
          _
        $region20: #{model_forward.1} parent=11 // pred_fallthru
          _
        // Predicated region
        $region21: #{model_forward.1} parent=11 // pred_check
          %p911 = pneg %p250
        $region22: #{model_forward.1} parent=11 // pred_check_branch
          %913 = sbr.rel (%p911) target = $region24
        $region23: #{model_forward.1} parent=11 // pred_region
          _
        $region24: #{model_forward.1} parent=11 // pred_fallthru
          _
        // Predicated region
        $region25: #{model_forward.1} parent=11 // pred_check
          %p914 = pneg %p271
        $region26: #{model_forward.1} parent=11 // pred_check_branch
          %916 = sbr.rel (%p914) target = $region28
        $region27: #{model_forward.1} parent=11 // pred_region
          _
        $region28: #{model_forward.1} parent=11 // pred_fallthru
          _
        // Predicated region
        $region29: #{model_forward.1} parent=11 // pred_check
          %p917 = pneg %p292
        $region30: #{model_forward.1} parent=11 // pred_check_branch
          %919 = sbr.rel (%p917) target = $region32
        $region31: #{model_forward.1} parent=11 // pred_region
          _
        $region32: #{model_forward.1} parent=11 // pred_fallthru
          _
        // Predicated region
        $region33: #{model_forward.1} parent=11 // pred_check
          %p920 = pneg %p313
        $region34: #{model_forward.1} parent=11 // pred_check_branch
          %922 = sbr.rel (%p920) target = $region36
        $region35: #{model_forward.1} parent=11 // pred_region
          _
        $region36: #{model_forward.1} parent=11 // pred_fallthru
          _
        // Predicated region
        $region37: #{model_forward.1} parent=11 // pred_check
          %p923 = pneg %p334
        $region38: #{model_forward.1} parent=11 // pred_check_branch
          %925 = sbr.rel (%p923) target = $region40
        $region39: #{model_forward.1} parent=11 // pred_region
          _
        $region40: #{model_forward.1} parent=11 // pred_fallthru
          _
        // Predicated region
        $region41: #{model_forward.1} parent=11 // pred_check
          %p926 = pneg %p355
        $region42: #{model_forward.1} parent=11 // pred_check_branch
          %928 = sbr.rel (%p926) target = $region44
        $region43: #{model_forward.1} parent=11 // pred_region
          _
        $region44: #{model_forward.1} parent=11 // pred_fallthru
          _
        // Predicated region
        $region45: #{model_forward.1} parent=11 // pred_check
          %p929 = pneg %p376
        $region46: #{model_forward.1} parent=11 // pred_check_branch
          %931 = sbr.rel (%p929) target = $region48
        $region47: #{model_forward.1} parent=11 // pred_region
          _
        $region48: #{model_forward.1} parent=11 // pred_fallthru
          _
        // Predicated region
        $region49: #{model_forward.1} parent=11 // pred_check
          %p932 = pneg %p397
        $region50: #{model_forward.1} parent=11 // pred_check_branch
          %934 = sbr.rel (%p932) target = $region52
        $region51: #{model_forward.1} parent=11 // pred_region
          _
        $region52: #{model_forward.1} parent=11 // pred_fallthru
          _
        // Predicated region
        $region53: #{model_forward.1} parent=11 // pred_check
          %p935 = pneg %p418
        $region54: #{model_forward.1} parent=11 // pred_check_branch
          %937 = sbr.rel (%p935) target = $region56
        $region55: #{model_forward.1} parent=11 // pred_region
          _
        $region56: #{model_forward.1} parent=11 // pred_fallthru
          _
        // Predicated region
        $region57: #{model_forward.1} parent=11 // pred_check
          %p938 = pneg %p439
        $region58: #{model_forward.1} parent=11 // pred_check_branch
          %940 = sbr.rel (%p938) target = $region60
        $region59: #{model_forward.1} parent=11 // pred_region
          _
        $region60: #{model_forward.1} parent=11 // pred_fallthru
          _
        // Predicated region
        $region61: #{model_forward.1} parent=11 // pred_check
          %p941 = pneg %p460
        $region62: #{model_forward.1} parent=11 // pred_check_branch
          %943 = sbr.rel (%p941) target = $region64
        $region63: #{model_forward.1} parent=11 // pred_region
          _
        $region64: #{model_forward.1} parent=11 // pred_fallthru
          _
        // Predicated region
        $region65: #{model_forward.1} parent=11 // pred_check
          %p944 = pneg %p481
        $region66: #{model_forward.1} parent=11 // pred_check_branch
          %946 = sbr.rel (%p944) target = $region68
        $region67: #{model_forward.1} parent=11 // pred_region
          _
        $region68: #{model_forward.1} parent=11 // pred_fallthru
          _
        // Predicated region
        $region69: #{model_forward.1} parent=11 // pred_check
          %p947 = pneg %p502
        $region70: #{model_forward.1} parent=11 // pred_check_branch
          %949 = sbr.rel (%p947) target = $region72
        $region71: #{model_forward.1} parent=11 // pred_region
          _
        $region72: #{model_forward.1} parent=11 // pred_fallthru
          _
        // Predicated region
        $region73: #{model_forward.1} parent=11 // pred_check
          %p950 = pneg %p523
        $region74: #{model_forward.1} parent=11 // pred_check_branch
          %952 = sbr.rel (%p950) target = $region76
        $region75: #{model_forward.1} parent=11 // pred_region
          _
        $region76: #{model_forward.1} parent=11 // pred_fallthru
          _
        // Predicated region
        $region77: #{model_forward.1} parent=11 // pred_check
          %p953 = pneg %p544
        $region78: #{model_forward.1} parent=11 // pred_check_branch
          %955 = sbr.rel (%p953) target = $region80
        $region79: #{model_forward.1} parent=11 // pred_region
          _
        $region80: #{model_forward.1} parent=11 // pred_fallthru
          _
        // Predicated region
        $region81: #{model_forward.1} parent=11 // pred_check
          %p956 = pneg %p565
        $region82: #{model_forward.1} parent=11 // pred_check_branch
          %958 = sbr.rel (%p956) target = $region84
        $region83: #{model_forward.1} parent=11 // pred_region
          _
        $region84: #{model_forward.1} parent=11 // pred_fallthru
          _
        // Predicated region
        $region85: #{model_forward.1} parent=11 // pred_check
          %p959 = pneg %p586
        $region86: #{model_forward.1} parent=11 // pred_check_branch
          %961 = sbr.rel (%p959) target = $region88
        $region87: #{model_forward.1} parent=11 // pred_region
          _
        $region88: #{model_forward.1} parent=11 // pred_fallthru
          _
        // Predicated region
        $region89: #{model_forward.1} parent=11 // pred_check
          %p962 = pneg %p607
        $region90: #{model_forward.1} parent=11 // pred_check_branch
          %964 = sbr.rel (%p962) target = $region92
        $region91: #{model_forward.1} parent=11 // pred_region
          _
        $region92: #{model_forward.1} parent=11 // pred_fallthru
          _
        // Predicated region
        $region93: #{model_forward.1} parent=11 // pred_check
          %p965 = pneg %p628
        $region94: #{model_forward.1} parent=11 // pred_check_branch
          %967 = sbr.rel (%p965) target = $region96
        $region95: #{model_forward.1} parent=11 // pred_region
          _
        $region96: #{model_forward.1} parent=11 // pred_fallthru
          _
        // Predicated region
        $region97: #{model_forward.1} parent=11 // pred_check
          %p968 = pneg %p649
        $region98: #{model_forward.1} parent=11 // pred_check_branch
          %970 = sbr.rel (%p968) target = $region100
        $region99: #{model_forward.1} parent=11 // pred_region
          _
        $region100: #{model_forward.1} parent=11 // pred_fallthru
          _
        // Predicated region
        $region101: #{model_forward.1} parent=11 // pred_check
          %p971 = pneg %p670
        $region102: #{model_forward.1} parent=11 // pred_check_branch
          %973 = sbr.rel (%p971) target = $region104
        $region103: #{model_forward.1} parent=11 // pred_region
          _
        $region104: #{model_forward.1} parent=11 // pred_fallthru
          _
        // Predicated region
        $region105: #{model_forward.1} parent=11 // pred_check
          %p974 = pneg %p691
        $region106: #{model_forward.1} parent=11 // pred_check_branch
          %976 = sbr.rel (%p974) target = $region108
        $region107: #{model_forward.1} parent=11 // pred_region
          _
        $region108: #{model_forward.1} parent=11 // pred_fallthru
          _
        // Predicated region
        $region109: #{model_forward.1} parent=11 // pred_check
          %p977 = pneg %p712
        $region110: #{model_forward.1} parent=11 // pred_check_branch
          %979 = sbr.rel (%p977) target = $region112
        $region111: #{model_forward.1} parent=11 // pred_region
          _
        $region112: #{model_forward.1} parent=11 // pred_fallthru
          _
        // Predicated region
        $region113: #{model_forward.1} parent=11 // pred_check
          %p980 = pneg %p733
        $region114: #{model_forward.1} parent=11 // pred_check_branch
          %982 = sbr.rel (%p980) target = $region116
        $region115: #{model_forward.1} parent=11 // pred_region
          _
        $region116: #{model_forward.1} parent=11 // pred_fallthru
          _
        // Predicated region
        $region117: #{model_forward.1} parent=11 // pred_check
          %p983 = pneg %p754
        $region118: #{model_forward.1} parent=11 // pred_check_branch
          %985 = sbr.rel (%p983) target = $region120
        $region119: #{model_forward.1} parent=11 // pred_region
          _
        $region120: #{model_forward.1} parent=11 // pred_fallthru
          _
        // Predicated region
        $region121: #{model_forward.1} parent=11 // pred_check
          %p986 = pneg %p775
        $region122: #{model_forward.1} parent=11 // pred_check_branch
          %988 = sbr.rel (%p986) target = $region124
        $region123: #{model_forward.1} parent=11 // pred_region
          _
        $region124: #{model_forward.1} parent=11 // pred_fallthru
          _
        // Predicated region
        $region125: #{model_forward.1} parent=11 // pred_check
          %p989 = pneg %p796
        $region126: #{model_forward.1} parent=11 // pred_check_branch
          %991 = sbr.rel (%p989) target = $region128
        $region127: #{model_forward.1} parent=11 // pred_region
          _
        $region128: #{model_forward.1} parent=11 // pred_fallthru
          _
        // Predicated region
        $region129: #{model_forward.1} parent=11 // pred_check
          %p992 = pneg %p817
        $region130: #{model_forward.1} parent=11 // pred_check_branch
          %994 = sbr.rel (%p992) target = $region132
        $region131: #{model_forward.1} parent=11 // pred_region
          _
        $region132: #{model_forward.1} parent=11 // pred_fallthru
          _
        // Predicated region
        $region133: #{model_forward.1} parent=11 // pred_check
          %p995 = pneg %p838
        $region134: #{model_forward.1} parent=11 // pred_check_branch
          %997 = sbr.rel (%p995) target = $region136
        $region135: #{model_forward.1} parent=11 // pred_region
          _
        $region136: #{model_forward.1} parent=11 // pred_fallthru
          _
      $region12: #{model_forward.1} parent=5 // pred_fallthru
        _
      %p998 = scmp.lt.s32.totalorder %s83, 2
      // Predicated region
      $region137: #{model_forward.1} parent=5 // pred_check
        %p999 = pneg %p998
      $region138: #{model_forward.1} parent=5 // pred_check_branch
        %1001 = sbr.rel (%p999) target = $region140
      $region139: #{model_forward.1} parent=5 // pred_region
        // Predicated region
        $region141: #{model_forward.1} parent=139 // pred_check
          %p1002 = pneg %p103
        $region142: #{model_forward.1} parent=139 // pred_check_branch
          %1004 = sbr.rel (%p1002) target = $region144
        $region143: #{model_forward.1} parent=139 // pred_region
          %p1005 = scmp.lt.s32.totalorder %s83, 1
          %s1006 = scalar_select %p1005, %s83, 1
          %s1007 = smul.addr %s1006, 8
          %s1008 = scalar_lea.vmem %s1, %s1007
        $region144: #{model_forward.1} parent=139 // pred_fallthru
          _
        // Predicated region
        $region145: #{model_forward.1} parent=139 // pred_check
          %p1009 = pneg %p129
        $region146: #{model_forward.1} parent=139 // pred_check_branch
          %1011 = sbr.rel (%p1009) target = $region148
        $region147: #{model_forward.1} parent=139 // pred_region
          %p1012 = scmp.lt.s32.totalorder %s83, 1
          %s1013 = scalar_select %p1012, %s83, 1
          %s1014 = smul.addr %s1013, 8
          %s1015 = scalar_lea.vmem %s3, %s1014
        $region148: #{model_forward.1} parent=139 // pred_fallthru
          _
        // Predicated region
        $region149: #{model_forward.1} parent=139 // pred_check
          %p1016 = pneg %p155
        $region150: #{model_forward.1} parent=139 // pred_check_branch
          %1018 = sbr.rel (%p1016) target = $region152
        $region151: #{model_forward.1} parent=139 // pred_region
          %p1019 = scmp.lt.s32.totalorder %s83, 1
          %s1020 = scalar_select %p1019, %s83, 1
          %s1021 = scalar_lea.vmem %s5, %s1020
        $region152: #{model_forward.1} parent=139 // pred_fallthru
          _
        // Predicated region
        $region153: #{model_forward.1} parent=139 // pred_check
          %p1022 = pneg %p181
        $region154: #{model_forward.1} parent=139 // pred_check_branch
          %1024 = sbr.rel (%p1022) target = $region156
        $region155: #{model_forward.1} parent=139 // pred_region
          %p1025 = scmp.lt.s32.totalorder %s83, 1
          %s1026 = scalar_select %p1025, %s83, 1
          %s1027 = scalar_lea.vmem %s7, %s1026
        $region156: #{model_forward.1} parent=139 // pred_fallthru
          _
      $region140: #{model_forward.1} parent=5 // pred_fallthru
        _
      %p1028 = scmp.le.s32.totalorder 1, %s83
      %p1029 = scmp.lt.s32.totalorder %s83, 3
      %p1030 = pnand %p1028, %p1029
      %p1031 = pneg %p1030
      // Predicated region
      $region157: #{model_forward.1} parent=5 // pred_check
        _
      $region158: #{model_forward.1} parent=5 // pred_check_branch
        %1033 = sbr.rel (%p1030) target = $region160
      $region159: #{model_forward.1} parent=5 // pred_region
        %s1034 = ssub.s32 %s83, 1
        %p1035 = scmp.lt.s32.totalorder %s88, 1
        %s1036 = scalar_select %p1035, %s88, 1
        %s1037 = smul.addr %s1036, 8
        %s1038 = scalar_lea.vmem %s1, %s1037
        %p1039 = pneg %p109
        %p1040 = pneg %p106
        %p1041 = scmp.lt.s32.totalorder %s88, 1
        %s1042 = scalar_select %p1041, %s88, 1
        %s1043 = smul.addr %s1042, 8
        %s1044 = scalar_lea.vmem %s3, %s1043
        %p1045 = pneg %p135
        %p1046 = pneg %p132
        %p1047 = scmp.lt.s32.totalorder %s88, 1
        %s1048 = scalar_select %p1047, %s88, 1
        %s1049 = scalar_lea.vmem %s5, %s1048
        %p1050 = pneg %p161
        %p1051 = pneg %p158
        %p1052 = scmp.lt.s32.totalorder %s88, 1
        %s1053 = scalar_select %p1052, %s88, 1
        %s1054 = scalar_lea.vmem %s7, %s1053
        %p1055 = pneg %p187
        %p1056 = pneg %p184
        %p1057 = pneg %p208
        %p1058 = pneg %p205
        %p1059 = pneg %p229
        %p1060 = pneg %p226
        %p1061 = pneg %p250
        %p1062 = pneg %p247
        %p1063 = pneg %p271
        %p1064 = pneg %p268
        %p1065 = pneg %p292
        %p1066 = pneg %p289
        %p1067 = pneg %p313
        %p1068 = pneg %p310
        %p1069 = pneg %p334
        %p1070 = pneg %p331
        %p1071 = pneg %p355
        %p1072 = pneg %p352
        %p1073 = pneg %p376
        %p1074 = pneg %p373
        %p1075 = pneg %p397
        %p1076 = pneg %p394
        %p1077 = pneg %p418
        %p1078 = pneg %p415
        %p1079 = pneg %p439
        %p1080 = pneg %p436
        %p1081 = pneg %p460
        %p1082 = pneg %p457
        %p1083 = pneg %p481
        %p1084 = pneg %p478
        %p1085 = pneg %p502
        %p1086 = pneg %p499
        %p1087 = pneg %p523
        %p1088 = pneg %p520
        %p1089 = pneg %p544
        %p1090 = pneg %p541
        %p1091 = pneg %p565
        %p1092 = pneg %p562
        %p1093 = pneg %p586
        %p1094 = pneg %p583
        %p1095 = pneg %p607
        %p1096 = pneg %p604
        %p1097 = pneg %p628
        %p1098 = pneg %p625
        %p1099 = pneg %p649
        %p1100 = pneg %p646
        %p1101 = pneg %p670
        %p1102 = pneg %p667
        %p1103 = pneg %p691
        %p1104 = pneg %p688
        %p1105 = pneg %p712
        %p1106 = pneg %p709
        %p1107 = pneg %p733
        %p1108 = pneg %p730
        %p1109 = pneg %p754
        %p1110 = pneg %p751
        %p1111 = pneg %p775
        %p1112 = pneg %p772
        %p1113 = pneg %p796
        %p1114 = pneg %p793
        %p1115 = pneg %p817
        %p1116 = pneg %p814
        %p1117 = pneg %p838
        %p1118 = pneg %p835
        %p1119 = pneg %p864
        %p1120 = pneg %p861
        %p1121 = scmp.lt.s32.totalorder %s88, 1
        %s1122 = scalar_select %p1121, %s88, 1
        %s1123 = smul.addr %s1122, 8
        %s1124 = scalar_lea.vmem %s71, %s1123
        %p1125 = pneg %p890
        %p1126 = pneg %p887
        %s1127 = sand.u32 %s877, 1
        %s1128 = scalar_lea.sflag [#allocation3], %s1127
        %s1129 = sand.u32 %s877, 1
        %s1130 = scalar_lea.vmem [#allocation2], %s1129
        %p1131 = scmp.lt.s32.totalorder %s88, 1
        %s1132 = scalar_select %p1131, %s88, 1
        %s1133 = smul.addr %s1132, 8
        %s1134 = scalar_lea.vmem %s1, %s1133
        %p1135 = scmp.lt.s32.totalorder %s88, 1
        %s1136 = scalar_select %p1135, %s88, 1
        %s1137 = smul.addr %s1136, 8
        %s1138 = scalar_lea.vmem %s3, %s1137
        %p1139 = scmp.lt.s32.totalorder %s88, 1
        %s1140 = scalar_select %p1139, %s88, 1
        %s1141 = scalar_lea.vmem %s5, %s1140
        %p1142 = scmp.lt.s32.totalorder %s88, 1
        %s1143 = scalar_select %p1142, %s88, 1
        %s1144 = scalar_lea.vmem %s7, %s1143
        %p1145 = scmp.lt.s32.totalorder %s88, 1
        %s1146 = scalar_select %p1145, %s88, 1
        %s1147 = smul.addr %s1146, 8
        %s1148 = scalar_lea.vmem %s71, %s1147
        %v1149 = vld [vmem:[%s1134] sm:$0xff]
        %v1150 = vlaneseq
        %v1151 = vand.u32 %v1150, 127
        %1152 = vset.pattern.permute.xlu0 0
        %1153 = vperm.xlu0 %1152, %v1149
        %v1154 = vpop.permute.xlu0 %1153
        %vm1155 = vcmp.eq.s32.totalorder %v1154, %v1151
        %v1156 = vsel %vm1155, 1, 0
        %v1157 = vcvt.s32.f32 %v1156
        %v1158 = vld [vmem:[%s13] sm:$0xff]
        %v1159 = vld [vmem:[%s13 + $0x8] sm:$0xff]
        %v1160 = vld [vmem:[%s13 + $0x10] sm:$0xff]
        %v1161 = vld [vmem:[%s13 + $0x18] sm:$0xff]
        %v1162 = vld [vmem:[%s13 + $0x20] sm:$0xff]
        %v1163 = vld [vmem:[%s13 + $0x28] sm:$0xff]
        %v1164 = vld [vmem:[%s13 + $0x30] sm:$0xff]
        %v1165 = vld [vmem:[%s13 + $0x38] sm:$0xff]
        %v1166 = vld [vmem:[%s1138] sm:$0xff]
        %v1167 = vcvt.s32.f32 %v1166
        %v1168 = vld [vmem:[%s17] sm:$0x3]
        %v1169 = vsub.f32 1.0, %v1167
        %v1170 = vlaneseq
        %v1171 = vshrl.u32 %v1170, 7
        %v1172 = vsub.s32 0, %v1171
        %v1173 = vrot.slane %v1168, %v1172
        %1175 = vset.pattern.permute.xlu0 0
        %1176 = vperm.xlu0 %1175, %v1169
        %v1177 = vpop.permute.xlu0 %1176
        %v1179 = vmul.f32 %v1173, %v1177
        %v1180 = vlaneseq
        %v1181 = vshrl.u32 %v1180, 7
        %v1182 = vsub.s32 1, %v1181
        %v1183 = vrot.slane %v1168, %v1182
        %1185 = vset.pattern.permute.xlu0 0
        %1186 = vperm.xlu0 %1185, %v1167
        %v1187 = vpop.permute.xlu0 %1186
        %v1189 = vmul.f32 %v1183, %v1187
        %v1190 = vadd.f32 %v1179, %v1189
        %v1191 = vld [vmem:[%s15] sm:$0xff]
        %vm1192 = vcmask 523264
        %v1194 = vsel %vm1192, %v1157, 0
        %1196 = vmatprep.subr.mxu0 0.0
        %1197 = vmatpush1.msra.mxu0 %v1158
        %1198 = vmatprep.subr.mxu0 0.0
        %1199 = vmatpush1.msra.mxu0 %v1159
        %1200 = vmatprep.subr.mxu0 0.0
        %1201 = vmatpush1.msra.mxu0 %v1160
        %1202 = vmatprep.subr.mxu0 0.0
        %1203 = vmatpush1.msra.mxu0 %v1161
        %1204 = vmatprep.subr.mxu0 0.0
        %1205 = vmatpush1.msra.mxu0 %v1162
        %1206 = vmatprep.subr.mxu0 0.0
        %1207 = vmatpush1.msra.mxu0 %v1163
        %1208 = vmatprep.subr.mxu0 0.0
        %1209 = vmatpush1.msra.mxu0 %v1164
        %1210 = vmatprep.subr.mxu0 0.0
        %1211 = vmatpush1.msra.mxu0 %v1165
        %1212 = vmatprep.subr.mxu0 0.0
        %1213 = vmatpush1.msra.mxu0 0.0
        %1214 = vmatprep.subr.mxu0 0.0
        %1215 = vmatpush1.msra.mxu0 0.0
        %1216 = vmatprep.subr.mxu0 0.0
        %1217 = vmatpush1.msra.mxu0 0.0
        %1218 = vmatprep.subr.mxu0 0.0
        %1219 = vmatpush1.msra.mxu0 0.0
        %1220 = vmatprep.subr.mxu0 0.0
        %1221 = vmatpush1.msra.mxu0 0.0
        %1222 = vmatprep.subr.mxu0 0.0
        %1223 = vmatpush1.msra.mxu0 0.0
        %1224 = vmatprep.subr.mxu0 0.0
        %1225 = vmatpush1.msra.mxu0 0.0
        %1226 = vmatprep.subr.mxu0 0.0
        %1227 = vmatpush1.msra.mxu0 0.0
        %1228 = vmatprep.subr.mxu0 0.0
        %1229 = vmatpush1.msra.mxu0 0.0
        %1230 = vmatprep.subr.mxu0 0.0
        %1231 = vmatpush1.msra.mxu0 0.0
        %1232 = vmatprep.subr.mxu0 0.0
        %1233 = vmatpush1.msra.mxu0 0.0
        %1234 = vmatprep.subr.mxu0 0.0
        %1235 = vmatpush1.msra.mxu0 0.0
        %1236 = vmatprep.subr.mxu0 0.0
        %1237 = vmatpush1.msra.mxu0 0.0
        %1238 = vmatprep.subr.mxu0 0.0
        %1239 = vmatpush1.msra.mxu0 0.0
        %1240 = vmatprep.subr.mxu0 0.0
        %1241 = vmatpush1.msra.mxu0 0.0
        %1242 = vmatprep.subr.mxu0 0.0
        %1243 = vmatpush1.msra.mxu0 0.0
        %1244 = vmatprep.subr.mxu0 0.0
        %1245 = vmatpush1.msra.mxu0 0.0
        %1246 = vmatprep.subr.mxu0 0.0
        %1247 = vmatpush1.msra.mxu0 0.0
        %1248 = vmatprep.subr.mxu0 0.0
        %1249 = vmatpush1.msra.mxu0 0.0
        %1250 = vmatprep.subr.mxu0 0.0
        %1251 = vmatpush1.msra.mxu0 0.0
        %1252 = vmatprep.subr.mxu0 0.0
        %1253 = vmatpush1.msra.mxu0 0.0
        %1254 = vmatprep.subr.mxu0 0.0
        %1255 = vmatpush1.msra.mxu0 0.0
        %1256 = vmatprep.subr.mxu0 0.0
        %1257 = vmatpush1.msra.mxu0 0.0
        %1258 = vmatprep.subr.mxu0 0.0
        %1259 = vmatpush1.msra.mxu0 0.0
        %1260 = vmatprep.mubr.f32.mxu0 0.0
        %1261 = vmatmul.mubr.f32.gmra.mrb[0].mxu0 %v1194
        %v1262 = vpop.f32.mrb[0].mxu0
        %v1263 = vadd.f32 %v1191, %v1262
        %v1264 = vpop.f32.mrb[0].mxu0
        %1265 = vdwg.mxu0
        %v1266 = vadd.f32 %v1263, %v1190
        %vm1267 = vcmask 261120
        %v1268 = vsel %vm1267, %v1266, 0.0
        %1269 = vadd.xlane.f32.xlu0 %v1268
        %v1270 = vpop.xlane.xlu0 %1269
        %v1271 = vrcp.pop 32.0
        %v1272 = vmul.f32 %v1270, %v1271
        %v1273 = vsub.f32 %v1266, %v1272
        %v1274 = vmul.f32 %v1273, %v1273
        %v1275 = vsel %vm1267, %v1274, 0.0
        %1276 = vadd.xlane.f32.xlu0 %v1275
        %v1277 = vpop.xlane.xlu0 %1276
        %v1278 = vmul.f32 %v1277, %v1271
        %v1279 = vadd.f32 %v1278, 1e-12
        %v1280 = vrsqrt.pop %v1279
        %v1281 = vmul.f32 %v1273, %v1280
        %v1282 = vld [vmem:[%s19] sm:$0x1]
        %v1284 = vlaneseq
        %v1285 = vshrl.u32 %v1284, 7
        %v1286 = vsub.s32 0, %v1285
        %v1287 = vrot.slane %v1282, %v1286
        %v1289 = vmul.f32 %v1281, %v1287
        %v1290 = vld [vmem:[%s21] sm:$0x1]
        %v1292 = vlaneseq
        %v1293 = vshrl.u32 %v1292, 7
        %v1294 = vsub.s32 0, %v1293
        %v1295 = vrot.slane %v1290, %v1294
        %v1297 = vadd.f32 %v1289, %v1295
        %v1298 = vld [vmem:[%s1144] sm:$0x1]
        %v1299 = vld [vmem:[%s9] sm:$0x7]
        %v1300 = vld [vmem:[%s11] sm:$0x1]
        %vm1301 = vcmask 23552
        %v1303 = vsel %vm1301, %v1298, 0
        %vm1305 = vcmask 1042432
        %v1307 = vsel %vm1305, %v1299, 0
        %1309 = vmatprep.subr.mxu0 0.0
        %1310 = vmatpush1.msra.mxu0 %v1307
        %1311 = vmatprep.subr.mxu0 0.0
        %1312 = vmatpush1.msra.mxu0 0.0
        %1313 = vmatprep.subr.mxu0 0.0
        %1314 = vmatpush1.msra.mxu0 0.0
        %1315 = vmatprep.subr.mxu0 0.0
        %1316 = vmatpush1.msra.mxu0 0.0
        %1317 = vmatprep.subr.mxu0 0.0
        %1318 = vmatpush1.msra.mxu0 0.0
        %1319 = vmatprep.subr.mxu0 0.0
        %1320 = vmatpush1.msra.mxu0 0.0
        %1321 = vmatprep.subr.mxu0 0.0
        %1322 = vmatpush1.msra.mxu0 0.0
        %1323 = vmatprep.subr.mxu0 0.0
        %1324 = vmatpush1.msra.mxu0 0.0
        %1325 = vmatprep.subr.mxu0 0.0
        %1326 = vmatpush1.msra.mxu0 0.0
        %1327 = vmatprep.subr.mxu0 0.0
        %1328 = vmatpush1.msra.mxu0 0.0
        %1329 = vmatprep.subr.mxu0 0.0
        %1330 = vmatpush1.msra.mxu0 0.0
        %1331 = vmatprep.subr.mxu0 0.0
        %1332 = vmatpush1.msra.mxu0 0.0
        %1333 = vmatprep.subr.mxu0 0.0
        %1334 = vmatpush1.msra.mxu0 0.0
        %1335 = vmatprep.subr.mxu0 0.0
        %1336 = vmatpush1.msra.mxu0 0.0
        %1337 = vmatprep.subr.mxu0 0.0
        %1338 = vmatpush1.msra.mxu0 0.0
        %1339 = vmatprep.subr.mxu0 0.0
        %1340 = vmatpush1.msra.mxu0 0.0
        %1341 = vmatprep.subr.mxu0 0.0
        %1342 = vmatpush1.msra.mxu0 0.0
        %1343 = vmatprep.subr.mxu0 0.0
        %1344 = vmatpush1.msra.mxu0 0.0
        %1345 = vmatprep.subr.mxu0 0.0
        %1346 = vmatpush1.msra.mxu0 0.0
        %1347 = vmatprep.subr.mxu0 0.0
        %1348 = vmatpush1.msra.mxu0 0.0
        %1349 = vmatprep.subr.mxu0 0.0
        %1350 = vmatpush1.msra.mxu0 0.0
        %1351 = vmatprep.subr.mxu0 0.0
        %1352 = vmatpush1.msra.mxu0 0.0
        %1353 = vmatprep.subr.mxu0 0.0
        %1354 = vmatpush1.msra.mxu0 0.0
        %1355 = vmatprep.subr.mxu0 0.0
        %1356 = vmatpush1.msra.mxu0 0.0
        %1357 = vmatprep.subr.mxu0 0.0
        %1358 = vmatpush1.msra.mxu0 0.0
        %1359 = vmatprep.subr.mxu0 0.0
        %1360 = vmatpush1.msra.mxu0 0.0
        %1361 = vmatprep.subr.mxu0 0.0
        %1362 = vmatpush1.msra.mxu0 0.0
        %1363 = vmatprep.subr.mxu0 0.0
        %1364 = vmatpush1.msra.mxu0 0.0
        %1365 = vmatprep.subr.mxu0 0.0
        %1366 = vmatpush1.msra.mxu0 0.0
        %1367 = vmatprep.subr.mxu0 0.0
        %1368 = vmatpush1.msra.mxu0 0.0
        %1369 = vmatprep.subr.mxu0 0.0
        %1370 = vmatpush1.msra.mxu0 0.0
        %1371 = vmatprep.subr.mxu0 0.0
        %1372 = vmatpush1.msra.mxu0 0.0
        %1373 = vmatprep.mubr.f32.mxu0 0.0
        %1374 = vmatmul.mubr.f32.gmra.mrb[0].mxu0 %v1303
        %v1375 = vpop.f32.mrb[0].mxu0
        %v1376 = vadd.f32 %v1300, %v1375
        %v1377 = vpop.f32.mrb[0].mxu0
        %1378 = vdwg.mxu0
        %v1379 = vlaneseq
        %v1380 = vshrl.u32 %v1379, 7
        %vm1381 = vcmp.eq.s32.totalorder %v1380, 0
        %v1382 = vlaneseq
        %v1383 = vshrl.u32 %v1382, 7
        %v1384 = vsub.s32 0, %v1383
        %v1385 = vrot.slane %v1376, %v1384
        %v1386 = vsel %vm1381, 1, 0
        %vm1387 = vcmp.eq.s32.totalorder %v1386, 1
        %v1388 = vsel %vm1387, %v1385, %v1297
        %v1389 = vld [vmem:[%s1141] sm:$0x1]
        %v1390 = vsub.f32 1.0, %v1389
        %v1391 = vmul.f32 %v1390, -1e+09
        %v1392 = vsel %vm1267, %v1388, 0.0
        %1393 = vadd.xlane.f32.xlu0 %v1392
        %v1394 = vpop.xlane.xlu0 %1393
        %v1395 = vmul.f32 %v1394, %v1271
        %v1396 = vsub.f32 %v1388, %v1395
        %v1397 = vmul.f32 %v1396, %v1396
        %v1398 = vsel %vm1267, %v1397, 0.0
        %1399 = vadd.xlane.f32.xlu0 %v1398
        %v1400 = vpop.xlane.xlu0 %1399
        %v1401 = vmul.f32 %v1400, %v1271
        %v1402 = vadd.f32 %v1401, 1e-12
        %v1403 = vrsqrt.pop %v1402
        %v1404 = vmul.f32 %v1396, %v1403
        %v1405 = vld [vmem:[%s31] sm:$0x1]
        %v1407 = vlaneseq
        %v1408 = vshrl.u32 %v1407, 7
        %v1409 = vsub.s32 0, %v1408
        %v1410 = vrot.slane %v1405, %v1409
        %v1412 = vmul.f32 %v1404, %v1410
        %v1413 = vld [vmem:[%s33] sm:$0x1]
        %v1415 = vlaneseq
        %v1416 = vshrl.u32 %v1415, 7
        %v1417 = vsub.s32 0, %v1416
        %v1418 = vrot.slane %v1413, %v1417
        %v1420 = vadd.f32 %v1412, %v1418
        %v1421 = vld [vmem:[%s23] sm:$0xff]
        %v1422 = vld [vmem:[%s23 + $0x8] sm:$0xff]
        %v1423 = vld [vmem:[%s23 + $0x10] sm:$0xff]
        %v1424 = vld [vmem:[%s23 + $0x18] sm:$0xff]
        %v1425 = vld [vmem:[%s25] sm:$0x1]
        %v1427 = vlaneseq
        %v1428 = vshrl.u32 %v1427, 7
        %v1429 = vsub.s32 0, %v1428
        %v1430 = vrot.slane %v1425, %v1429
        %v1433 = vsel %vm1267, %v1420, 0
        %1435 = vmatprep.subr.mxu0 0.0
        %1436 = vmatpush1.msra.mxu0 %v1421
        %1437 = vmatprep.subr.mxu0 0.0
        %1438 = vmatpush1.msra.mxu0 %v1422
        %1439 = vmatprep.subr.mxu0 0.0
        %1440 = vmatpush1.msra.mxu0 %v1423
        %1441 = vmatprep.subr.mxu0 0.0
        %1442 = vmatpush1.msra.mxu0 %v1424
        %1443 = vmatprep.subr.mxu0 0.0
        %1444 = vmatpush1.msra.mxu0 0.0
        %1445 = vmatprep.subr.mxu0 0.0
        %1446 = vmatpush1.msra.mxu0 0.0
        %1447 = vmatprep.subr.mxu0 0.0
        %1448 = vmatpush1.msra.mxu0 0.0
        %1449 = vmatprep.subr.mxu0 0.0
        %1450 = vmatpush1.msra.mxu0 0.0
        %1451 = vmatprep.subr.mxu0 0.0
        %1452 = vmatpush1.msra.mxu0 0.0
        %1453 = vmatprep.subr.mxu0 0.0
        %1454 = vmatpush1.msra.mxu0 0.0
        %1455 = vmatprep.subr.mxu0 0.0
        %1456 = vmatpush1.msra.mxu0 0.0
        %1457 = vmatprep.subr.mxu0 0.0
        %1458 = vmatpush1.msra.mxu0 0.0
        %1459 = vmatprep.subr.mxu0 0.0
        %1460 = vmatpush1.msra.mxu0 0.0
        %1461 = vmatprep.subr.mxu0 0.0
        %1462 = vmatpush1.msra.mxu0 0.0
        %1463 = vmatprep.subr.mxu0 0.0
        %1464 = vmatpush1.msra.mxu0 0.0
        %1465 = vmatprep.subr.mxu0 0.0
        %1466 = vmatpush1.msra.mxu0 0.0
        %1467 = vmatprep.subr.mxu0 0.0
        %1468 = vmatpush1.msra.mxu0 0.0
        %1469 = vmatprep.subr.mxu0 0.0
        %1470 = vmatpush1.msra.mxu0 0.0
        %1471 = vmatprep.subr.mxu0 0.0
        %1472 = vmatpush1.msra.mxu0 0.0
        %1473 = vmatprep.subr.mxu0 0.0
        %1474 = vmatpush1.msra.mxu0 0.0
        %1475 = vmatprep.subr.mxu0 0.0
        %1476 = vmatpush1.msra.mxu0 0.0
        %1477 = vmatprep.subr.mxu0 0.0
        %1478 = vmatpush1.msra.mxu0 0.0
        %1479 = vmatprep.subr.mxu0 0.0
        %1480 = vmatpush1.msra.mxu0 0.0
        %1481 = vmatprep.subr.mxu0 0.0
        %1482 = vmatpush1.msra.mxu0 0.0
        %1483 = vmatprep.subr.mxu0 0.0
        %1484 = vmatpush1.msra.mxu0 0.0
        %1485 = vmatprep.subr.mxu0 0.0
        %1486 = vmatpush1.msra.mxu0 0.0
        %1487 = vmatprep.subr.mxu0 0.0
        %1488 = vmatpush1.msra.mxu0 0.0
        %1489 = vmatprep.subr.mxu0 0.0
        %1490 = vmatpush1.msra.mxu0 0.0
        %1491 = vmatprep.subr.mxu0 0.0
        %1492 = vmatpush1.msra.mxu0 0.0
        %1493 = vmatprep.subr.mxu0 0.0
        %1494 = vmatpush1.msra.mxu0 0.0
        %1495 = vmatprep.subr.mxu0 0.0
        %1496 = vmatpush1.msra.mxu0 0.0
        %1497 = vmatprep.subr.mxu0 0.0
        %1498 = vmatpush1.msra.mxu0 0.0
        %1499 = vmatprep.mubr.f32.mxu0 0.0
        %1500 = vmatmul.mubr.f32.gmra.mrb[0].mxu0 %v1433
        %v1501 = vpop.f32.mrb[0].mxu0
        %v1502 = vadd.f32 %v1430, %v1501
        %v1503 = vpop.f32.mrb[0].mxu0
        %1504 = vdwg.mxu0
        %1506 = vrot.lane.b32.xlu0 %v1502, 96
        %v1507 = vpop.permute.xlu0 %1506
        %vm1508 = vcmask 64512
        %v1509 = vsel %vm1508, %v1502, 0
        %v1511 = vsel %vm1508, %v1507, 0
        %1513 = vmatprep.subr.mxu0 0.0
        %1514 = vmatpush1.xpose.msra.mxu0 %v1511
        %1515 = vmatprep.subr.mxu0 0.0
        %1516 = vmatpush1.xpose.msra.mxu0 0.0
        %1517 = vmatprep.subr.mxu0 0.0
        %1518 = vmatpush1.xpose.msra.mxu0 0.0
        %1519 = vmatprep.subr.mxu0 0.0
        %1520 = vmatpush1.xpose.msra.mxu0 0.0
        %1521 = vmatprep.subr.mxu0 0.0
        %1522 = vmatpush1.xpose.msra.mxu0 0.0
        %1523 = vmatprep.subr.mxu0 0.0
        %1524 = vmatpush1.xpose.msra.mxu0 0.0
        %1525 = vmatprep.subr.mxu0 0.0
        %1526 = vmatpush1.xpose.msra.mxu0 0.0
        %1527 = vmatprep.subr.mxu0 0.0
        %1528 = vmatpush1.xpose.msra.mxu0 0.0
        %1529 = vmatprep.subr.mxu0 0.0
        %1530 = vmatpush1.xpose.msra.mxu0 0.0
        %1531 = vmatprep.subr.mxu0 0.0
        %1532 = vmatpush1.xpose.msra.mxu0 0.0
        %1533 = vmatprep.subr.mxu0 0.0
        %1534 = vmatpush1.xpose.msra.mxu0 0.0
        %1535 = vmatprep.subr.mxu0 0.0
        %1536 = vmatpush1.xpose.msra.mxu0 0.0
        %1537 = vmatprep.subr.mxu0 0.0
        %1538 = vmatpush1.xpose.msra.mxu0 0.0
        %1539 = vmatprep.subr.mxu0 0.0
        %1540 = vmatpush1.xpose.msra.mxu0 0.0
        %1541 = vmatprep.subr.mxu0 0.0
        %1542 = vmatpush1.xpose.msra.mxu0 0.0
        %1543 = vmatprep.subr.mxu0 0.0
        %1544 = vmatpush1.xpose.msra.mxu0 0.0
        %1545 = vmatprep.subr.mxu0 0.0
        %1546 = vmatpush1.xpose.msra.mxu0 0.0
        %1547 = vmatprep.subr.mxu0 0.0
        %1548 = vmatpush1.xpose.msra.mxu0 0.0
        %1549 = vmatprep.subr.mxu0 0.0
        %1550 = vmatpush1.xpose.msra.mxu0 0.0
        %1551 = vmatprep.subr.mxu0 0.0
        %1552 = vmatpush1.xpose.msra.mxu0 0.0
        %1553 = vmatprep.subr.mxu0 0.0
        %1554 = vmatpush1.xpose.msra.mxu0 0.0
        %1555 = vmatprep.subr.mxu0 0.0
        %1556 = vmatpush1.xpose.msra.mxu0 0.0
        %1557 = vmatprep.subr.mxu0 0.0
        %1558 = vmatpush1.xpose.msra.mxu0 0.0
        %1559 = vmatprep.subr.mxu0 0.0
        %1560 = vmatpush1.xpose.msra.mxu0 0.0
        %1561 = vmatprep.subr.mxu0 0.0
        %1562 = vmatpush1.xpose.msra.mxu0 0.0
        %1563 = vmatprep.subr.mxu0 0.0
        %1564 = vmatpush1.xpose.msra.mxu0 0.0
        %1565 = vmatprep.subr.mxu0 0.0
        %1566 = vmatpush1.xpose.msra.mxu0 0.0
        %1567 = vmatprep.subr.mxu0 0.0
        %1568 = vmatpush1.xpose.msra.mxu0 0.0
        %1569 = vmatprep.subr.mxu0 0.0
        %1570 = vmatpush1.xpose.msra.mxu0 0.0
        %1571 = vmatprep.subr.mxu0 0.0
        %1572 = vmatpush1.xpose.msra.mxu0 0.0
        %1573 = vmatprep.subr.mxu0 0.0
        %1574 = vmatpush1.xpose.msra.mxu0 0.0
        %1575 = vmatprep.subr.mxu0 0.0
        %1576 = vmatpush1.xpose.msra.mxu0 0.0
        %1577 = vmatprep.mubr.f32.mxu0 0.0
        %1578 = vmatmul.mubr.f32.gmra.mrb[0].mxu0 %v1509
        %v1579 = vpop.f32.mrb[0].mxu0
        %v1580 = vadd.f32 0.0, %v1579
        %v1581 = vpop.f32.mrb[0].mxu0
        %1582 = vdwg.mxu0
        %v1583 = vmul.f32 %v1580, 0.35355338
        %v1585 = vlaneseq
        %v1586 = vshrl.u32 %v1585, 7
        %v1587 = vsub.s32 0, %v1586
        %v1588 = vrot.slane %v1391, %v1587
        %v1590 = vadd.f32 %v1583, %v1588
        %v1591 = vsel %vm1508, %v1590, -inf
        %1592 = vmax.xlane.f32.xlu0 %v1591
        %v1593 = vpop.xlane.xlu0 %1592
        %v1594 = vsub.f32 %v1590, %v1593
        %v1595 = vmul.f32 %v1594, 1.442695
        %v1596 = vpow.pop %v1595
        %v1597 = vsel %vm1508, %v1596, 0.0
        %1598 = vadd.xlane.f32.xlu0 %v1597
        %v1599 = vpop.xlane.xlu0 %1598
        %v1600 = vrcp.pop %v1599
        %v1601 = vmul.f32 %v1596, %v1600
        %1602 = vrot.lane.b32.xlu0 %v1502, 64
        %v1603 = vpop.permute.xlu0 %1602
        %v1606 = vsel %vm1508, %v1601, 0
        %1608 = vmatprep.subr.mxu0 0.0
        %1609 = vmatpush1.msra.mxu0 %v1603
        %1610 = vmatprep.subr.mxu0 0.0
        %1611 = vmatpush1.msra.mxu0 0.0
        %1612 = vmatprep.subr.mxu0 0.0
        %1613 = vmatpush1.msra.mxu0 0.0
        %1614 = vmatprep.subr.mxu0 0.0
        %1615 = vmatpush1.msra.mxu0 0.0
        %1616 = vmatprep.subr.mxu0 0.0
        %1617 = vmatpush1.msra.mxu0 0.0
        %1618 = vmatprep.subr.mxu0 0.0
        %1619 = vmatpush1.msra.mxu0 0.0
        %1620 = vmatprep.subr.mxu0 0.0
        %1621 = vmatpush1.msra.mxu0 0.0
        %1622 = vmatprep.subr.mxu0 0.0
        %1623 = vmatpush1.msra.mxu0 0.0
        %1624 = vmatprep.subr.mxu0 0.0
        %1625 = vmatpush1.msra.mxu0 0.0
        %1626 = vmatprep.subr.mxu0 0.0
        %1627 = vmatpush1.msra.mxu0 0.0
        %1628 = vmatprep.subr.mxu0 0.0
        %1629 = vmatpush1.msra.mxu0 0.0
        %1630 = vmatprep.subr.mxu0 0.0
        %1631 = vmatpush1.msra.mxu0 0.0
        %1632 = vmatprep.subr.mxu0 0.0
        %1633 = vmatpush1.msra.mxu0 0.0
        %1634 = vmatprep.subr.mxu0 0.0
        %1635 = vmatpush1.msra.mxu0 0.0
        %1636 = vmatprep.subr.mxu0 0.0
        %1637 = vmatpush1.msra.mxu0 0.0
        %1638 = vmatprep.subr.mxu0 0.0
        %1639 = vmatpush1.msra.mxu0 0.0
        %1640 = vmatprep.subr.mxu0 0.0
        %1641 = vmatpush1.msra.mxu0 0.0
        %1642 = vmatprep.subr.mxu0 0.0
        %1643 = vmatpush1.msra.mxu0 0.0
        %1644 = vmatprep.subr.mxu0 0.0
        %1645 = vmatpush1.msra.mxu0 0.0
        %1646 = vmatprep.subr.mxu0 0.0
        %1647 = vmatpush1.msra.mxu0 0.0
        %1648 = vmatprep.subr.mxu0 0.0
        %1649 = vmatpush1.msra.mxu0 0.0
        %1650 = vmatprep.subr.mxu0 0.0
        %1651 = vmatpush1.msra.mxu0 0.0
        %1652 = vmatprep.subr.mxu0 0.0
        %1653 = vmatpush1.msra.mxu0 0.0
        %1654 = vmatprep.subr.mxu0 0.0
        %1655 = vmatpush1.msra.mxu0 0.0
        %1656 = vmatprep.subr.mxu0 0.0
        %1657 = vmatpush1.msra.mxu0 0.0
        %1658 = vmatprep.subr.mxu0 0.0
        %1659 = vmatpush1.msra.mxu0 0.0
        %1660 = vmatprep.subr.mxu0 0.0
        %1661 = vmatpush1.msra.mxu0 0.0
        %1662 = vmatprep.subr.mxu0 0.0
        %1663 = vmatpush1.msra.mxu0 0.0
        %1664 = vmatprep.subr.mxu0 0.0
        %1665 = vmatpush1.msra.mxu0 0.0
        %1666 = vmatprep.subr.mxu0 0.0
        %1667 = vmatpush1.msra.mxu0 0.0
        %1668 = vmatprep.subr.mxu0 0.0
        %1669 = vmatpush1.msra.mxu0 0.0
        %1670 = vmatprep.subr.mxu0 0.0
        %1671 = vmatpush1.msra.mxu0 0.0
        %1672 = vmatprep.mubr.f32.mxu0 0.0
        %1673 = vmatmul.mubr.f32.gmra.mrb[0].mxu0 %v1606
        %v1674 = vpop.f32.mrb[0].mxu0
        %v1675 = vadd.f32 0.0, %v1674
        %v1676 = vpop.f32.mrb[0].mxu0
        %1677 = vdwg.mxu0
        %1678 = vrot.lane.b32.xlu0 %v1502, 120
        %v1679 = vpop.permute.xlu0 %1678
        %1680 = vrot.lane.b32.xlu0 %v1502, 88
        %v1681 = vpop.permute.xlu0 %1680
        %v1682 = vsel %vm1508, %v1679, 0
        %v1684 = vsel %vm1508, %v1681, 0
        %1686 = vmatprep.subr.mxu0 0.0
        %1687 = vmatpush1.xpose.msra.mxu0 %v1684
        %1688 = vmatprep.subr.mxu0 0.0
        %1689 = vmatpush1.xpose.msra.mxu0 0.0
        %1690 = vmatprep.subr.mxu0 0.0
        %1691 = vmatpush1.xpose.msra.mxu0 0.0
        %1692 = vmatprep.subr.mxu0 0.0
        %1693 = vmatpush1.xpose.msra.mxu0 0.0
        %1694 = vmatprep.subr.mxu0 0.0
        %1695 = vmatpush1.xpose.msra.mxu0 0.0
        %1696 = vmatprep.subr.mxu0 0.0
        %1697 = vmatpush1.xpose.msra.mxu0 0.0
        %1698 = vmatprep.subr.mxu0 0.0
        %1699 = vmatpush1.xpose.msra.mxu0 0.0
        %1700 = vmatprep.subr.mxu0 0.0
        %1701 = vmatpush1.xpose.msra.mxu0 0.0
        %1702 = vmatprep.subr.mxu0 0.0
        %1703 = vmatpush1.xpose.msra.mxu0 0.0
        %1704 = vmatprep.subr.mxu0 0.0
        %1705 = vmatpush1.xpose.msra.mxu0 0.0
        %1706 = vmatprep.subr.mxu0 0.0
        %1707 = vmatpush1.xpose.msra.mxu0 0.0
        %1708 = vmatprep.subr.mxu0 0.0
        %1709 = vmatpush1.xpose.msra.mxu0 0.0
        %1710 = vmatprep.subr.mxu0 0.0
        %1711 = vmatpush1.xpose.msra.mxu0 0.0
        %1712 = vmatprep.subr.mxu0 0.0
        %1713 = vmatpush1.xpose.msra.mxu0 0.0
        %1714 = vmatprep.subr.mxu0 0.0
        %1715 = vmatpush1.xpose.msra.mxu0 0.0
        %1716 = vmatprep.subr.mxu0 0.0
        %1717 = vmatpush1.xpose.msra.mxu0 0.0
        %1718 = vmatprep.subr.mxu0 0.0
        %1719 = vmatpush1.xpose.msra.mxu0 0.0
        %1720 = vmatprep.subr.mxu0 0.0
        %1721 = vmatpush1.xpose.msra.mxu0 0.0
        %1722 = vmatprep.subr.mxu0 0.0
        %1723 = vmatpush1.xpose.msra.mxu0 0.0
        %1724 = vmatprep.subr.mxu0 0.0
        %1725 = vmatpush1.xpose.msra.mxu0 0.0
        %1726 = vmatprep.subr.mxu0 0.0
        %1727 = vmatpush1.xpose.msra.mxu0 0.0
        %1728 = vmatprep.subr.mxu0 0.0
        %1729 = vmatpush1.xpose.msra.mxu0 0.0
        %1730 = vmatprep.subr.mxu0 0.0
        %1731 = vmatpush1.xpose.msra.mxu0 0.0
        %1732 = vmatprep.subr.mxu0 0.0
        %1733 = vmatpush1.xpose.msra.mxu0 0.0
        %1734 = vmatprep.subr.mxu0 0.0
        %1735 = vmatpush1.xpose.msra.mxu0 0.0
        %1736 = vmatprep.subr.mxu0 0.0
        %1737 = vmatpush1.xpose.msra.mxu0 0.0
        %1738 = vmatprep.subr.mxu0 0.0
        %1739 = vmatpush1.xpose.msra.mxu0 0.0
        %1740 = vmatprep.subr.mxu0 0.0
        %1741 = vmatpush1.xpose.msra.mxu0 0.0
        %1742 = vmatprep.subr.mxu0 0.0
        %1743 = vmatpush1.xpose.msra.mxu0 0.0
        %1744 = vmatprep.subr.mxu0 0.0
        %1745 = vmatpush1.xpose.msra.mxu0 0.0
        %1746 = vmatprep.subr.mxu0 0.0
        %1747 = vmatpush1.xpose.msra.mxu0 0.0
        %1748 = vmatprep.subr.mxu0 0.0
        %1749 = vmatpush1.xpose.msra.mxu0 0.0
        %1750 = vmatprep.mubr.f32.mxu0 0.0
        %1751 = vmatmul.mubr.f32.gmra.mrb[0].mxu0 %v1682
        %v1752 = vpop.f32.mrb[0].mxu0
        %v1753 = vadd.f32 0.0, %v1752
        %v1754 = vpop.f32.mrb[0].mxu0
        %1755 = vdwg.mxu0
        %v1756 = vmul.f32 %v1753, 0.35355338
        %v1757 = vadd.f32 %v1756, %v1588
        %v1758 = vsel %vm1508, %v1757, -inf
        %1759 = vmax.xlane.f32.xlu0 %v1758
        %v1760 = vpop.xlane.xlu0 %1759
        %v1761 = vsub.f32 %v1757, %v1760
        %v1762 = vmul.f32 %v1761, 1.442695
        %v1763 = vpow.pop %v1762
        %v1764 = vsel %vm1508, %v1763, 0.0
        %1765 = vadd.xlane.f32.xlu0 %v1764
        %v1766 = vpop.xlane.xlu0 %1765
        %v1767 = vrcp.pop %v1766
        %v1768 = vmul.f32 %v1763, %v1767
        %1769 = vrot.lane.b32.xlu0 %v1502, 56
        %v1770 = vpop.permute.xlu0 %1769
        %v1773 = vsel %vm1508, %v1768, 0
        %1775 = vmatprep.subr.mxu0 0.0
        %1776 = vmatpush1.msra.mxu0 %v1770
        %1777 = vmatprep.subr.mxu0 0.0
        %1778 = vmatpush1.msra.mxu0 0.0
        %1779 = vmatprep.subr.mxu0 0.0
        %1780 = vmatpush1.msra.mxu0 0.0
        %1781 = vmatprep.subr.mxu0 0.0
        %1782 = vmatpush1.msra.mxu0 0.0
        %1783 = vmatprep.subr.mxu0 0.0
        %1784 = vmatpush1.msra.mxu0 0.0
        %1785 = vmatprep.subr.mxu0 0.0
        %1786 = vmatpush1.msra.mxu0 0.0
        %1787 = vmatprep.subr.mxu0 0.0
        %1788 = vmatpush1.msra.mxu0 0.0
        %1789 = vmatprep.subr.mxu0 0.0
        %1790 = vmatpush1.msra.mxu0 0.0
        %1791 = vmatprep.subr.mxu0 0.0
        %1792 = vmatpush1.msra.mxu0 0.0
        %1793 = vmatprep.subr.mxu0 0.0
        %1794 = vmatpush1.msra.mxu0 0.0
        %1795 = vmatprep.subr.mxu0 0.0
        %1796 = vmatpush1.msra.mxu0 0.0
        %1797 = vmatprep.subr.mxu0 0.0
        %1798 = vmatpush1.msra.mxu0 0.0
        %1799 = vmatprep.subr.mxu0 0.0
        %1800 = vmatpush1.msra.mxu0 0.0
        %1801 = vmatprep.subr.mxu0 0.0
        %1802 = vmatpush1.msra.mxu0 0.0
        %1803 = vmatprep.subr.mxu0 0.0
        %1804 = vmatpush1.msra.mxu0 0.0
        %1805 = vmatprep.subr.mxu0 0.0
        %1806 = vmatpush1.msra.mxu0 0.0
        %1807 = vmatprep.subr.mxu0 0.0
        %1808 = vmatpush1.msra.mxu0 0.0
        %1809 = vmatprep.subr.mxu0 0.0
        %1810 = vmatpush1.msra.mxu0 0.0
        %1811 = vmatprep.subr.mxu0 0.0
        %1812 = vmatpush1.msra.mxu0 0.0
        %1813 = vmatprep.subr.mxu0 0.0
        %1814 = vmatpush1.msra.mxu0 0.0
        %1815 = vmatprep.subr.mxu0 0.0
        %1816 = vmatpush1.msra.mxu0 0.0
        %1817 = vmatprep.subr.mxu0 0.0
        %1818 = vmatpush1.msra.mxu0 0.0
        %1819 = vmatprep.subr.mxu0 0.0
        %1820 = vmatpush1.msra.mxu0 0.0
        %1821 = vmatprep.subr.mxu0 0.0
        %1822 = vmatpush1.msra.mxu0 0.0
        %1823 = vmatprep.subr.mxu0 0.0
        %1824 = vmatpush1.msra.mxu0 0.0
        %1825 = vmatprep.subr.mxu0 0.0
        %1826 = vmatpush1.msra.mxu0 0.0
        %1827 = vmatprep.subr.mxu0 0.0
        %1828 = vmatpush1.msra.mxu0 0.0
        %1829 = vmatprep.subr.mxu0 0.0
        %1830 = vmatpush1.msra.mxu0 0.0
        %1831 = vmatprep.subr.mxu0 0.0
        %1832 = vmatpush1.msra.mxu0 0.0
        %1833 = vmatprep.subr.mxu0 0.0
        %1834 = vmatpush1.msra.mxu0 0.0
        %1835 = vmatprep.subr.mxu0 0.0
        %1836 = vmatpush1.msra.mxu0 0.0
        %1837 = vmatprep.subr.mxu0 0.0
        %1838 = vmatpush1.msra.mxu0 0.0
        %1839 = vmatprep.mubr.f32.mxu0 0.0
        %1840 = vmatmul.mubr.f32.gmra.mrb[0].mxu0 %v1773
        %v1841 = vpop.f32.mrb[0].mxu0
        %v1842 = vadd.f32 0.0, %v1841
        %v1843 = vpop.f32.mrb[0].mxu0
        %1844 = vdwg.mxu0
        %1845 = vrot.lane.b32.xlu0 %v1502, 112
        %v1846 = vpop.permute.xlu0 %1845
        %1847 = vrot.lane.b32.xlu0 %v1502, 80
        %v1848 = vpop.permute.xlu0 %1847
        %v1849 = vsel %vm1508, %v1846, 0
        %v1851 = vsel %vm1508, %v1848, 0
        %1853 = vmatprep.subr.mxu0 0.0
        %1854 = vmatpush1.xpose.msra.mxu0 %v1851
        %1855 = vmatprep.subr.mxu0 0.0
        %1856 = vmatpush1.xpose.msra.mxu0 0.0
        %1857 = vmatprep.subr.mxu0 0.0
        %1858 = vmatpush1.xpose.msra.mxu0 0.0
        %1859 = vmatprep.subr.mxu0 0.0
        %1860 = vmatpush1.xpose.msra.mxu0 0.0
        %1861 = vmatprep.subr.mxu0 0.0
        %1862 = vmatpush1.xpose.msra.mxu0 0.0
        %1863 = vmatprep.subr.mxu0 0.0
        %1864 = vmatpush1.xpose.msra.mxu0 0.0
        %1865 = vmatprep.subr.mxu0 0.0
        %1866 = vmatpush1.xpose.msra.mxu0 0.0
        %1867 = vmatprep.subr.mxu0 0.0
        %1868 = vmatpush1.xpose.msra.mxu0 0.0
        %1869 = vmatprep.subr.mxu0 0.0
        %1870 = vmatpush1.xpose.msra.mxu0 0.0
        %1871 = vmatprep.subr.mxu0 0.0
        %1872 = vmatpush1.xpose.msra.mxu0 0.0
        %1873 = vmatprep.subr.mxu0 0.0
        %1874 = vmatpush1.xpose.msra.mxu0 0.0
        %1875 = vmatprep.subr.mxu0 0.0
        %1876 = vmatpush1.xpose.msra.mxu0 0.0
        %1877 = vmatprep.subr.mxu0 0.0
        %1878 = vmatpush1.xpose.msra.mxu0 0.0
        %1879 = vmatprep.subr.mxu0 0.0
        %1880 = vmatpush1.xpose.msra.mxu0 0.0
        %1881 = vmatprep.subr.mxu0 0.0
        %1882 = vmatpush1.xpose.msra.mxu0 0.0
        %1883 = vmatprep.subr.mxu0 0.0
        %1884 = vmatpush1.xpose.msra.mxu0 0.0
        %1885 = vmatprep.subr.mxu0 0.0
        %1886 = vmatpush1.xpose.msra.mxu0 0.0
        %1887 = vmatprep.subr.mxu0 0.0
        %1888 = vmatpush1.xpose.msra.mxu0 0.0
        %1889 = vmatprep.subr.mxu0 0.0
        %1890 = vmatpush1.xpose.msra.mxu0 0.0
        %1891 = vmatprep.subr.mxu0 0.0
        %1892 = vmatpush1.xpose.msra.mxu0 0.0
        %1893 = vmatprep.subr.mxu0 0.0
        %1894 = vmatpush1.xpose.msra.mxu0 0.0
        %1895 = vmatprep.subr.mxu0 0.0
        %1896 = vmatpush1.xpose.msra.mxu0 0.0
        %1897 = vmatprep.subr.mxu0 0.0
        %1898 = vmatpush1.xpose.msra.mxu0 0.0
        %1899 = vmatprep.subr.mxu0 0.0
        %1900 = vmatpush1.xpose.msra.mxu0 0.0
        %1901 = vmatprep.subr.mxu0 0.0
        %1902 = vmatpush1.xpose.msra.mxu0 0.0
        %1903 = vmatprep.subr.mxu0 0.0
        %1904 = vmatpush1.xpose.msra.mxu0 0.0
        %1905 = vmatprep.subr.mxu0 0.0
        %1906 = vmatpush1.xpose.msra.mxu0 0.0
        %1907 = vmatprep.subr.mxu0 0.0
        %1908 = vmatpush1.xpose.msra.mxu0 0.0
        %1909 = vmatprep.subr.mxu0 0.0
        %1910 = vmatpush1.xpose.msra.mxu0 0.0
        %1911 = vmatprep.subr.mxu0 0.0
        %1912 = vmatpush1.xpose.msra.mxu0 0.0
        %1913 = vmatprep.subr.mxu0 0.0
        %1914 = vmatpush1.xpose.msra.mxu0 0.0
        %1915 = vmatprep.subr.mxu0 0.0
        %1916 = vmatpush1.xpose.msra.mxu0 0.0
        %1917 = vmatprep.mubr.f32.mxu0 0.0
        %1918 = vmatmul.mubr.f32.gmra.mrb[0].mxu0 %v1849
        %v1919 = vpop.f32.mrb[0].mxu0
        %v1920 = vadd.f32 0.0, %v1919
        %v1921 = vpop.f32.mrb[0].mxu0
        %1922 = vdwg.mxu0
        %v1923 = vmul.f32 %v1920, 0.35355338
        %v1924 = vadd.f32 %v1923, %v1588
        %v1925 = vsel %vm1508, %v1924, -inf
        %1926 = vmax.xlane.f32.xlu0 %v1925
        %v1927 = vpop.xlane.xlu0 %1926
        %v1928 = vsub.f32 %v1924, %v1927
        %v1929 = vmul.f32 %v1928, 1.442695
        %v1930 = vpow.pop %v1929
        %v1931 = vsel %vm1508, %v1930, 0.0
        %1932 = vadd.xlane.f32.xlu0 %v1931
        %v1933 = vpop.xlane.xlu0 %1932
        %v1934 = vrcp.pop %v1933
        %v1935 = vmul.f32 %v1930, %v1934
        %1936 = vrot.lane.b32.xlu0 %v1502, 48
        %v1937 = vpop.permute.xlu0 %1936
        %v1940 = vsel %vm1508, %v1935, 0
        %1942 = vmatprep.subr.mxu0 0.0
        %1943 = vmatpush1.msra.mxu0 %v1937
        %1944 = vmatprep.subr.mxu0 0.0
        %1945 = vmatpush1.msra.mxu0 0.0
        %1946 = vmatprep.subr.mxu0 0.0
        %1947 = vmatpush1.msra.mxu0 0.0
        %1948 = vmatprep.subr.mxu0 0.0
        %1949 = vmatpush1.msra.mxu0 0.0
        %1950 = vmatprep.subr.mxu0 0.0
        %1951 = vmatpush1.msra.mxu0 0.0
        %1952 = vmatprep.subr.mxu0 0.0
        %1953 = vmatpush1.msra.mxu0 0.0
        %1954 = vmatprep.subr.mxu0 0.0
        %1955 = vmatpush1.msra.mxu0 0.0
        %1956 = vmatprep.subr.mxu0 0.0
        %1957 = vmatpush1.msra.mxu0 0.0
        %1958 = vmatprep.subr.mxu0 0.0
        %1959 = vmatpush1.msra.mxu0 0.0
        %1960 = vmatprep.subr.mxu0 0.0
        %1961 = vmatpush1.msra.mxu0 0.0
        %1962 = vmatprep.subr.mxu0 0.0
        %1963 = vmatpush1.msra.mxu0 0.0
        %1964 = vmatprep.subr.mxu0 0.0
        %1965 = vmatpush1.msra.mxu0 0.0
        %1966 = vmatprep.subr.mxu0 0.0
        %1967 = vmatpush1.msra.mxu0 0.0
        %1968 = vmatprep.subr.mxu0 0.0
        %1969 = vmatpush1.msra.mxu0 0.0
        %1970 = vmatprep.subr.mxu0 0.0
        %1971 = vmatpush1.msra.mxu0 0.0
        %1972 = vmatprep.subr.mxu0 0.0
        %1973 = vmatpush1.msra.mxu0 0.0
        %1974 = vmatprep.subr.mxu0 0.0
        %1975 = vmatpush1.msra.mxu0 0.0
        %1976 = vmatprep.subr.mxu0 0.0
        %1977 = vmatpush1.msra.mxu0 0.0
        %1978 = vmatprep.subr.mxu0 0.0
        %1979 = vmatpush1.msra.mxu0 0.0
        %1980 = vmatprep.subr.mxu0 0.0
        %1981 = vmatpush1.msra.mxu0 0.0
        %1982 = vmatprep.subr.mxu0 0.0
        %1983 = vmatpush1.msra.mxu0 0.0
        %1984 = vmatprep.subr.mxu0 0.0
        %1985 = vmatpush1.msra.mxu0 0.0
        %1986 = vmatprep.subr.mxu0 0.0
        %1987 = vmatpush1.msra.mxu0 0.0
        %1988 = vmatprep.subr.mxu0 0.0
        %1989 = vmatpush1.msra.mxu0 0.0
        %1990 = vmatprep.subr.mxu0 0.0
        %1991 = vmatpush1.msra.mxu0 0.0
        %1992 = vmatprep.subr.mxu0 0.0
        %1993 = vmatpush1.msra.mxu0 0.0
        %1994 = vmatprep.subr.mxu0 0.0
        %1995 = vmatpush1.msra.mxu0 0.0
        %1996 = vmatprep.subr.mxu0 0.0
        %1997 = vmatpush1.msra.mxu0 0.0
        %1998 = vmatprep.subr.mxu0 0.0
        %1999 = vmatpush1.msra.mxu0 0.0
        %2000 = vmatprep.subr.mxu0 0.0
        %2001 = vmatpush1.msra.mxu0 0.0
        %2002 = vmatprep.subr.mxu0 0.0
        %2003 = vmatpush1.msra.mxu0 0.0
        %2004 = vmatprep.subr.mxu0 0.0
        %2005 = vmatpush1.msra.mxu0 0.0
        %2006 = vmatprep.mubr.f32.mxu0 0.0
        %2007 = vmatmul.mubr.f32.gmra.mrb[0].mxu0 %v1940
        %v2008 = vpop.f32.mrb[0].mxu0
        %v2009 = vadd.f32 0.0, %v2008
        %v2010 = vpop.f32.mrb[0].mxu0
        %2011 = vdwg.mxu0
        %2012 = vrot.lane.b32.xlu0 %v1502, 104
        %v2013 = vpop.permute.xlu0 %2012
        %2014 = vrot.lane.b32.xlu0 %v1502, 72
        %v2015 = vpop.permute.xlu0 %2014
        %v2016 = vsel %vm1508, %v2013, 0
        %v2018 = vsel %vm1508, %v2015, 0
        %2020 = vmatprep.subr.mxu0 0.0
        %2021 = vmatpush1.xpose.msra.mxu0 %v2018
        %2022 = vmatprep.subr.mxu0 0.0
        %2023 = vmatpush1.xpose.msra.mxu0 0.0
        %2024 = vmatprep.subr.mxu0 0.0
        %2025 = vmatpush1.xpose.msra.mxu0 0.0
        %2026 = vmatprep.subr.mxu0 0.0
        %2027 = vmatpush1.xpose.msra.mxu0 0.0
        %2028 = vmatprep.subr.mxu0 0.0
        %2029 = vmatpush1.xpose.msra.mxu0 0.0
        %2030 = vmatprep.subr.mxu0 0.0
        %2031 = vmatpush1.xpose.msra.mxu0 0.0
        %2032 = vmatprep.subr.mxu0 0.0
        %2033 = vmatpush1.xpose.msra.mxu0 0.0
        %2034 = vmatprep.subr.mxu0 0.0
        %2035 = vmatpush1.xpose.msra.mxu0 0.0
        %2036 = vmatprep.subr.mxu0 0.0
        %2037 = vmatpush1.xpose.msra.mxu0 0.0
        %2038 = vmatprep.subr.mxu0 0.0
        %2039 = vmatpush1.xpose.msra.mxu0 0.0
        %2040 = vmatprep.subr.mxu0 0.0
        %2041 = vmatpush1.xpose.msra.mxu0 0.0
        %2042 = vmatprep.subr.mxu0 0.0
        %2043 = vmatpush1.xpose.msra.mxu0 0.0
        %2044 = vmatprep.subr.mxu0 0.0
        %2045 = vmatpush1.xpose.msra.mxu0 0.0
        %2046 = vmatprep.subr.mxu0 0.0
        %2047 = vmatpush1.xpose.msra.mxu0 0.0
        %2048 = vmatprep.subr.mxu0 0.0
        %2049 = vmatpush1.xpose.msra.mxu0 0.0
        %2050 = vmatprep.subr.mxu0 0.0
        %2051 = vmatpush1.xpose.msra.mxu0 0.0
        %2052 = vmatprep.subr.mxu0 0.0
        %2053 = vmatpush1.xpose.msra.mxu0 0.0
        %2054 = vmatprep.subr.mxu0 0.0
        %2055 = vmatpush1.xpose.msra.mxu0 0.0
        %2056 = vmatprep.subr.mxu0 0.0
        %2057 = vmatpush1.xpose.msra.mxu0 0.0
        %2058 = vmatprep.subr.mxu0 0.0
        %2059 = vmatpush1.xpose.msra.mxu0 0.0
        %2060 = vmatprep.subr.mxu0 0.0
        %2061 = vmatpush1.xpose.msra.mxu0 0.0
        %2062 = vmatprep.subr.mxu0 0.0
        %2063 = vmatpush1.xpose.msra.mxu0 0.0
        %2064 = vmatprep.subr.mxu0 0.0
        %2065 = vmatpush1.xpose.msra.mxu0 0.0
        %2066 = vmatprep.subr.mxu0 0.0
        %2067 = vmatpush1.xpose.msra.mxu0 0.0
        %2068 = vmatprep.subr.mxu0 0.0
        %2069 = vmatpush1.xpose.msra.mxu0 0.0
        %2070 = vmatprep.subr.mxu0 0.0
        %2071 = vmatpush1.xpose.msra.mxu0 0.0
        %2072 = vmatprep.subr.mxu0 0.0
        %2073 = vmatpush1.xpose.msra.mxu0 0.0
        %2074 = vmatprep.subr.mxu0 0.0
        %2075 = vmatpush1.xpose.msra.mxu0 0.0
        %2076 = vmatprep.subr.mxu0 0.0
        %2077 = vmatpush1.xpose.msra.mxu0 0.0
        %2078 = vmatprep.subr.mxu0 0.0
        %2079 = vmatpush1.xpose.msra.mxu0 0.0
        %2080 = vmatprep.subr.mxu0 0.0
        %2081 = vmatpush1.xpose.msra.mxu0 0.0
        %2082 = vmatprep.subr.mxu0 0.0
        %2083 = vmatpush1.xpose.msra.mxu0 0.0
        %2084 = vmatprep.mubr.f32.mxu0 0.0
        %2085 = vmatmul.mubr.f32.gmra.mrb[0].mxu0 %v2016
        %v2086 = vpop.f32.mrb[0].mxu0
        %v2087 = vadd.f32 0.0, %v2086
        %v2088 = vpop.f32.mrb[0].mxu0
        %2089 = vdwg.mxu0
        %v2090 = vmul.f32 %v2087, 0.35355338
        %v2091 = vadd.f32 %v2090, %v1588
        %v2092 = vsel %vm1508, %v2091, -inf
        %2093 = vmax.xlane.f32.xlu0 %v2092
        %v2094 = vpop.xlane.xlu0 %2093
        %v2095 = vsub.f32 %v2091, %v2094
        %v2096 = vmul.f32 %v2095, 1.442695
        %v2097 = vpow.pop %v2096
        %v2098 = vsel %vm1508, %v2097, 0.0
        %2099 = vadd.xlane.f32.xlu0 %v2098
        %v2100 = vpop.xlane.xlu0 %2099
        %v2101 = vrcp.pop %v2100
        %v2102 = vmul.f32 %v2097, %v2101
        %2103 = vrot.lane.b32.xlu0 %v1502, 40
        %v2104 = vpop.permute.xlu0 %2103
        %v2107 = vsel %vm1508, %v2102, 0
        %2109 = vmatprep.subr.mxu0 0.0
        %2110 = vmatpush1.msra.mxu0 %v2104
        %2111 = vmatprep.subr.mxu0 0.0
        %2112 = vmatpush1.msra.mxu0 0.0
        %2113 = vmatprep.subr.mxu0 0.0
        %2114 = vmatpush1.msra.mxu0 0.0
        %2115 = vmatprep.subr.mxu0 0.0
        %2116 = vmatpush1.msra.mxu0 0.0
        %2117 = vmatprep.subr.mxu0 0.0
        %2118 = vmatpush1.msra.mxu0 0.0
        %2119 = vmatprep.subr.mxu0 0.0
        %2120 = vmatpush1.msra.mxu0 0.0
        %2121 = vmatprep.subr.mxu0 0.0
        %2122 = vmatpush1.msra.mxu0 0.0
        %2123 = vmatprep.subr.mxu0 0.0
        %2124 = vmatpush1.msra.mxu0 0.0
        %2125 = vmatprep.subr.mxu0 0.0
        %2126 = vmatpush1.msra.mxu0 0.0
        %2127 = vmatprep.subr.mxu0 0.0
        %2128 = vmatpush1.msra.mxu0 0.0
        %2129 = vmatprep.subr.mxu0 0.0
        %2130 = vmatpush1.msra.mxu0 0.0
        %2131 = vmatprep.subr.mxu0 0.0
        %2132 = vmatpush1.msra.mxu0 0.0
        %2133 = vmatprep.subr.mxu0 0.0
        %2134 = vmatpush1.msra.mxu0 0.0
        %2135 = vmatprep.subr.mxu0 0.0
        %2136 = vmatpush1.msra.mxu0 0.0
        %2137 = vmatprep.subr.mxu0 0.0
        %2138 = vmatpush1.msra.mxu0 0.0
        %2139 = vmatprep.subr.mxu0 0.0
        %2140 = vmatpush1.msra.mxu0 0.0
        %2141 = vmatprep.subr.mxu0 0.0
        %2142 = vmatpush1.msra.mxu0 0.0
        %2143 = vmatprep.subr.mxu0 0.0
        %2144 = vmatpush1.msra.mxu0 0.0
        %2145 = vmatprep.subr.mxu0 0.0
        %2146 = vmatpush1.msra.mxu0 0.0
        %2147 = vmatprep.subr.mxu0 0.0
        %2148 = vmatpush1.msra.mxu0 0.0
        %2149 = vmatprep.subr.mxu0 0.0
        %2150 = vmatpush1.msra.mxu0 0.0
        %2151 = vmatprep.subr.mxu0 0.0
        %2152 = vmatpush1.msra.mxu0 0.0
        %2153 = vmatprep.subr.mxu0 0.0
        %2154 = vmatpush1.msra.mxu0 0.0
        %2155 = vmatprep.subr.mxu0 0.0
        %2156 = vmatpush1.msra.mxu0 0.0
        %2157 = vmatprep.subr.mxu0 0.0
        %2158 = vmatpush1.msra.mxu0 0.0
        %2159 = vmatprep.subr.mxu0 0.0
        %2160 = vmatpush1.msra.mxu0 0.0
        %2161 = vmatprep.subr.mxu0 0.0
        %2162 = vmatpush1.msra.mxu0 0.0
        %2163 = vmatprep.subr.mxu0 0.0
        %2164 = vmatpush1.msra.mxu0 0.0
        %2165 = vmatprep.subr.mxu0 0.0
        %2166 = vmatpush1.msra.mxu0 0.0
        %2167 = vmatprep.subr.mxu0 0.0
        %2168 = vmatpush1.msra.mxu0 0.0
        %2169 = vmatprep.subr.mxu0 0.0
        %2170 = vmatpush1.msra.mxu0 0.0
        %2171 = vmatprep.subr.mxu0 0.0
        %2172 = vmatpush1.msra.mxu0 0.0
        %2173 = vmatprep.mubr.f32.mxu0 0.0
        %2174 = vmatmul.mubr.f32.gmra.mrb[0].mxu0 %v2107
        %v2175 = vpop.f32.mrb[0].mxu0
        %v2176 = vadd.f32 0.0, %v2175
        %v2177 = vpop.f32.mrb[0].mxu0
        %2178 = vdwg.mxu0
        %2180 = vrot.lane.b32.xlu0 %v1842, 8
        %v2181 = vpop.permute.xlu0 %2180
        %2184 = vrot.lane.b32.xlu0 %v2009, 16
        %v2185 = vpop.permute.xlu0 %2184
        %2188 = vrot.lane.b32.xlu0 %v2176, 24
        %v2189 = vpop.permute.xlu0 %2188
        %v2191 = vsel %vm1508, %v1675, %v2181
        %vm2192 = vcmask 130048
        %v2193 = vsel %vm2192, %v2191, %v2185
        %vm2194 = vcmask 195584
        %v2195 = vsel %vm2194, %v2193, %v2189
        %v2196 = vld [vmem:[%s27] sm:$0xff]
        %v2197 = vld [vmem:[%s27 + $0x8] sm:$0xff]
        %v2198 = vld [vmem:[%s27 + $0x10] sm:$0xff]
        %v2199 = vld [vmem:[%s27 + $0x18] sm:$0xff]
        %v2200 = vld [vmem:[%s29] sm:$0x1]
        %v2202 = vlaneseq
        %v2203 = vshrl.u32 %v2202, 7
        %v2204 = vsub.s32 0, %v2203
        %v2205 = vrot.slane %v2200, %v2204
        %v2208 = vsel %vm1267, %v2195, 0
        %2210 = vmatprep.subr.mxu0 0.0
        %2211 = vmatpush1.msra.mxu0 %v2196
        %2212 = vmatprep.subr.mxu0 0.0
        %2213 = vmatpush1.msra.mxu0 %v2197
        %2214 = vmatprep.subr.mxu0 0.0
        %2215 = vmatpush1.msra.mxu0 %v2198
        %2216 = vmatprep.subr.mxu0 0.0
        %2217 = vmatpush1.msra.mxu0 %v2199
        %2218 = vmatprep.subr.mxu0 0.0
        %2219 = vmatpush1.msra.mxu0 0.0
        %2220 = vmatprep.subr.mxu0 0.0
        %2221 = vmatpush1.msra.mxu0 0.0
        %2222 = vmatprep.subr.mxu0 0.0
        %2223 = vmatpush1.msra.mxu0 0.0
        %2224 = vmatprep.subr.mxu0 0.0
        %2225 = vmatpush1.msra.mxu0 0.0
        %2226 = vmatprep.subr.mxu0 0.0
        %2227 = vmatpush1.msra.mxu0 0.0
        %2228 = vmatprep.subr.mxu0 0.0
        %2229 = vmatpush1.msra.mxu0 0.0
        %2230 = vmatprep.subr.mxu0 0.0
        %2231 = vmatpush1.msra.mxu0 0.0
        %2232 = vmatprep.subr.mxu0 0.0
        %2233 = vmatpush1.msra.mxu0 0.0
        %2234 = vmatprep.subr.mxu0 0.0
        %2235 = vmatpush1.msra.mxu0 0.0
        %2236 = vmatprep.subr.mxu0 0.0
        %2237 = vmatpush1.msra.mxu0 0.0
        %2238 = vmatprep.subr.mxu0 0.0
        %2239 = vmatpush1.msra.mxu0 0.0
        %2240 = vmatprep.subr.mxu0 0.0
        %2241 = vmatpush1.msra.mxu0 0.0
        %2242 = vmatprep.subr.mxu0 0.0
        %2243 = vmatpush1.msra.mxu0 0.0
        %2244 = vmatprep.subr.mxu0 0.0
        %2245 = vmatpush1.msra.mxu0 0.0
        %2246 = vmatprep.subr.mxu0 0.0
        %2247 = vmatpush1.msra.mxu0 0.0
        %2248 = vmatprep.subr.mxu0 0.0
        %2249 = vmatpush1.msra.mxu0 0.0
        %2250 = vmatprep.subr.mxu0 0.0
        %2251 = vmatpush1.msra.mxu0 0.0
        %2252 = vmatprep.subr.mxu0 0.0
        %2253 = vmatpush1.msra.mxu0 0.0
        %2254 = vmatprep.subr.mxu0 0.0
        %2255 = vmatpush1.msra.mxu0 0.0
        %2256 = vmatprep.subr.mxu0 0.0
        %2257 = vmatpush1.msra.mxu0 0.0
        %2258 = vmatprep.subr.mxu0 0.0
        %2259 = vmatpush1.msra.mxu0 0.0
        %2260 = vmatprep.subr.mxu0 0.0
        %2261 = vmatpush1.msra.mxu0 0.0
        %2262 = vmatprep.subr.mxu0 0.0
        %2263 = vmatpush1.msra.mxu0 0.0
        %2264 = vmatprep.subr.mxu0 0.0
        %2265 = vmatpush1.msra.mxu0 0.0
        %2266 = vmatprep.subr.mxu0 0.0
        %2267 = vmatpush1.msra.mxu0 0.0
        %2268 = vmatprep.subr.mxu0 0.0
        %2269 = vmatpush1.msra.mxu0 0.0
        %2270 = vmatprep.subr.mxu0 0.0
        %2271 = vmatpush1.msra.mxu0 0.0
        %2272 = vmatprep.subr.mxu0 0.0
        %2273 = vmatpush1.msra.mxu0 0.0
        %2274 = vmatprep.mubr.f32.mxu0 0.0
        %2275 = vmatmul.mubr.f32.gmra.mrb[0].mxu0 %v2208
        %v2276 = vpop.f32.mrb[0].mxu0
        %v2277 = vadd.f32 %v2205, %v2276
        %v2278 = vpop.f32.mrb[0].mxu0
        %2279 = vdwg.mxu0
        %v2280 = vadd.f32 %v1388, %v2277
        %v2281 = vsel %vm1267, %v2280, 0.0
        %2282 = vadd.xlane.f32.xlu0 %v2281
        %v2283 = vpop.xlane.xlu0 %2282
        %v2284 = vmul.f32 %v2283, %v1271
        %v2285 = vsub.f32 %v2280, %v2284
        %v2286 = vmul.f32 %v2285, %v2285
        %v2287 = vsel %vm1267, %v2286, 0.0
        %2288 = vadd.xlane.f32.xlu0 %v2287
        %v2289 = vpop.xlane.xlu0 %2288
        %v2290 = vmul.f32 %v2289, %v1271
        %v2291 = vadd.f32 %v2290, 1e-12
        %v2292 = vrsqrt.pop %v2291
        %v2293 = vmul.f32 %v2285, %v2292
        %v2294 = vld [vmem:[%s43] sm:$0x1]
        %v2296 = vlaneseq
        %v2297 = vshrl.u32 %v2296, 7
        %v2298 = vsub.s32 0, %v2297
        %v2299 = vrot.slane %v2294, %v2298
        %v2301 = vmul.f32 %v2293, %v2299
        %v2302 = vld [vmem:[%s45] sm:$0x1]
        %v2304 = vlaneseq
        %v2305 = vshrl.u32 %v2304, 7
        %v2306 = vsub.s32 0, %v2305
        %v2307 = vrot.slane %v2302, %v2306
        %v2309 = vadd.f32 %v2301, %v2307
        %v2310 = vld [vmem:[%s35] sm:$0xff]
        %v2311 = vld [vmem:[%s35 + $0x8] sm:$0xff]
        %v2312 = vld [vmem:[%s35 + $0x10] sm:$0xff]
        %v2313 = vld [vmem:[%s35 + $0x18] sm:$0xff]
        %v2314 = vld [vmem:[%s37] sm:$0x1]
        %v2316 = vlaneseq
        %v2317 = vshrl.u32 %v2316, 7
        %v2318 = vsub.s32 0, %v2317
        %v2319 = vrot.slane %v2314, %v2318
        %v2322 = vsel %vm1267, %v2309, 0
        %2324 = vmatprep.subr.mxu0 0.0
        %2325 = vmatpush1.msra.mxu0 %v2310
        %2326 = vmatprep.subr.mxu0 0.0
        %2327 = vmatpush1.msra.mxu0 %v2311
        %2328 = vmatprep.subr.mxu0 0.0
        %2329 = vmatpush1.msra.mxu0 %v2312
        %2330 = vmatprep.subr.mxu0 0.0
        %2331 = vmatpush1.msra.mxu0 %v2313
        %2332 = vmatprep.subr.mxu0 0.0
        %2333 = vmatpush1.msra.mxu0 0.0
        %2334 = vmatprep.subr.mxu0 0.0
        %2335 = vmatpush1.msra.mxu0 0.0
        %2336 = vmatprep.subr.mxu0 0.0
        %2337 = vmatpush1.msra.mxu0 0.0
        %2338 = vmatprep.subr.mxu0 0.0
        %2339 = vmatpush1.msra.mxu0 0.0
        %2340 = vmatprep.subr.mxu0 0.0
        %2341 = vmatpush1.msra.mxu0 0.0
        %2342 = vmatprep.subr.mxu0 0.0
        %2343 = vmatpush1.msra.mxu0 0.0
        %2344 = vmatprep.subr.mxu0 0.0
        %2345 = vmatpush1.msra.mxu0 0.0
        %2346 = vmatprep.subr.mxu0 0.0
        %2347 = vmatpush1.msra.mxu0 0.0
        %2348 = vmatprep.subr.mxu0 0.0
        %2349 = vmatpush1.msra.mxu0 0.0
        %2350 = vmatprep.subr.mxu0 0.0
        %2351 = vmatpush1.msra.mxu0 0.0
        %2352 = vmatprep.subr.mxu0 0.0
        %2353 = vmatpush1.msra.mxu0 0.0
        %2354 = vmatprep.subr.mxu0 0.0
        %2355 = vmatpush1.msra.mxu0 0.0
        %2356 = vmatprep.subr.mxu0 0.0
        %2357 = vmatpush1.msra.mxu0 0.0
        %2358 = vmatprep.subr.mxu0 0.0
        %2359 = vmatpush1.msra.mxu0 0.0
        %2360 = vmatprep.subr.mxu0 0.0
        %2361 = vmatpush1.msra.mxu0 0.0
        %2362 = vmatprep.subr.mxu0 0.0
        %2363 = vmatpush1.msra.mxu0 0.0
        %2364 = vmatprep.subr.mxu0 0.0
        %2365 = vmatpush1.msra.mxu0 0.0
        %2366 = vmatprep.subr.mxu0 0.0
        %2367 = vmatpush1.msra.mxu0 0.0
        %2368 = vmatprep.subr.mxu0 0.0
        %2369 = vmatpush1.msra.mxu0 0.0
        %2370 = vmatprep.subr.mxu0 0.0
        %2371 = vmatpush1.msra.mxu0 0.0
        %2372 = vmatprep.subr.mxu0 0.0
        %2373 = vmatpush1.msra.mxu0 0.0
        %2374 = vmatprep.subr.mxu0 0.0
        %2375 = vmatpush1.msra.mxu0 0.0
        %2376 = vmatprep.subr.mxu0 0.0
        %2377 = vmatpush1.msra.mxu0 0.0
        %2378 = vmatprep.subr.mxu0 0.0
        %2379 = vmatpush1.msra.mxu0 0.0
        %2380 = vmatprep.subr.mxu0 0.0
        %2381 = vmatpush1.msra.mxu0 0.0
        %2382 = vmatprep.subr.mxu0 0.0
        %2383 = vmatpush1.msra.mxu0 0.0
        %2384 = vmatprep.subr.mxu0 0.0
        %2385 = vmatpush1.msra.mxu0 0.0
        %2386 = vmatprep.subr.mxu0 0.0
        %2387 = vmatpush1.msra.mxu0 0.0
        %2388 = vmatprep.mubr.f32.mxu0 0.0
        %2389 = vmatmul.mubr.f32.gmra.mrb[0].mxu0 %v2322
        %v2390 = vpop.f32.mrb[0].mxu0
        %v2391 = vadd.f32 %v2319, %v2390
        %v2392 = vpop.f32.mrb[0].mxu0
        %2393 = vdwg.mxu0
        %v2394 = vmul.f32 %v2391, 0.5
        %v2395 = vmul.f32 %v2391, 0.70710677
        %v2396 = verf.f32.pop %v2395
        %v2397 = vadd.f32 %v2396, 1.0
        %v2398 = vmul.f32 %v2394, %v2397
        %v2399 = vld [vmem:[%s39] sm:$0xff]
        %v2400 = vld [vmem:[%s39 + $0x8] sm:$0xff]
        %v2401 = vld [vmem:[%s39 + $0x10] sm:$0xff]
        %v2402 = vld [vmem:[%s39 + $0x18] sm:$0xff]
        %v2403 = vld [vmem:[%s39 + $0x20] sm:$0xff]
        %v2404 = vld [vmem:[%s39 + $0x28] sm:$0xff]
        %v2405 = vld [vmem:[%s39 + $0x30] sm:$0xff]
        %v2406 = vld [vmem:[%s39 + $0x38] sm:$0xff]
        %v2407 = vld [vmem:[%s39 + $0x40] sm:$0xff]
        %v2408 = vld [vmem:[%s39 + $0x48] sm:$0xff]
        %v2409 = vld [vmem:[%s39 + $0x50] sm:$0xff]
        %v2410 = vld [vmem:[%s39 + $0x58] sm:$0xff]
        %v2411 = vld [vmem:[%s39 + $0x60] sm:$0xff]
        %v2412 = vld [vmem:[%s39 + $0x68] sm:$0xff]
        %v2413 = vld [vmem:[%s39 + $0x70] sm:$0xff]
        %v2414 = vld [vmem:[%s39 + $0x78] sm:$0xff]
        %v2415 = vld [vmem:[%s41] sm:$0x1]
        %v2417 = vlaneseq
        %v2418 = vshrl.u32 %v2417, 7
        %v2419 = vsub.s32 0, %v2418
        %v2420 = vrot.slane %v2415, %v2419
        %2422 = vmatprep.subr.mxu0 0.0
        %2423 = vmatpush1.msra.mxu0 %v2399
        %2424 = vmatprep.subr.mxu0 0.0
        %2425 = vmatpush1.msra.mxu0 %v2400
        %2426 = vmatprep.subr.mxu0 0.0
        %2427 = vmatpush1.msra.mxu0 %v2401
        %2428 = vmatprep.subr.mxu0 0.0
        %2429 = vmatpush1.msra.mxu0 %v2402
        %2430 = vmatprep.subr.mxu0 0.0
        %2431 = vmatpush1.msra.mxu0 %v2403
        %2432 = vmatprep.subr.mxu0 0.0
        %2433 = vmatpush1.msra.mxu0 %v2404
        %2434 = vmatprep.subr.mxu0 0.0
        %2435 = vmatpush1.msra.mxu0 %v2405
        %2436 = vmatprep.subr.mxu0 0.0
        %2437 = vmatpush1.msra.mxu0 %v2406
        %2438 = vmatprep.subr.mxu0 0.0
        %2439 = vmatpush1.msra.mxu0 %v2407
        %2440 = vmatprep.subr.mxu0 0.0
        %2441 = vmatpush1.msra.mxu0 %v2408
        %2442 = vmatprep.subr.mxu0 0.0
        %2443 = vmatpush1.msra.mxu0 %v2409
        %2444 = vmatprep.subr.mxu0 0.0
        %2445 = vmatpush1.msra.mxu0 %v2410
        %2446 = vmatprep.subr.mxu0 0.0
        %2447 = vmatpush1.msra.mxu0 %v2411
        %2448 = vmatprep.subr.mxu0 0.0
        %2449 = vmatpush1.msra.mxu0 %v2412
        %2450 = vmatprep.subr.mxu0 0.0
        %2451 = vmatpush1.msra.mxu0 %v2413
        %2452 = vmatprep.subr.mxu0 0.0
        %2453 = vmatpush1.msra.mxu0 %v2414
        %2454 = vmatprep.subr.mxu0 0.0
        %2455 = vmatpush1.msra.mxu0 0.0
        %2456 = vmatprep.subr.mxu0 0.0
        %2457 = vmatpush1.msra.mxu0 0.0
        %2458 = vmatprep.subr.mxu0 0.0
        %2459 = vmatpush1.msra.mxu0 0.0
        %2460 = vmatprep.subr.mxu0 0.0
        %2461 = vmatpush1.msra.mxu0 0.0
        %2462 = vmatprep.subr.mxu0 0.0
        %2463 = vmatpush1.msra.mxu0 0.0
        %2464 = vmatprep.subr.mxu0 0.0
        %2465 = vmatpush1.msra.mxu0 0.0
        %2466 = vmatprep.subr.mxu0 0.0
        %2467 = vmatpush1.msra.mxu0 0.0
        %2468 = vmatprep.subr.mxu0 0.0
        %2469 = vmatpush1.msra.mxu0 0.0
        %2470 = vmatprep.subr.mxu0 0.0
        %2471 = vmatpush1.msra.mxu0 0.0
        %2472 = vmatprep.subr.mxu0 0.0
        %2473 = vmatpush1.msra.mxu0 0.0
        %2474 = vmatprep.subr.mxu0 0.0
        %2475 = vmatpush1.msra.mxu0 0.0
        %2476 = vmatprep.subr.mxu0 0.0
        %2477 = vmatpush1.msra.mxu0 0.0
        %2478 = vmatprep.subr.mxu0 0.0
        %2479 = vmatpush1.msra.mxu0 0.0
        %2480 = vmatprep.subr.mxu0 0.0
        %2481 = vmatpush1.msra.mxu0 0.0
        %2482 = vmatprep.subr.mxu0 0.0
        %2483 = vmatpush1.msra.mxu0 0.0
        %2484 = vmatprep.subr.mxu0 0.0
        %2485 = vmatpush1.msra.mxu0 0.0
        %2486 = vmatprep.mubr.f32.mxu0 0.0
        %2487 = vmatmul.mubr.f32.gmra.mrb[0].mxu0 %v2398
        %v2488 = vpop.f32.mrb[0].mxu0
        %v2489 = vadd.f32 %v2420, %v2488
        %v2490 = vpop.f32.mrb[0].mxu0
        %2491 = vdwg.mxu0
        %v2492 = vadd.f32 %v2280, %v2489
        %v2493 = vsel %vm1267, %v2492, 0.0
        %2494 = vadd.xlane.f32.xlu0 %v2493
        %v2495 = vpop.xlane.xlu0 %2494
        %v2496 = vmul.f32 %v2495, %v1271
        %v2497 = vsub.f32 %v2492, %v2496
        %v2498 = vmul.f32 %v2497, %v2497
        %v2499 = vsel %vm1267, %v2498, 0.0
        %2500 = vadd.xlane.f32.xlu0 %v2499
        %v2501 = vpop.xlane.xlu0 %2500
        %v2502 = vmul.f32 %v2501, %v1271
        %v2503 = vadd.f32 %v2502, 1e-12
        %v2504 = vrsqrt.pop %v2503
        %v2505 = vmul.f32 %v2497, %v2504
        %v2506 = vmul.f32 %v2505, %v1410
        %v2507 = vadd.f32 %v2506, %v1418
        %v2509 = vsel %vm1267, %v2507, 0
        %2511 = vmatprep.subr.mxu0 0.0
        %2512 = vmatpush1.msra.mxu0 %v1421
        %2513 = vmatprep.subr.mxu0 0.0
        %2514 = vmatpush1.msra.mxu0 %v1422
        %2515 = vmatprep.subr.mxu0 0.0
        %2516 = vmatpush1.msra.mxu0 %v1423
        %2517 = vmatprep.subr.mxu0 0.0
        %2518 = vmatpush1.msra.mxu0 %v1424
        %2519 = vmatprep.subr.mxu0 0.0
        %2520 = vmatpush1.msra.mxu0 0.0
        %2521 = vmatprep.subr.mxu0 0.0
        %2522 = vmatpush1.msra.mxu0 0.0
        %2523 = vmatprep.subr.mxu0 0.0
        %2524 = vmatpush1.msra.mxu0 0.0
        %2525 = vmatprep.subr.mxu0 0.0
        %2526 = vmatpush1.msra.mxu0 0.0
        %2527 = vmatprep.subr.mxu0 0.0
        %2528 = vmatpush1.msra.mxu0 0.0
        %2529 = vmatprep.subr.mxu0 0.0
        %2530 = vmatpush1.msra.mxu0 0.0
        %2531 = vmatprep.subr.mxu0 0.0
        %2532 = vmatpush1.msra.mxu0 0.0
        %2533 = vmatprep.subr.mxu0 0.0
        %2534 = vmatpush1.msra.mxu0 0.0
        %2535 = vmatprep.subr.mxu0 0.0
        %2536 = vmatpush1.msra.mxu0 0.0
        %2537 = vmatprep.subr.mxu0 0.0
        %2538 = vmatpush1.msra.mxu0 0.0
        %2539 = vmatprep.subr.mxu0 0.0
        %2540 = vmatpush1.msra.mxu0 0.0
        %2541 = vmatprep.subr.mxu0 0.0
        %2542 = vmatpush1.msra.mxu0 0.0
        %2543 = vmatprep.subr.mxu0 0.0
        %2544 = vmatpush1.msra.mxu0 0.0
        %2545 = vmatprep.subr.mxu0 0.0
        %2546 = vmatpush1.msra.mxu0 0.0
        %2547 = vmatprep.subr.mxu0 0.0
        %2548 = vmatpush1.msra.mxu0 0.0
        %2549 = vmatprep.subr.mxu0 0.0
        %2550 = vmatpush1.msra.mxu0 0.0
        %2551 = vmatprep.subr.mxu0 0.0
        %2552 = vmatpush1.msra.mxu0 0.0
        %2553 = vmatprep.subr.mxu0 0.0
        %2554 = vmatpush1.msra.mxu0 0.0
        %2555 = vmatprep.subr.mxu0 0.0
        %2556 = vmatpush1.msra.mxu0 0.0
        %2557 = vmatprep.subr.mxu0 0.0
        %2558 = vmatpush1.msra.mxu0 0.0
        %2559 = vmatprep.subr.mxu0 0.0
        %2560 = vmatpush1.msra.mxu0 0.0
        %2561 = vmatprep.subr.mxu0 0.0
        %2562 = vmatpush1.msra.mxu0 0.0
        %2563 = vmatprep.subr.mxu0 0.0
        %2564 = vmatpush1.msra.mxu0 0.0
        %2565 = vmatprep.subr.mxu0 0.0
        %2566 = vmatpush1.msra.mxu0 0.0
        %2567 = vmatprep.subr.mxu0 0.0
        %2568 = vmatpush1.msra.mxu0 0.0
        %2569 = vmatprep.subr.mxu0 0.0
        %2570 = vmatpush1.msra.mxu0 0.0
        %2571 = vmatprep.subr.mxu0 0.0
        %2572 = vmatpush1.msra.mxu0 0.0
        %2573 = vmatprep.subr.mxu0 0.0
        %2574 = vmatpush1.msra.mxu0 0.0
        %2575 = vmatprep.mubr.f32.mxu0 0.0
        %2576 = vmatmul.mubr.f32.gmra.mrb[0].mxu0 %v2509
        %v2577 = vpop.f32.mrb[0].mxu0
        %v2578 = vadd.f32 %v1430, %v2577
        %v2579 = vpop.f32.mrb[0].mxu0
        %2580 = vdwg.mxu0
        %2582 = vrot.lane.b32.xlu0 %v2578, 96
        %v2583 = vpop.permute.xlu0 %2582
        %v2584 = vsel %vm1508, %v2578, 0
        %v2586 = vsel %vm1508, %v2583, 0
        %2588 = vmatprep.subr.mxu0 0.0
        %2589 = vmatpush1.xpose.msra.mxu0 %v2586
        %2590 = vmatprep.subr.mxu0 0.0
        %2591 = vmatpush1.xpose.msra.mxu0 0.0
        %2592 = vmatprep.subr.mxu0 0.0
        %2593 = vmatpush1.xpose.msra.mxu0 0.0
        %2594 = vmatprep.subr.mxu0 0.0
        %2595 = vmatpush1.xpose.msra.mxu0 0.0
        %2596 = vmatprep.subr.mxu0 0.0
        %2597 = vmatpush1.xpose.msra.mxu0 0.0
        %2598 = vmatprep.subr.mxu0 0.0
        %2599 = vmatpush1.xpose.msra.mxu0 0.0
        %2600 = vmatprep.subr.mxu0 0.0
        %2601 = vmatpush1.xpose.msra.mxu0 0.0
        %2602 = vmatprep.subr.mxu0 0.0
        %2603 = vmatpush1.xpose.msra.mxu0 0.0
        %2604 = vmatprep.subr.mxu0 0.0
        %2605 = vmatpush1.xpose.msra.mxu0 0.0
        %2606 = vmatprep.subr.mxu0 0.0
        %2607 = vmatpush1.xpose.msra.mxu0 0.0
        %2608 = vmatprep.subr.mxu0 0.0
        %2609 = vmatpush1.xpose.msra.mxu0 0.0
        %2610 = vmatprep.subr.mxu0 0.0
        %2611 = vmatpush1.xpose.msra.mxu0 0.0
        %2612 = vmatprep.subr.mxu0 0.0
        %2613 = vmatpush1.xpose.msra.mxu0 0.0
        %2614 = vmatprep.subr.mxu0 0.0
        %2615 = vmatpush1.xpose.msra.mxu0 0.0
        %2616 = vmatprep.subr.mxu0 0.0
        %2617 = vmatpush1.xpose.msra.mxu0 0.0
        %2618 = vmatprep.subr.mxu0 0.0
        %2619 = vmatpush1.xpose.msra.mxu0 0.0
        %2620 = vmatprep.subr.mxu0 0.0
        %2621 = vmatpush1.xpose.msra.mxu0 0.0
        %2622 = vmatprep.subr.mxu0 0.0
        %2623 = vmatpush1.xpose.msra.mxu0 0.0
        %2624 = vmatprep.subr.mxu0 0.0
        %2625 = vmatpush1.xpose.msra.mxu0 0.0
        %2626 = vmatprep.subr.mxu0 0.0
        %2627 = vmatpush1.xpose.msra.mxu0 0.0
        %2628 = vmatprep.subr.mxu0 0.0
        %2629 = vmatpush1.xpose.msra.mxu0 0.0
        %2630 = vmatprep.subr.mxu0 0.0
        %2631 = vmatpush1.xpose.msra.mxu0 0.0
        %2632 = vmatprep.subr.mxu0 0.0
        %2633 = vmatpush1.xpose.msra.mxu0 0.0
        %2634 = vmatprep.subr.mxu0 0.0
        %2635 = vmatpush1.xpose.msra.mxu0 0.0
        %2636 = vmatprep.subr.mxu0 0.0
        %2637 = vmatpush1.xpose.msra.mxu0 0.0
        %2638 = vmatprep.subr.mxu0 0.0
        %2639 = vmatpush1.xpose.msra.mxu0 0.0
        %2640 = vmatprep.subr.mxu0 0.0
        %2641 = vmatpush1.xpose.msra.mxu0 0.0
        %2642 = vmatprep.subr.mxu0 0.0
        %2643 = vmatpush1.xpose.msra.mxu0 0.0
        %2644 = vmatprep.subr.mxu0 0.0
        %2645 = vmatpush1.xpose.msra.mxu0 0.0
        %2646 = vmatprep.subr.mxu0 0.0
        %2647 = vmatpush1.xpose.msra.mxu0 0.0
        %2648 = vmatprep.subr.mxu0 0.0
        %2649 = vmatpush1.xpose.msra.mxu0 0.0
        %2650 = vmatprep.subr.mxu0 0.0
        %2651 = vmatpush1.xpose.msra.mxu0 0.0
        %2652 = vmatprep.mubr.f32.mxu0 0.0
        %2653 = vmatmul.mubr.f32.gmra.mrb[0].mxu0 %v2584
        %v2654 = vpop.f32.mrb[0].mxu0
        %v2655 = vadd.f32 0.0, %v2654
        %v2656 = vpop.f32.mrb[0].mxu0
        %2657 = vdwg.mxu0
        %v2658 = vmul.f32 %v2655, 0.35355338
        %v2659 = vadd.f32 %v2658, %v1588
        %v2660 = vsel %vm1508, %v2659, -inf
        %2661 = vmax.xlane.f32.xlu0 %v2660
        %v2662 = vpop.xlane.xlu0 %2661
        %v2663 = vsub.f32 %v2659, %v2662
        %v2664 = vmul.f32 %v2663, 1.442695
        %v2665 = vpow.pop %v2664
        %v2666 = vsel %vm1508, %v2665, 0.0
        %2667 = vadd.xlane.f32.xlu0 %v2666
        %v2668 = vpop.xlane.xlu0 %2667
        %v2669 = vrcp.pop %v2668
        %v2670 = vmul.f32 %v2665, %v2669
        %2671 = vrot.lane.b32.xlu0 %v2578, 64
        %v2672 = vpop.permute.xlu0 %2671
        %v2675 = vsel %vm1508, %v2670, 0
        %2677 = vmatprep.subr.mxu0 0.0
        %2678 = vmatpush1.msra.mxu0 %v2672
        %2679 = vmatprep.subr.mxu0 0.0
        %2680 = vmatpush1.msra.mxu0 0.0
        %2681 = vmatprep.subr.mxu0 0.0
        %2682 = vmatpush1.msra.mxu0 0.0
        %2683 = vmatprep.subr.mxu0 0.0
        %2684 = vmatpush1.msra.mxu0 0.0
        %2685 = vmatprep.subr.mxu0 0.0
        %2686 = vmatpush1.msra.mxu0 0.0
        %2687 = vmatprep.subr.mxu0 0.0
        %2688 = vmatpush1.msra.mxu0 0.0
        %2689 = vmatprep.subr.mxu0 0.0
        %2690 = vmatpush1.msra.mxu0 0.0
        %2691 = vmatprep.subr.mxu0 0.0
        %2692 = vmatpush1.msra.mxu0 0.0
        %2693 = vmatprep.subr.mxu0 0.0
        %2694 = vmatpush1.msra.mxu0 0.0
        %2695 = vmatprep.subr.mxu0 0.0
        %2696 = vmatpush1.msra.mxu0 0.0
        %2697 = vmatprep.subr.mxu0 0.0
        %2698 = vmatpush1.msra.mxu0 0.0
        %2699 = vmatprep.subr.mxu0 0.0
        %2700 = vmatpush1.msra.mxu0 0.0
        %2701 = vmatprep.subr.mxu0 0.0
        %2702 = vmatpush1.msra.mxu0 0.0
        %2703 = vmatprep.subr.mxu0 0.0
        %2704 = vmatpush1.msra.mxu0 0.0
        %2705 = vmatprep.subr.mxu0 0.0
        %2706 = vmatpush1.msra.mxu0 0.0
        %2707 = vmatprep.subr.mxu0 0.0
        %2708 = vmatpush1.msra.mxu0 0.0
        %2709 = vmatprep.subr.mxu0 0.0
        %2710 = vmatpush1.msra.mxu0 0.0
        %2711 = vmatprep.subr.mxu0 0.0
        %2712 = vmatpush1.msra.mxu0 0.0
        %2713 = vmatprep.subr.mxu0 0.0
        %2714 = vmatpush1.msra.mxu0 0.0
        %2715 = vmatprep.subr.mxu0 0.0
        %2716 = vmatpush1.msra.mxu0 0.0
        %2717 = vmatprep.subr.mxu0 0.0
        %2718 = vmatpush1.msra.mxu0 0.0
        %2719 = vmatprep.subr.mxu0 0.0
        %2720 = vmatpush1.msra.mxu0 0.0
        %2721 = vmatprep.subr.mxu0 0.0
        %2722 = vmatpush1.msra.mxu0 0.0
        %2723 = vmatprep.subr.mxu0 0.0
        %2724 = vmatpush1.msra.mxu0 0.0
        %2725 = vmatprep.subr.mxu0 0.0
        %2726 = vmatpush1.msra.mxu0 0.0
        %2727 = vmatprep.subr.mxu0 0.0
        %2728 = vmatpush1.msra.mxu0 0.0
        %2729 = vmatprep.subr.mxu0 0.0
        %2730 = vmatpush1.msra.mxu0 0.0
        %2731 = vmatprep.subr.mxu0 0.0
        %2732 = vmatpush1.msra.mxu0 0.0
        %2733 = vmatprep.subr.mxu0 0.0
        %2734 = vmatpush1.msra.mxu0 0.0
        %2735 = vmatprep.subr.mxu0 0.0
        %2736 = vmatpush1.msra.mxu0 0.0
        %2737 = vmatprep.subr.mxu0 0.0
        %2738 = vmatpush1.msra.mxu0 0.0
        %2739 = vmatprep.subr.mxu0 0.0
        %2740 = vmatpush1.msra.mxu0 0.0
        %2741 = vmatprep.mubr.f32.mxu0 0.0
        %2742 = vmatmul.mubr.f32.gmra.mrb[0].mxu0 %v2675
        %v2743 = vpop.f32.mrb[0].mxu0
        %v2744 = vadd.f32 0.0, %v2743
        %v2745 = vpop.f32.mrb[0].mxu0
        %2746 = vdwg.mxu0
        %2747 = vrot.lane.b32.xlu0 %v2578, 120
        %v2748 = vpop.permute.xlu0 %2747
        %2749 = vrot.lane.b32.xlu0 %v2578, 88
        %v2750 = vpop.permute.xlu0 %2749
        %v2751 = vsel %vm1508, %v2748, 0
        %v2753 = vsel %vm1508, %v2750, 0
        %2755 = vmatprep.subr.mxu0 0.0
        %2756 = vmatpush1.xpose.msra.mxu0 %v2753
        %2757 = vmatprep.subr.mxu0 0.0
        %2758 = vmatpush1.xpose.msra.mxu0 0.0
        %2759 = vmatprep.subr.mxu0 0.0
        %2760 = vmatpush1.xpose.msra.mxu0 0.0
        %2761 = vmatprep.subr.mxu0 0.0
        %2762 = vmatpush1.xpose.msra.mxu0 0.0
        %2763 = vmatprep.subr.mxu0 0.0
        %2764 = vmatpush1.xpose.msra.mxu0 0.0
        %2765 = vmatprep.subr.mxu0 0.0
        %2766 = vmatpush1.xpose.msra.mxu0 0.0
        %2767 = vmatprep.subr.mxu0 0.0
        %2768 = vmatpush1.xpose.msra.mxu0 0.0
        %2769 = vmatprep.subr.mxu0 0.0
        %2770 = vmatpush1.xpose.msra.mxu0 0.0
        %2771 = vmatprep.subr.mxu0 0.0
        %2772 = vmatpush1.xpose.msra.mxu0 0.0
        %2773 = vmatprep.subr.mxu0 0.0
        %2774 = vmatpush1.xpose.msra.mxu0 0.0
        %2775 = vmatprep.subr.mxu0 0.0
        %2776 = vmatpush1.xpose.msra.mxu0 0.0
        %2777 = vmatprep.subr.mxu0 0.0
        %2778 = vmatpush1.xpose.msra.mxu0 0.0
        %2779 = vmatprep.subr.mxu0 0.0
        %2780 = vmatpush1.xpose.msra.mxu0 0.0
        %2781 = vmatprep.subr.mxu0 0.0
        %2782 = vmatpush1.xpose.msra.mxu0 0.0
        %2783 = vmatprep.subr.mxu0 0.0
        %2784 = vmatpush1.xpose.msra.mxu0 0.0
        %2785 = vmatprep.subr.mxu0 0.0
        %2786 = vmatpush1.xpose.msra.mxu0 0.0
        %2787 = vmatprep.subr.mxu0 0.0
        %2788 = vmatpush1.xpose.msra.mxu0 0.0
        %2789 = vmatprep.subr.mxu0 0.0
        %2790 = vmatpush1.xpose.msra.mxu0 0.0
        %2791 = vmatprep.subr.mxu0 0.0
        %2792 = vmatpush1.xpose.msra.mxu0 0.0
        %2793 = vmatprep.subr.mxu0 0.0
        %2794 = vmatpush1.xpose.msra.mxu0 0.0
        %2795 = vmatprep.subr.mxu0 0.0
        %2796 = vmatpush1.xpose.msra.mxu0 0.0
        %2797 = vmatprep.subr.mxu0 0.0
        %2798 = vmatpush1.xpose.msra.mxu0 0.0
        %2799 = vmatprep.subr.mxu0 0.0
        %2800 = vmatpush1.xpose.msra.mxu0 0.0
        %2801 = vmatprep.subr.mxu0 0.0
        %2802 = vmatpush1.xpose.msra.mxu0 0.0
        %2803 = vmatprep.subr.mxu0 0.0
        %2804 = vmatpush1.xpose.msra.mxu0 0.0
        %2805 = vmatprep.subr.mxu0 0.0
        %2806 = vmatpush1.xpose.msra.mxu0 0.0
        %2807 = vmatprep.subr.mxu0 0.0
        %2808 = vmatpush1.xpose.msra.mxu0 0.0
        %2809 = vmatprep.subr.mxu0 0.0
        %2810 = vmatpush1.xpose.msra.mxu0 0.0
        %2811 = vmatprep.subr.mxu0 0.0
        %2812 = vmatpush1.xpose.msra.mxu0 0.0
        %2813 = vmatprep.subr.mxu0 0.0
        %2814 = vmatpush1.xpose.msra.mxu0 0.0
        %2815 = vmatprep.subr.mxu0 0.0
        %2816 = vmatpush1.xpose.msra.mxu0 0.0
        %2817 = vmatprep.subr.mxu0 0.0
        %2818 = vmatpush1.xpose.msra.mxu0 0.0
        %2819 = vmatprep.mubr.f32.mxu0 0.0
        %2820 = vmatmul.mubr.f32.gmra.mrb[0].mxu0 %v2751
        %v2821 = vpop.f32.mrb[0].mxu0
        %v2822 = vadd.f32 0.0, %v2821
        %v2823 = vpop.f32.mrb[0].mxu0
        %2824 = vdwg.mxu0
        %v2825 = vmul.f32 %v2822, 0.35355338
        %v2826 = vadd.f32 %v2825, %v1588
        %v2827 = vsel %vm1508, %v2826, -inf
        %2828 = vmax.xlane.f32.xlu0 %v2827
        %v2829 = vpop.xlane.xlu0 %2828
        %v2830 = vsub.f32 %v2826, %v2829
        %v2831 = vmul.f32 %v2830, 1.442695
        %v2832 = vpow.pop %v2831
        %v2833 = vsel %vm1508, %v2832, 0.0
        %2834 = vadd.xlane.f32.xlu0 %v2833
        %v2835 = vpop.xlane.xlu0 %2834
        %v2836 = vrcp.pop %v2835
        %v2837 = vmul.f32 %v2832, %v2836
        %2838 = vrot.lane.b32.xlu0 %v2578, 56
        %v2839 = vpop.permute.xlu0 %2838
        %v2842 = vsel %vm1508, %v2837, 0
        %2844 = vmatprep.subr.mxu0 0.0
        %2845 = vmatpush1.msra.mxu0 %v2839
        %2846 = vmatprep.subr.mxu0 0.0
        %2847 = vmatpush1.msra.mxu0 0.0
        %2848 = vmatprep.subr.mxu0 0.0
        %2849 = vmatpush1.msra.mxu0 0.0
        %2850 = vmatprep.subr.mxu0 0.0
        %2851 = vmatpush1.msra.mxu0 0.0
        %2852 = vmatprep.subr.mxu0 0.0
        %2853 = vmatpush1.msra.mxu0 0.0
        %2854 = vmatprep.subr.mxu0 0.0
        %2855 = vmatpush1.msra.mxu0 0.0
        %2856 = vmatprep.subr.mxu0 0.0
        %2857 = vmatpush1.msra.mxu0 0.0
        %2858 = vmatprep.subr.mxu0 0.0
        %2859 = vmatpush1.msra.mxu0 0.0
        %2860 = vmatprep.subr.mxu0 0.0
        %2861 = vmatpush1.msra.mxu0 0.0
        %2862 = vmatprep.subr.mxu0 0.0
        %2863 = vmatpush1.msra.mxu0 0.0
        %2864 = vmatprep.subr.mxu0 0.0
        %2865 = vmatpush1.msra.mxu0 0.0
        %2866 = vmatprep.subr.mxu0 0.0
        %2867 = vmatpush1.msra.mxu0 0.0
        %2868 = vmatprep.subr.mxu0 0.0
        %2869 = vmatpush1.msra.mxu0 0.0
        %2870 = vmatprep.subr.mxu0 0.0
        %2871 = vmatpush1.msra.mxu0 0.0
        %2872 = vmatprep.subr.mxu0 0.0
        %2873 = vmatpush1.msra.mxu0 0.0
        %2874 = vmatprep.subr.mxu0 0.0
        %2875 = vmatpush1.msra.mxu0 0.0
        %2876 = vmatprep.subr.mxu0 0.0
        %2877 = vmatpush1.msra.mxu0 0.0
        %2878 = vmatprep.subr.mxu0 0.0
        %2879 = vmatpush1.msra.mxu0 0.0
        %2880 = vmatprep.subr.mxu0 0.0
        %2881 = vmatpush1.msra.mxu0 0.0
        %2882 = vmatprep.subr.mxu0 0.0
        %2883 = vmatpush1.msra.mxu0 0.0
        %2884 = vmatprep.subr.mxu0 0.0
        %2885 = vmatpush1.msra.mxu0 0.0
        %2886 = vmatprep.subr.mxu0 0.0
        %2887 = vmatpush1.msra.mxu0 0.0
        %2888 = vmatprep.subr.mxu0 0.0
        %2889 = vmatpush1.msra.mxu0 0.0
        %2890 = vmatprep.subr.mxu0 0.0
        %2891 = vmatpush1.msra.mxu0 0.0
        %2892 = vmatprep.subr.mxu0 0.0
        %2893 = vmatpush1.msra.mxu0 0.0
        %2894 = vmatprep.subr.mxu0 0.0
        %2895 = vmatpush1.msra.mxu0 0.0
        %2896 = vmatprep.subr.mxu0 0.0
        %2897 = vmatpush1.msra.mxu0 0.0
        %2898 = vmatprep.subr.mxu0 0.0
        %2899 = vmatpush1.msra.mxu0 0.0
        %2900 = vmatprep.subr.mxu0 0.0
        %2901 = vmatpush1.msra.mxu0 0.0
        %2902 = vmatprep.subr.mxu0 0.0
        %2903 = vmatpush1.msra.mxu0 0.0
        %2904 = vmatprep.subr.mxu0 0.0
        %2905 = vmatpush1.msra.mxu0 0.0
        %2906 = vmatprep.subr.mxu0 0.0
        %2907 = vmatpush1.msra.mxu0 0.0
        %2908 = vmatprep.mubr.f32.mxu0 0.0
        %2909 = vmatmul.mubr.f32.gmra.mrb[0].mxu0 %v2842
        %v2910 = vpop.f32.mrb[0].mxu0
        %v2911 = vadd.f32 0.0, %v2910
        %v2912 = vpop.f32.mrb[0].mxu0
        %2913 = vdwg.mxu0
        %2914 = vrot.lane.b32.xlu0 %v2578, 112
        %v2915 = vpop.permute.xlu0 %2914
        %2916 = vrot.lane.b32.xlu0 %v2578, 80
        %v2917 = vpop.permute.xlu0 %2916
        %v2918 = vsel %vm1508, %v2915, 0
        %v2920 = vsel %vm1508, %v2917, 0
        %2922 = vmatprep.subr.mxu0 0.0
        %2923 = vmatpush1.xpose.msra.mxu0 %v2920
        %2924 = vmatprep.subr.mxu0 0.0
        %2925 = vmatpush1.xpose.msra.mxu0 0.0
        %2926 = vmatprep.subr.mxu0 0.0
        %2927 = vmatpush1.xpose.msra.mxu0 0.0
        %2928 = vmatprep.subr.mxu0 0.0
        %2929 = vmatpush1.xpose.msra.mxu0 0.0
        %2930 = vmatprep.subr.mxu0 0.0
        %2931 = vmatpush1.xpose.msra.mxu0 0.0
        %2932 = vmatprep.subr.mxu0 0.0
        %2933 = vmatpush1.xpose.msra.mxu0 0.0
        %2934 = vmatprep.subr.mxu0 0.0
        %2935 = vmatpush1.xpose.msra.mxu0 0.0
        %2936 = vmatprep.subr.mxu0 0.0
        %2937 = vmatpush1.xpose.msra.mxu0 0.0
        %2938 = vmatprep.subr.mxu0 0.0
        %2939 = vmatpush1.xpose.msra.mxu0 0.0
        %2940 = vmatprep.subr.mxu0 0.0
        %2941 = vmatpush1.xpose.msra.mxu0 0.0
        %2942 = vmatprep.subr.mxu0 0.0
        %2943 = vmatpush1.xpose.msra.mxu0 0.0
        %2944 = vmatprep.subr.mxu0 0.0
        %2945 = vmatpush1.xpose.msra.mxu0 0.0
        %2946 = vmatprep.subr.mxu0 0.0
        %2947 = vmatpush1.xpose.msra.mxu0 0.0
        %2948 = vmatprep.subr.mxu0 0.0
        %2949 = vmatpush1.xpose.msra.mxu0 0.0
        %2950 = vmatprep.subr.mxu0 0.0
        %2951 = vmatpush1.xpose.msra.mxu0 0.0
        %2952 = vmatprep.subr.mxu0 0.0
        %2953 = vmatpush1.xpose.msra.mxu0 0.0
        %2954 = vmatprep.subr.mxu0 0.0
        %2955 = vmatpush1.xpose.msra.mxu0 0.0
        %2956 = vmatprep.subr.mxu0 0.0
        %2957 = vmatpush1.xpose.msra.mxu0 0.0
        %2958 = vmatprep.subr.mxu0 0.0
        %2959 = vmatpush1.xpose.msra.mxu0 0.0
        %2960 = vmatprep.subr.mxu0 0.0
        %2961 = vmatpush1.xpose.msra.mxu0 0.0
        %2962 = vmatprep.subr.mxu0 0.0
        %2963 = vmatpush1.xpose.msra.mxu0 0.0
        %2964 = vmatprep.subr.mxu0 0.0
        %2965 = vmatpush1.xpose.msra.mxu0 0.0
        %2966 = vmatprep.subr.mxu0 0.0
        %2967 = vmatpush1.xpose.msra.mxu0 0.0
        %2968 = vmatprep.subr.mxu0 0.0
        %2969 = vmatpush1.xpose.msra.mxu0 0.0
        %2970 = vmatprep.subr.mxu0 0.0
        %2971 = vmatpush1.xpose.msra.mxu0 0.0
        %2972 = vmatprep.subr.mxu0 0.0
        %2973 = vmatpush1.xpose.msra.mxu0 0.0
        %2974 = vmatprep.subr.mxu0 0.0
        %2975 = vmatpush1.xpose.msra.mxu0 0.0
        %2976 = vmatprep.subr.mxu0 0.0
        %2977 = vmatpush1.xpose.msra.mxu0 0.0
        %2978 = vmatprep.subr.mxu0 0.0
        %2979 = vmatpush1.xpose.msra.mxu0 0.0
        %2980 = vmatprep.subr.mxu0 0.0
        %2981 = vmatpush1.xpose.msra.mxu0 0.0
        %2982 = vmatprep.subr.mxu0 0.0
        %2983 = vmatpush1.xpose.msra.mxu0 0.0
        %2984 = vmatprep.subr.mxu0 0.0
        %2985 = vmatpush1.xpose.msra.mxu0 0.0
        %2986 = vmatprep.mubr.f32.mxu0 0.0
        %2987 = vmatmul.mubr.f32.gmra.mrb[0].mxu0 %v2918
        %v2988 = vpop.f32.mrb[0].mxu0
        %v2989 = vadd.f32 0.0, %v2988
        %v2990 = vpop.f32.mrb[0].mxu0
        %2991 = vdwg.mxu0
        %v2992 = vmul.f32 %v2989, 0.35355338
        %v2993 = vadd.f32 %v2992, %v1588
        %v2994 = vsel %vm1508, %v2993, -inf
        %2995 = vmax.xlane.f32.xlu0 %v2994
        %v2996 = vpop.xlane.xlu0 %2995
        %v2997 = vsub.f32 %v2993, %v2996
        %v2998 = vmul.f32 %v2997, 1.442695
        %v2999 = vpow.pop %v2998
        %v3000 = vsel %vm1508, %v2999, 0.0
        %3001 = vadd.xlane.f32.xlu0 %v3000
        %v3002 = vpop.xlane.xlu0 %3001
        %v3003 = vrcp.pop %v3002
        %v3004 = vmul.f32 %v2999, %v3003
        %3005 = vrot.lane.b32.xlu0 %v2578, 48
        %v3006 = vpop.permute.xlu0 %3005
        %v3009 = vsel %vm1508, %v3004, 0
        %3011 = vmatprep.subr.mxu0 0.0
        %3012 = vmatpush1.msra.mxu0 %v3006
        %3013 = vmatprep.subr.mxu0 0.0
        %3014 = vmatpush1.msra.mxu0 0.0
        %3015 = vmatprep.subr.mxu0 0.0
        %3016 = vmatpush1.msra.mxu0 0.0
        %3017 = vmatprep.subr.mxu0 0.0
        %3018 = vmatpush1.msra.mxu0 0.0
        %3019 = vmatprep.subr.mxu0 0.0
        %3020 = vmatpush1.msra.mxu0 0.0
        %3021 = vmatprep.subr.mxu0 0.0
        %3022 = vmatpush1.msra.mxu0 0.0
        %3023 = vmatprep.subr.mxu0 0.0
        %3024 = vmatpush1.msra.mxu0 0.0
        %3025 = vmatprep.subr.mxu0 0.0
        %3026 = vmatpush1.msra.mxu0 0.0
        %3027 = vmatprep.subr.mxu0 0.0
        %3028 = vmatpush1.msra.mxu0 0.0
        %3029 = vmatprep.subr.mxu0 0.0
        %3030 = vmatpush1.msra.mxu0 0.0
        %3031 = vmatprep.subr.mxu0 0.0
        %3032 = vmatpush1.msra.mxu0 0.0
        %3033 = vmatprep.subr.mxu0 0.0
        %3034 = vmatpush1.msra.mxu0 0.0
        %3035 = vmatprep.subr.mxu0 0.0
        %3036 = vmatpush1.msra.mxu0 0.0
        %3037 = vmatprep.subr.mxu0 0.0
        %3038 = vmatpush1.msra.mxu0 0.0
        %3039 = vmatprep.subr.mxu0 0.0
        %3040 = vmatpush1.msra.mxu0 0.0
        %3041 = vmatprep.subr.mxu0 0.0
        %3042 = vmatpush1.msra.mxu0 0.0
        %3043 = vmatprep.subr.mxu0 0.0
        %3044 = vmatpush1.msra.mxu0 0.0
        %3045 = vmatprep.subr.mxu0 0.0
        %3046 = vmatpush1.msra.mxu0 0.0
        %3047 = vmatprep.subr.mxu0 0.0
        %3048 = vmatpush1.msra.mxu0 0.0
        %3049 = vmatprep.subr.mxu0 0.0
        %3050 = vmatpush1.msra.mxu0 0.0
        %3051 = vmatprep.subr.mxu0 0.0
        %3052 = vmatpush1.msra.mxu0 0.0
        %3053 = vmatprep.subr.mxu0 0.0
        %3054 = vmatpush1.msra.mxu0 0.0
        %3055 = vmatprep.subr.mxu0 0.0
        %3056 = vmatpush1.msra.mxu0 0.0
        %3057 = vmatprep.subr.mxu0 0.0
        %3058 = vmatpush1.msra.mxu0 0.0
        %3059 = vmatprep.subr.mxu0 0.0
        %3060 = vmatpush1.msra.mxu0 0.0
        %3061 = vmatprep.subr.mxu0 0.0
        %3062 = vmatpush1.msra.mxu0 0.0
        %3063 = vmatprep.subr.mxu0 0.0
        %3064 = vmatpush1.msra.mxu0 0.0
        %3065 = vmatprep.subr.mxu0 0.0
        %3066 = vmatpush1.msra.mxu0 0.0
        %3067 = vmatprep.subr.mxu0 0.0
        %3068 = vmatpush1.msra.mxu0 0.0
        %3069 = vmatprep.subr.mxu0 0.0
        %3070 = vmatpush1.msra.mxu0 0.0
        %3071 = vmatprep.subr.mxu0 0.0
        %3072 = vmatpush1.msra.mxu0 0.0
        %3073 = vmatprep.subr.mxu0 0.0
        %3074 = vmatpush1.msra.mxu0 0.0
        %3075 = vmatprep.mubr.f32.mxu0 0.0
        %3076 = vmatmul.mubr.f32.gmra.mrb[0].mxu0 %v3009
        %v3077 = vpop.f32.mrb[0].mxu0
        %v3078 = vadd.f32 0.0, %v3077
        %v3079 = vpop.f32.mrb[0].mxu0
        %3080 = vdwg.mxu0
        %3081 = vrot.lane.b32.xlu0 %v2578, 104
        %v3082 = vpop.permute.xlu0 %3081
        %3083 = vrot.lane.b32.xlu0 %v2578, 72
        %v3084 = vpop.permute.xlu0 %3083
        %v3085 = vsel %vm1508, %v3082, 0
        %v3087 = vsel %vm1508, %v3084, 0
        %3089 = vmatprep.subr.mxu0 0.0
        %3090 = vmatpush1.xpose.msra.mxu0 %v3087
        %3091 = vmatprep.subr.mxu0 0.0
        %3092 = vmatpush1.xpose.msra.mxu0 0.0
        %3093 = vmatprep.subr.mxu0 0.0
        %3094 = vmatpush1.xpose.msra.mxu0 0.0
        %3095 = vmatprep.subr.mxu0 0.0
        %3096 = vmatpush1.xpose.msra.mxu0 0.0
        %3097 = vmatprep.subr.mxu0 0.0
        %3098 = vmatpush1.xpose.msra.mxu0 0.0
        %3099 = vmatprep.subr.mxu0 0.0
        %3100 = vmatpush1.xpose.msra.mxu0 0.0
        %3101 = vmatprep.subr.mxu0 0.0
        %3102 = vmatpush1.xpose.msra.mxu0 0.0
        %3103 = vmatprep.subr.mxu0 0.0
        %3104 = vmatpush1.xpose.msra.mxu0 0.0
        %3105 = vmatprep.subr.mxu0 0.0
        %3106 = vmatpush1.xpose.msra.mxu0 0.0
        %3107 = vmatprep.subr.mxu0 0.0
        %3108 = vmatpush1.xpose.msra.mxu0 0.0
        %3109 = vmatprep.subr.mxu0 0.0
        %3110 = vmatpush1.xpose.msra.mxu0 0.0
        %3111 = vmatprep.subr.mxu0 0.0
        %3112 = vmatpush1.xpose.msra.mxu0 0.0
        %3113 = vmatprep.subr.mxu0 0.0
        %3114 = vmatpush1.xpose.msra.mxu0 0.0
        %3115 = vmatprep.subr.mxu0 0.0
        %3116 = vmatpush1.xpose.msra.mxu0 0.0
        %3117 = vmatprep.subr.mxu0 0.0
        %3118 = vmatpush1.xpose.msra.mxu0 0.0
        %3119 = vmatprep.subr.mxu0 0.0
        %3120 = vmatpush1.xpose.msra.mxu0 0.0
        %3121 = vmatprep.subr.mxu0 0.0
        %3122 = vmatpush1.xpose.msra.mxu0 0.0
        %3123 = vmatprep.subr.mxu0 0.0
        %3124 = vmatpush1.xpose.msra.mxu0 0.0
        %3125 = vmatprep.subr.mxu0 0.0
        %3126 = vmatpush1.xpose.msra.mxu0 0.0
        %3127 = vmatprep.subr.mxu0 0.0
        %3128 = vmatpush1.xpose.msra.mxu0 0.0
        %3129 = vmatprep.subr.mxu0 0.0
        %3130 = vmatpush1.xpose.msra.mxu0 0.0
        %3131 = vmatprep.subr.mxu0 0.0
        %3132 = vmatpush1.xpose.msra.mxu0 0.0
        %3133 = vmatprep.subr.mxu0 0.0
        %3134 = vmatpush1.xpose.msra.mxu0 0.0
        %3135 = vmatprep.subr.mxu0 0.0
        %3136 = vmatpush1.xpose.msra.mxu0 0.0
        %3137 = vmatprep.subr.mxu0 0.0
        %3138 = vmatpush1.xpose.msra.mxu0 0.0
        %3139 = vmatprep.subr.mxu0 0.0
        %3140 = vmatpush1.xpose.msra.mxu0 0.0
        %3141 = vmatprep.subr.mxu0 0.0
        %3142 = vmatpush1.xpose.msra.mxu0 0.0
        %3143 = vmatprep.subr.mxu0 0.0
        %3144 = vmatpush1.xpose.msra.mxu0 0.0
        %3145 = vmatprep.subr.mxu0 0.0
        %3146 = vmatpush1.xpose.msra.mxu0 0.0
        %3147 = vmatprep.subr.mxu0 0.0
        %3148 = vmatpush1.xpose.msra.mxu0 0.0
        %3149 = vmatprep.subr.mxu0 0.0
        %3150 = vmatpush1.xpose.msra.mxu0 0.0
        %3151 = vmatprep.subr.mxu0 0.0
        %3152 = vmatpush1.xpose.msra.mxu0 0.0
        %3153 = vmatprep.mubr.f32.mxu0 0.0
        %3154 = vmatmul.mubr.f32.gmra.mrb[0].mxu0 %v3085
        %v3155 = vpop.f32.mrb[0].mxu0
        %v3156 = vadd.f32 0.0, %v3155
        %v3157 = vpop.f32.mrb[0].mxu0
        %3158 = vdwg.mxu0
        %v3159 = vmul.f32 %v3156, 0.35355338
        %v3160 = vadd.f32 %v3159, %v1588
        %v3161 = vsel %vm1508, %v3160, -inf
        %3162 = vmax.xlane.f32.xlu0 %v3161
        %v3163 = vpop.xlane.xlu0 %3162
        %v3164 = vsub.f32 %v3160, %v3163
        %v3165 = vmul.f32 %v3164, 1.442695
        %v3166 = vpow.pop %v3165
        %v3167 = vsel %vm1508, %v3166, 0.0
        %3168 = vadd.xlane.f32.xlu0 %v3167
        %v3169 = vpop.xlane.xlu0 %3168
        %v3170 = vrcp.pop %v3169
        %v3171 = vmul.f32 %v3166, %v3170
        %3172 = vrot.lane.b32.xlu0 %v2578, 40
        %v3173 = vpop.permute.xlu0 %3172
        %v3176 = vsel %vm1508, %v3171, 0
        %3178 = vmatprep.subr.mxu0 0.0
        %3179 = vmatpush1.msra.mxu0 %v3173
        %3180 = vmatprep.subr.mxu0 0.0
        %3181 = vmatpush1.msra.mxu0 0.0
        %3182 = vmatprep.subr.mxu0 0.0
        %3183 = vmatpush1.msra.mxu0 0.0
        %3184 = vmatprep.subr.mxu0 0.0
        %3185 = vmatpush1.msra.mxu0 0.0
        %3186 = vmatprep.subr.mxu0 0.0
        %3187 = vmatpush1.msra.mxu0 0.0
        %3188 = vmatprep.subr.mxu0 0.0
        %3189 = vmatpush1.msra.mxu0 0.0
        %3190 = vmatprep.subr.mxu0 0.0
        %3191 = vmatpush1.msra.mxu0 0.0
        %3192 = vmatprep.subr.mxu0 0.0
        %3193 = vmatpush1.msra.mxu0 0.0
        %3194 = vmatprep.subr.mxu0 0.0
        %3195 = vmatpush1.msra.mxu0 0.0
        %3196 = vmatprep.subr.mxu0 0.0
        %3197 = vmatpush1.msra.mxu0 0.0
        %3198 = vmatprep.subr.mxu0 0.0
        %3199 = vmatpush1.msra.mxu0 0.0
        %3200 = vmatprep.subr.mxu0 0.0
        %3201 = vmatpush1.msra.mxu0 0.0
        %3202 = vmatprep.subr.mxu0 0.0
        %3203 = vmatpush1.msra.mxu0 0.0
        %3204 = vmatprep.subr.mxu0 0.0
        %3205 = vmatpush1.msra.mxu0 0.0
        %3206 = vmatprep.subr.mxu0 0.0
        %3207 = vmatpush1.msra.mxu0 0.0
        %3208 = vmatprep.subr.mxu0 0.0
        %3209 = vmatpush1.msra.mxu0 0.0
        %3210 = vmatprep.subr.mxu0 0.0
        %3211 = vmatpush1.msra.mxu0 0.0
        %3212 = vmatprep.subr.mxu0 0.0
        %3213 = vmatpush1.msra.mxu0 0.0
        %3214 = vmatprep.subr.mxu0 0.0
        %3215 = vmatpush1.msra.mxu0 0.0
        %3216 = vmatprep.subr.mxu0 0.0
        %3217 = vmatpush1.msra.mxu0 0.0
        %3218 = vmatprep.subr.mxu0 0.0
        %3219 = vmatpush1.msra.mxu0 0.0
        %3220 = vmatprep.subr.mxu0 0.0
        %3221 = vmatpush1.msra.mxu0 0.0
        %3222 = vmatprep.subr.mxu0 0.0
        %3223 = vmatpush1.msra.mxu0 0.0
        %3224 = vmatprep.subr.mxu0 0.0
        %3225 = vmatpush1.msra.mxu0 0.0
        %3226 = vmatprep.subr.mxu0 0.0
        %3227 = vmatpush1.msra.mxu0 0.0
        %3228 = vmatprep.subr.mxu0 0.0
        %3229 = vmatpush1.msra.mxu0 0.0
        %3230 = vmatprep.subr.mxu0 0.0
        %3231 = vmatpush1.msra.mxu0 0.0
        %3232 = vmatprep.subr.mxu0 0.0
        %3233 = vmatpush1.msra.mxu0 0.0
        %3234 = vmatprep.subr.mxu0 0.0
        %3235 = vmatpush1.msra.mxu0 0.0
        %3236 = vmatprep.subr.mxu0 0.0
        %3237 = vmatpush1.msra.mxu0 0.0
        %3238 = vmatprep.subr.mxu0 0.0
        %3239 = vmatpush1.msra.mxu0 0.0
        %3240 = vmatprep.subr.mxu0 0.0
        %3241 = vmatpush1.msra.mxu0 0.0
        %3242 = vmatprep.mubr.f32.mxu0 0.0
        %3243 = vmatmul.mubr.f32.gmra.mrb[0].mxu0 %v3176
        %v3244 = vpop.f32.mrb[0].mxu0
        %v3245 = vadd.f32 0.0, %v3244
        %v3246 = vpop.f32.mrb[0].mxu0
        %3247 = vdwg.mxu0
        %3249 = vrot.lane.b32.xlu0 %v2911, 8
        %v3250 = vpop.permute.xlu0 %3249
        %3253 = vrot.lane.b32.xlu0 %v3078, 16
        %v3254 = vpop.permute.xlu0 %3253
        %3257 = vrot.lane.b32.xlu0 %v3245, 24
        %v3258 = vpop.permute.xlu0 %3257
        %v3260 = vsel %vm1508, %v2744, %v3250
        %v3261 = vsel %vm2192, %v3260, %v3254
        %v3262 = vsel %vm2194, %v3261, %v3258
        %v3264 = vsel %vm1267, %v3262, 0
        %3266 = vmatprep.subr.mxu0 0.0
        %3267 = vmatpush1.msra.mxu0 %v2196
        %3268 = vmatprep.subr.mxu0 0.0
        %3269 = vmatpush1.msra.mxu0 %v2197
        %3270 = vmatprep.subr.mxu0 0.0
        %3271 = vmatpush1.msra.mxu0 %v2198
        %3272 = vmatprep.subr.mxu0 0.0
        %3273 = vmatpush1.msra.mxu0 %v2199
        %3274 = vmatprep.subr.mxu0 0.0
        %3275 = vmatpush1.msra.mxu0 0.0
        %3276 = vmatprep.subr.mxu0 0.0
        %3277 = vmatpush1.msra.mxu0 0.0
        %3278 = vmatprep.subr.mxu0 0.0
        %3279 = vmatpush1.msra.mxu0 0.0
        %3280 = vmatprep.subr.mxu0 0.0
        %3281 = vmatpush1.msra.mxu0 0.0
        %3282 = vmatprep.subr.mxu0 0.0
        %3283 = vmatpush1.msra.mxu0 0.0
        %3284 = vmatprep.subr.mxu0 0.0
        %3285 = vmatpush1.msra.mxu0 0.0
        %3286 = vmatprep.subr.mxu0 0.0
        %3287 = vmatpush1.msra.mxu0 0.0
        %3288 = vmatprep.subr.mxu0 0.0
        %3289 = vmatpush1.msra.mxu0 0.0
        %3290 = vmatprep.subr.mxu0 0.0
        %3291 = vmatpush1.msra.mxu0 0.0
        %3292 = vmatprep.subr.mxu0 0.0
        %3293 = vmatpush1.msra.mxu0 0.0
        %3294 = vmatprep.subr.mxu0 0.0
        %3295 = vmatpush1.msra.mxu0 0.0
        %3296 = vmatprep.subr.mxu0 0.0
        %3297 = vmatpush1.msra.mxu0 0.0
        %3298 = vmatprep.subr.mxu0 0.0
        %3299 = vmatpush1.msra.mxu0 0.0
        %3300 = vmatprep.subr.mxu0 0.0
        %3301 = vmatpush1.msra.mxu0 0.0
        %3302 = vmatprep.subr.mxu0 0.0
        %3303 = vmatpush1.msra.mxu0 0.0
        %3304 = vmatprep.subr.mxu0 0.0
        %3305 = vmatpush1.msra.mxu0 0.0
        %3306 = vmatprep.subr.mxu0 0.0
        %3307 = vmatpush1.msra.mxu0 0.0
        %3308 = vmatprep.subr.mxu0 0.0
        %3309 = vmatpush1.msra.mxu0 0.0
        %3310 = vmatprep.subr.mxu0 0.0
        %3311 = vmatpush1.msra.mxu0 0.0
        %3312 = vmatprep.subr.mxu0 0.0
        %3313 = vmatpush1.msra.mxu0 0.0
        %3314 = vmatprep.subr.mxu0 0.0
        %3315 = vmatpush1.msra.mxu0 0.0
        %3316 = vmatprep.subr.mxu0 0.0
        %3317 = vmatpush1.msra.mxu0 0.0
        %3318 = vmatprep.subr.mxu0 0.0
        %3319 = vmatpush1.msra.mxu0 0.0
        %3320 = vmatprep.subr.mxu0 0.0
        %3321 = vmatpush1.msra.mxu0 0.0
        %3322 = vmatprep.subr.mxu0 0.0
        %3323 = vmatpush1.msra.mxu0 0.0
        %3324 = vmatprep.subr.mxu0 0.0
        %3325 = vmatpush1.msra.mxu0 0.0
        %3326 = vmatprep.subr.mxu0 0.0
        %3327 = vmatpush1.msra.mxu0 0.0
        %3328 = vmatprep.subr.mxu0 0.0
        %3329 = vmatpush1.msra.mxu0 0.0
        %3330 = vmatprep.mubr.f32.mxu0 0.0
        %3331 = vmatmul.mubr.f32.gmra.mrb[0].mxu0 %v3264
        %v3332 = vpop.f32.mrb[0].mxu0
        %v3333 = vadd.f32 %v2205, %v3332
        %v3334 = vpop.f32.mrb[0].mxu0
        %3335 = vdwg.mxu0
        %v3336 = vadd.f32 %v2492, %v3333
        %v3337 = vsel %vm1267, %v3336, 0.0
        %3338 = vadd.xlane.f32.xlu0 %v3337
        %v3339 = vpop.xlane.xlu0 %3338
        %v3340 = vmul.f32 %v3339, %v1271
        %v3341 = vsub.f32 %v3336, %v3340
        %v3342 = vmul.f32 %v3341, %v3341
        %v3343 = vsel %vm1267, %v3342, 0.0
        %3344 = vadd.xlane.f32.xlu0 %v3343
        %v3345 = vpop.xlane.xlu0 %3344
        %v3346 = vmul.f32 %v3345, %v1271
        %v3347 = vadd.f32 %v3346, 1e-12
        %v3348 = vrsqrt.pop %v3347
        %v3349 = vmul.f32 %v3341, %v3348
        %v3350 = vmul.f32 %v3349, %v2299
        %v3351 = vadd.f32 %v3350, %v2307
        %v3353 = vsel %vm1267, %v3351, 0
        %3355 = vmatprep.subr.mxu0 0.0
        %3356 = vmatpush1.msra.mxu0 %v2310
        %3357 = vmatprep.subr.mxu0 0.0
        %3358 = vmatpush1.msra.mxu0 %v2311
        %3359 = vmatprep.subr.mxu0 0.0
        %3360 = vmatpush1.msra.mxu0 %v2312
        %3361 = vmatprep.subr.mxu0 0.0
        %3362 = vmatpush1.msra.mxu0 %v2313
        %3363 = vmatprep.subr.mxu0 0.0
        %3364 = vmatpush1.msra.mxu0 0.0
        %3365 = vmatprep.subr.mxu0 0.0
        %3366 = vmatpush1.msra.mxu0 0.0
        %3367 = vmatprep.subr.mxu0 0.0
        %3368 = vmatpush1.msra.mxu0 0.0
        %3369 = vmatprep.subr.mxu0 0.0
        %3370 = vmatpush1.msra.mxu0 0.0
        %3371 = vmatprep.subr.mxu0 0.0
        %3372 = vmatpush1.msra.mxu0 0.0
        %3373 = vmatprep.subr.mxu0 0.0
        %3374 = vmatpush1.msra.mxu0 0.0
        %3375 = vmatprep.subr.mxu0 0.0
        %3376 = vmatpush1.msra.mxu0 0.0
        %3377 = vmatprep.subr.mxu0 0.0
        %3378 = vmatpush1.msra.mxu0 0.0
        %3379 = vmatprep.subr.mxu0 0.0
        %3380 = vmatpush1.msra.mxu0 0.0
        %3381 = vmatprep.subr.mxu0 0.0
        %3382 = vmatpush1.msra.mxu0 0.0
        %3383 = vmatprep.subr.mxu0 0.0
        %3384 = vmatpush1.msra.mxu0 0.0
        %3385 = vmatprep.subr.mxu0 0.0
        %3386 = vmatpush1.msra.mxu0 0.0
        %3387 = vmatprep.subr.mxu0 0.0
        %3388 = vmatpush1.msra.mxu0 0.0
        %3389 = vmatprep.subr.mxu0 0.0
        %3390 = vmatpush1.msra.mxu0 0.0
        %3391 = vmatprep.subr.mxu0 0.0
        %3392 = vmatpush1.msra.mxu0 0.0
        %3393 = vmatprep.subr.mxu0 0.0
        %3394 = vmatpush1.msra.mxu0 0.0
        %3395 = vmatprep.subr.mxu0 0.0
        %3396 = vmatpush1.msra.mxu0 0.0
        %3397 = vmatprep.subr.mxu0 0.0
        %3398 = vmatpush1.msra.mxu0 0.0
        %3399 = vmatprep.subr.mxu0 0.0
        %3400 = vmatpush1.msra.mxu0 0.0
        %3401 = vmatprep.subr.mxu0 0.0
        %3402 = vmatpush1.msra.mxu0 0.0
        %3403 = vmatprep.subr.mxu0 0.0
        %3404 = vmatpush1.msra.mxu0 0.0
        %3405 = vmatprep.subr.mxu0 0.0
        %3406 = vmatpush1.msra.mxu0 0.0
        %3407 = vmatprep.subr.mxu0 0.0
        %3408 = vmatpush1.msra.mxu0 0.0
        %3409 = vmatprep.subr.mxu0 0.0
        %3410 = vmatpush1.msra.mxu0 0.0
        %3411 = vmatprep.subr.mxu0 0.0
        %3412 = vmatpush1.msra.mxu0 0.0
        %3413 = vmatprep.subr.mxu0 0.0
        %3414 = vmatpush1.msra.mxu0 0.0
        %3415 = vmatprep.subr.mxu0 0.0
        %3416 = vmatpush1.msra.mxu0 0.0
        %3417 = vmatprep.subr.mxu0 0.0
        %3418 = vmatpush1.msra.mxu0 0.0
        %3419 = vmatprep.mubr.f32.mxu0 0.0
        %3420 = vmatmul.mubr.f32.gmra.mrb[0].mxu0 %v3353
        %v3421 = vpop.f32.mrb[0].mxu0
        %v3422 = vadd.f32 %v2319, %v3421
        %v3423 = vpop.f32.mrb[0].mxu0
        %3424 = vdwg.mxu0
        %v3425 = vmul.f32 %v3422, 0.5
        %v3426 = vmul.f32 %v3422, 0.70710677
        %v3427 = verf.f32.pop %v3426
        %v3428 = vadd.f32 %v3427, 1.0
        %v3429 = vmul.f32 %v3425, %v3428
        %3430 = vmatprep.subr.mxu0 0.0
        %3431 = vmatpush1.msra.mxu0 %v2399
        %3432 = vmatprep.subr.mxu0 0.0
        %3433 = vmatpush1.msra.mxu0 %v2400
        %3434 = vmatprep.subr.mxu0 0.0
        %3435 = vmatpush1.msra.mxu0 %v2401
        %3436 = vmatprep.subr.mxu0 0.0
        %3437 = vmatpush1.msra.mxu0 %v2402
        %3438 = vmatprep.subr.mxu0 0.0
        %3439 = vmatpush1.msra.mxu0 %v2403
        %3440 = vmatprep.subr.mxu0 0.0
        %3441 = vmatpush1.msra.mxu0 %v2404
        %3442 = vmatprep.subr.mxu0 0.0
        %3443 = vmatpush1.msra.mxu0 %v2405
        %3444 = vmatprep.subr.mxu0 0.0
        %3445 = vmatpush1.msra.mxu0 %v2406
        %3446 = vmatprep.subr.mxu0 0.0
        %3447 = vmatpush1.msra.mxu0 %v2407
        %3448 = vmatprep.subr.mxu0 0.0
        %3449 = vmatpush1.msra.mxu0 %v2408
        %3450 = vmatprep.subr.mxu0 0.0
        %3451 = vmatpush1.msra.mxu0 %v2409
        %3452 = vmatprep.subr.mxu0 0.0
        %3453 = vmatpush1.msra.mxu0 %v2410
        %3454 = vmatprep.subr.mxu0 0.0
        %3455 = vmatpush1.msra.mxu0 %v2411
        %3456 = vmatprep.subr.mxu0 0.0
        %3457 = vmatpush1.msra.mxu0 %v2412
        %3458 = vmatprep.subr.mxu0 0.0
        %3459 = vmatpush1.msra.mxu0 %v2413
        %3460 = vmatprep.subr.mxu0 0.0
        %3461 = vmatpush1.msra.mxu0 %v2414
        %3462 = vmatprep.subr.mxu0 0.0
        %3463 = vmatpush1.msra.mxu0 0.0
        %3464 = vmatprep.subr.mxu0 0.0
        %3465 = vmatpush1.msra.mxu0 0.0
        %3466 = vmatprep.subr.mxu0 0.0
        %3467 = vmatpush1.msra.mxu0 0.0
        %3468 = vmatprep.subr.mxu0 0.0
        %3469 = vmatpush1.msra.mxu0 0.0
        %3470 = vmatprep.subr.mxu0 0.0
        %3471 = vmatpush1.msra.mxu0 0.0
        %3472 = vmatprep.subr.mxu0 0.0
        %3473 = vmatpush1.msra.mxu0 0.0
        %3474 = vmatprep.subr.mxu0 0.0
        %3475 = vmatpush1.msra.mxu0 0.0
        %3476 = vmatprep.subr.mxu0 0.0
        %3477 = vmatpush1.msra.mxu0 0.0
        %3478 = vmatprep.subr.mxu0 0.0
        %3479 = vmatpush1.msra.mxu0 0.0
        %3480 = vmatprep.subr.mxu0 0.0
        %3481 = vmatpush1.msra.mxu0 0.0
        %3482 = vmatprep.subr.mxu0 0.0
        %3483 = vmatpush1.msra.mxu0 0.0
        %3484 = vmatprep.subr.mxu0 0.0
        %3485 = vmatpush1.msra.mxu0 0.0
        %3486 = vmatprep.subr.mxu0 0.0
        %3487 = vmatpush1.msra.mxu0 0.0
        %3488 = vmatprep.subr.mxu0 0.0
        %3489 = vmatpush1.msra.mxu0 0.0
        %3490 = vmatprep.subr.mxu0 0.0
        %3491 = vmatpush1.msra.mxu0 0.0
        %3492 = vmatprep.subr.mxu0 0.0
        %3493 = vmatpush1.msra.mxu0 0.0
        %3494 = vmatprep.mubr.f32.mxu0 0.0
        %3495 = vmatmul.mubr.f32.gmra.mrb[0].mxu0 %v3429
        %v3496 = vpop.f32.mrb[0].mxu0
        %v3497 = vadd.f32 %v2420, %v3496
        %v3498 = vpop.f32.mrb[0].mxu0
        %3499 = vdwg.mxu0
        %v3500 = vadd.f32 %v3336, %v3497
        %v3501 = vld [vmem:[%s47] sm:$0xff]
        %v3502 = vld [vmem:[%s47 + $0x8] sm:$0xff]
        %v3503 = vld [vmem:[%s47 + $0x10] sm:$0xff]
        %v3504 = vld [vmem:[%s47 + $0x18] sm:$0xff]
        %v3505 = vld [vmem:[%s49] sm:$0x1]
        %v3507 = vlaneseq
        %v3508 = vshrl.u32 %v3507, 7
        %v3509 = vsub.s32 0, %v3508
        %v3510 = vrot.slane %v3505, %v3509
        %v3513 = vsel %vm1267, %v3500, 0
        %3515 = vmatprep.subr.mxu0 0.0
        %3516 = vmatpush1.msra.mxu0 %v3501
        %3517 = vmatprep.subr.mxu0 0.0
        %3518 = vmatpush1.msra.mxu0 %v3502
        %3519 = vmatprep.subr.mxu0 0.0
        %3520 = vmatpush1.msra.mxu0 %v3503
        %3521 = vmatprep.subr.mxu0 0.0
        %3522 = vmatpush1.msra.mxu0 %v3504
        %3523 = vmatprep.subr.mxu0 0.0
        %3524 = vmatpush1.msra.mxu0 0.0
        %3525 = vmatprep.subr.mxu0 0.0
        %3526 = vmatpush1.msra.mxu0 0.0
        %3527 = vmatprep.subr.mxu0 0.0
        %3528 = vmatpush1.msra.mxu0 0.0
        %3529 = vmatprep.subr.mxu0 0.0
        %3530 = vmatpush1.msra.mxu0 0.0
        %3531 = vmatprep.subr.mxu0 0.0
        %3532 = vmatpush1.msra.mxu0 0.0
        %3533 = vmatprep.subr.mxu0 0.0
        %3534 = vmatpush1.msra.mxu0 0.0
        %3535 = vmatprep.subr.mxu0 0.0
        %3536 = vmatpush1.msra.mxu0 0.0
        %3537 = vmatprep.subr.mxu0 0.0
        %3538 = vmatpush1.msra.mxu0 0.0
        %3539 = vmatprep.subr.mxu0 0.0
        %3540 = vmatpush1.msra.mxu0 0.0
        %3541 = vmatprep.subr.mxu0 0.0
        %3542 = vmatpush1.msra.mxu0 0.0
        %3543 = vmatprep.subr.mxu0 0.0
        %3544 = vmatpush1.msra.mxu0 0.0
        %3545 = vmatprep.subr.mxu0 0.0
        %3546 = vmatpush1.msra.mxu0 0.0
        %3547 = vmatprep.subr.mxu0 0.0
        %3548 = vmatpush1.msra.mxu0 0.0
        %3549 = vmatprep.subr.mxu0 0.0
        %3550 = vmatpush1.msra.mxu0 0.0
        %3551 = vmatprep.subr.mxu0 0.0
        %3552 = vmatpush1.msra.mxu0 0.0
        %3553 = vmatprep.subr.mxu0 0.0
        %3554 = vmatpush1.msra.mxu0 0.0
        %3555 = vmatprep.subr.mxu0 0.0
        %3556 = vmatpush1.msra.mxu0 0.0
        %3557 = vmatprep.subr.mxu0 0.0
        %3558 = vmatpush1.msra.mxu0 0.0
        %3559 = vmatprep.subr.mxu0 0.0
        %3560 = vmatpush1.msra.mxu0 0.0
        %3561 = vmatprep.subr.mxu0 0.0
        %3562 = vmatpush1.msra.mxu0 0.0
        %3563 = vmatprep.subr.mxu0 0.0
        %3564 = vmatpush1.msra.mxu0 0.0
        %3565 = vmatprep.subr.mxu0 0.0
        %3566 = vmatpush1.msra.mxu0 0.0
        %3567 = vmatprep.subr.mxu0 0.0
        %3568 = vmatpush1.msra.mxu0 0.0
        %3569 = vmatprep.subr.mxu0 0.0
        %3570 = vmatpush1.msra.mxu0 0.0
        %3571 = vmatprep.subr.mxu0 0.0
        %3572 = vmatpush1.msra.mxu0 0.0
        %3573 = vmatprep.subr.mxu0 0.0
        %3574 = vmatpush1.msra.mxu0 0.0
        %3575 = vmatprep.subr.mxu0 0.0
        %3576 = vmatpush1.msra.mxu0 0.0
        %3577 = vmatprep.subr.mxu0 0.0
        %3578 = vmatpush1.msra.mxu0 0.0
        %3579 = vmatprep.mubr.f32.mxu0 0.0
        %3580 = vmatmul.mubr.f32.gmra.mrb[0].mxu0 %v3513
        %v3581 = vpop.f32.mrb[0].mxu0
        %v3582 = vadd.f32 %v3510, %v3581
        %v3583 = vpop.f32.mrb[0].mxu0
        %3584 = vdwg.mxu0
        %v3585 = vmax.f32 %v3582, 0.0
        %vm3586 = vcmp.ne.f32.partialorder %v3582, %v3582
        %v3587 = vadd.f32 %v3582, 0.0
        %v3588 = vand.u32 2147483647, %v3582
        %v3589 = vsub.f32 0.0, %v3588
        %v3590 = vmul.f32 %v3589, 1.442695
        %v3591 = vpow.pop %v3590
        %v3592 = vadd.f32 %v3591, 1.0
        %v3593 = vlog2.pop %v3592
        %v3594 = vmul.f32 %v3593, 0.6931472
        %v3595 = vmul.f32 -0.5, %v3591
        %v3596 = vadd.f32 %v3595, 1.0
        %v3597 = vmul.f32 %v3596, %v3591
        %v3598 = vand.u32 2147483647, %v3591
        %vm3599 = vcmp.lt.f32.partialorder %v3598, 0.0004427343
        %v3600 = vsel %vm3599, %v3597, %v3594
        %v3601 = vadd.f32 %v3585, %v3600
        %v3602 = vsel %vm3586, %v3587, %v3601
        %v3603 = verf.f32.pop %v3602
        %v3604 = vmul.f32 %v3582, %v3603
        %v3605 = vld [vmem:[%s51] sm:$0xff]
        %v3606 = vld [vmem:[%s51 + $0x8] sm:$0xff]
        %v3607 = vld [vmem:[%s51 + $0x10] sm:$0xff]
        %v3608 = vld [vmem:[%s51 + $0x18] sm:$0xff]
        %v3609 = vld [vmem:[%s53] sm:$0x1]
        %v3611 = vlaneseq
        %v3612 = vshrl.u32 %v3611, 7
        %v3613 = vsub.s32 0, %v3612
        %v3614 = vrot.slane %v3609, %v3613
        %v3617 = vsel %vm1267, %v3604, 0
        %3619 = vmatprep.subr.mxu0 0.0
        %3620 = vmatpush1.msra.mxu0 %v3605
        %3621 = vmatprep.subr.mxu0 0.0
        %3622 = vmatpush1.msra.mxu0 %v3606
        %3623 = vmatprep.subr.mxu0 0.0
        %3624 = vmatpush1.msra.mxu0 %v3607
        %3625 = vmatprep.subr.mxu0 0.0
        %3626 = vmatpush1.msra.mxu0 %v3608
        %3627 = vmatprep.subr.mxu0 0.0
        %3628 = vmatpush1.msra.mxu0 0.0
        %3629 = vmatprep.subr.mxu0 0.0
        %3630 = vmatpush1.msra.mxu0 0.0
        %3631 = vmatprep.subr.mxu0 0.0
        %3632 = vmatpush1.msra.mxu0 0.0
        %3633 = vmatprep.subr.mxu0 0.0
        %3634 = vmatpush1.msra.mxu0 0.0
        %3635 = vmatprep.subr.mxu0 0.0
        %3636 = vmatpush1.msra.mxu0 0.0
        %3637 = vmatprep.subr.mxu0 0.0
        %3638 = vmatpush1.msra.mxu0 0.0
        %3639 = vmatprep.subr.mxu0 0.0
        %3640 = vmatpush1.msra.mxu0 0.0
        %3641 = vmatprep.subr.mxu0 0.0
        %3642 = vmatpush1.msra.mxu0 0.0
        %3643 = vmatprep.subr.mxu0 0.0
        %3644 = vmatpush1.msra.mxu0 0.0
        %3645 = vmatprep.subr.mxu0 0.0
        %3646 = vmatpush1.msra.mxu0 0.0
        %3647 = vmatprep.subr.mxu0 0.0
        %3648 = vmatpush1.msra.mxu0 0.0
        %3649 = vmatprep.subr.mxu0 0.0
        %3650 = vmatpush1.msra.mxu0 0.0
        %3651 = vmatprep.subr.mxu0 0.0
        %3652 = vmatpush1.msra.mxu0 0.0
        %3653 = vmatprep.subr.mxu0 0.0
        %3654 = vmatpush1.msra.mxu0 0.0
        %3655 = vmatprep.subr.mxu0 0.0
        %3656 = vmatpush1.msra.mxu0 0.0
        %3657 = vmatprep.subr.mxu0 0.0
        %3658 = vmatpush1.msra.mxu0 0.0
        %3659 = vmatprep.subr.mxu0 0.0
        %3660 = vmatpush1.msra.mxu0 0.0
        %3661 = vmatprep.subr.mxu0 0.0
        %3662 = vmatpush1.msra.mxu0 0.0
        %3663 = vmatprep.subr.mxu0 0.0
        %3664 = vmatpush1.msra.mxu0 0.0
        %3665 = vmatprep.subr.mxu0 0.0
        %3666 = vmatpush1.msra.mxu0 0.0
        %3667 = vmatprep.subr.mxu0 0.0
        %3668 = vmatpush1.msra.mxu0 0.0
        %3669 = vmatprep.subr.mxu0 0.0
        %3670 = vmatpush1.msra.mxu0 0.0
        %3671 = vmatprep.subr.mxu0 0.0
        %3672 = vmatpush1.msra.mxu0 0.0
        %3673 = vmatprep.subr.mxu0 0.0
        %3674 = vmatpush1.msra.mxu0 0.0
        %3675 = vmatprep.subr.mxu0 0.0
        %3676 = vmatpush1.msra.mxu0 0.0
        %3677 = vmatprep.subr.mxu0 0.0
        %3678 = vmatpush1.msra.mxu0 0.0
        %3679 = vmatprep.subr.mxu0 0.0
        %3680 = vmatpush1.msra.mxu0 0.0
        %3681 = vmatprep.subr.mxu0 0.0
        %3682 = vmatpush1.msra.mxu0 0.0
        %3683 = vmatprep.mubr.f32.mxu0 0.0
        %3684 = vmatmul.mubr.f32.gmra.mrb[0].mxu0 %v3617
        %v3685 = vpop.f32.mrb[0].mxu0
        %v3686 = vadd.f32 %v3614, %v3685
        %v3687 = vpop.f32.mrb[0].mxu0
        %3688 = vdwg.mxu0
        %v3689 = vsel %vm1267, %v3686, 0.0
        %3690 = vadd.xlane.f32.xlu0 %v3689
        %v3691 = vpop.xlane.xlu0 %3690
        %v3692 = vmul.f32 %v3691, %v1271
        %v3693 = vsub.f32 %v3686, %v3692
        %v3694 = vmul.f32 %v3693, %v3693
        %v3695 = vsel %vm1267, %v3694, 0.0
        %3696 = vadd.xlane.f32.xlu0 %v3695
        %v3697 = vpop.xlane.xlu0 %3696
        %v3698 = vmul.f32 %v3697, %v1271
        %v3699 = vadd.f32 %v3698, 1e-12
        %v3700 = vrsqrt.pop %v3699
        %v3701 = vmul.f32 %v3693, %v3700
        %v3702 = vld [vmem:[%s55] sm:$0x1]
        %v3704 = vlaneseq
        %v3705 = vshrl.u32 %v3704, 7
        %v3706 = vsub.s32 0, %v3705
        %v3707 = vrot.slane %v3702, %v3706
        %v3709 = vmul.f32 %v3701, %v3707
        %v3710 = vld [vmem:[%s57] sm:$0x1]
        %v3712 = vlaneseq
        %v3713 = vshrl.u32 %v3712, 7
        %v3714 = vsub.s32 0, %v3713
        %v3715 = vrot.slane %v3710, %v3714
        %v3717 = vadd.f32 %v3709, %v3715
        %v3718 = vld [vmem:[%s59] sm:$0xff]
        %v3719 = vld [vmem:[%s59 + $0x8] sm:$0xff]
        %v3720 = vld [vmem:[%s59 + $0x10] sm:$0xff]
        %v3721 = vld [vmem:[%s59 + $0x18] sm:$0xff]
        %v3722 = vld [vmem:[%s61] sm:$0x1]
        %v3724 = vlaneseq
        %v3725 = vshrl.u32 %v3724, 7
        %v3726 = vsub.s32 0, %v3725
        %v3727 = vrot.slane %v3722, %v3726
        %v3730 = vsel %vm1267, %v3717, 0
        %3732 = vmatprep.subr.mxu0 0.0
        %3733 = vmatpush1.msra.mxu0 %v3718
        %3734 = vmatprep.subr.mxu0 0.0
        %3735 = vmatpush1.msra.mxu0 %v3719
        %3736 = vmatprep.subr.mxu0 0.0
        %3737 = vmatpush1.msra.mxu0 %v3720
        %3738 = vmatprep.subr.mxu0 0.0
        %3739 = vmatpush1.msra.mxu0 %v3721
        %3740 = vmatprep.subr.mxu0 0.0
        %3741 = vmatpush1.msra.mxu0 0.0
        %3742 = vmatprep.subr.mxu0 0.0
        %3743 = vmatpush1.msra.mxu0 0.0
        %3744 = vmatprep.subr.mxu0 0.0
        %3745 = vmatpush1.msra.mxu0 0.0
        %3746 = vmatprep.subr.mxu0 0.0
        %3747 = vmatpush1.msra.mxu0 0.0
        %3748 = vmatprep.subr.mxu0 0.0
        %3749 = vmatpush1.msra.mxu0 0.0
        %3750 = vmatprep.subr.mxu0 0.0
        %3751 = vmatpush1.msra.mxu0 0.0
        %3752 = vmatprep.subr.mxu0 0.0
        %3753 = vmatpush1.msra.mxu0 0.0
        %3754 = vmatprep.subr.mxu0 0.0
        %3755 = vmatpush1.msra.mxu0 0.0
        %3756 = vmatprep.subr.mxu0 0.0
        %3757 = vmatpush1.msra.mxu0 0.0
        %3758 = vmatprep.subr.mxu0 0.0
        %3759 = vmatpush1.msra.mxu0 0.0
        %3760 = vmatprep.subr.mxu0 0.0
        %3761 = vmatpush1.msra.mxu0 0.0
        %3762 = vmatprep.subr.mxu0 0.0
        %3763 = vmatpush1.msra.mxu0 0.0
        %3764 = vmatprep.subr.mxu0 0.0
        %3765 = vmatpush1.msra.mxu0 0.0
        %3766 = vmatprep.subr.mxu0 0.0
        %3767 = vmatpush1.msra.mxu0 0.0
        %3768 = vmatprep.subr.mxu0 0.0
        %3769 = vmatpush1.msra.mxu0 0.0
        %3770 = vmatprep.subr.mxu0 0.0
        %3771 = vmatpush1.msra.mxu0 0.0
        %3772 = vmatprep.subr.mxu0 0.0
        %3773 = vmatpush1.msra.mxu0 0.0
        %3774 = vmatprep.subr.mxu0 0.0
        %3775 = vmatpush1.msra.mxu0 0.0
        %3776 = vmatprep.subr.mxu0 0.0
        %3777 = vmatpush1.msra.mxu0 0.0
        %3778 = vmatprep.subr.mxu0 0.0
        %3779 = vmatpush1.msra.mxu0 0.0
        %3780 = vmatprep.subr.mxu0 0.0
        %3781 = vmatpush1.msra.mxu0 0.0
        %3782 = vmatprep.subr.mxu0 0.0
        %3783 = vmatpush1.msra.mxu0 0.0
        %3784 = vmatprep.subr.mxu0 0.0
        %3785 = vmatpush1.msra.mxu0 0.0
        %3786 = vmatprep.subr.mxu0 0.0
        %3787 = vmatpush1.msra.mxu0 0.0
        %3788 = vmatprep.subr.mxu0 0.0
        %3789 = vmatpush1.msra.mxu0 0.0
        %3790 = vmatprep.subr.mxu0 0.0
        %3791 = vmatpush1.msra.mxu0 0.0
        %3792 = vmatprep.subr.mxu0 0.0
        %3793 = vmatpush1.msra.mxu0 0.0
        %3794 = vmatprep.subr.mxu0 0.0
        %3795 = vmatpush1.msra.mxu0 0.0
        %3796 = vmatprep.mubr.f32.mxu0 0.0
        %3797 = vmatmul.mubr.f32.gmra.mrb[0].mxu0 %v3730
        %v3798 = vpop.f32.mrb[0].mxu0
        %v3799 = vadd.f32 %v3727, %v3798
        %v3800 = vpop.f32.mrb[0].mxu0
        %3801 = vdwg.mxu0
        %3802 = vst [vmem:[%s1148] sm:$0xff] %v3799
        %v3803 = vsel %vm1267, %v3500, 0.0
        %v3804 = vrot.slane %v3803, 4
        %v3805 = vadd.f32 %v3803, %v3804
        %v3806 = vrot.slane %v3805, 2
        %v3807 = vadd.f32 %v3805, %v3806
        %v3808 = vrot.slane %v3807, 1
        %v3809 = vadd.f32 %v3807, %v3808
        %v3810 = vrcp.pop 8.0
        %v3811 = vmul.f32 %v3809, %v3810
        %v3812 = vld [vmem:[%s63] sm:$0xff]
        %v3813 = vld [vmem:[%s63 + $0x8] sm:$0xff]
        %v3814 = vld [vmem:[%s63 + $0x10] sm:$0xff]
        %v3815 = vld [vmem:[%s63 + $0x18] sm:$0xff]
        %v3816 = vld [vmem:[%s65] sm:$0x1]
        %v3818 = vsel %vm1267, %v3811, 0
        %3820 = vmatprep.subr.mxu0 0.0
        %3821 = vmatpush1.msra.mxu0 %v3812
        %3822 = vmatprep.subr.mxu0 0.0
        %3823 = vmatpush1.msra.mxu0 %v3813
        %3824 = vmatprep.subr.mxu0 0.0
        %3825 = vmatpush1.msra.mxu0 %v3814
        %3826 = vmatprep.subr.mxu0 0.0
        %3827 = vmatpush1.msra.mxu0 %v3815
        %3828 = vmatprep.subr.mxu0 0.0
        %3829 = vmatpush1.msra.mxu0 0.0
        %3830 = vmatprep.subr.mxu0 0.0
        %3831 = vmatpush1.msra.mxu0 0.0
        %3832 = vmatprep.subr.mxu0 0.0
        %3833 = vmatpush1.msra.mxu0 0.0
        %3834 = vmatprep.subr.mxu0 0.0
        %3835 = vmatpush1.msra.mxu0 0.0
        %3836 = vmatprep.subr.mxu0 0.0
        %3837 = vmatpush1.msra.mxu0 0.0
        %3838 = vmatprep.subr.mxu0 0.0
        %3839 = vmatpush1.msra.mxu0 0.0
        %3840 = vmatprep.subr.mxu0 0.0
        %3841 = vmatpush1.msra.mxu0 0.0
        %3842 = vmatprep.subr.mxu0 0.0
        %3843 = vmatpush1.msra.mxu0 0.0
        %3844 = vmatprep.subr.mxu0 0.0
        %3845 = vmatpush1.msra.mxu0 0.0
        %3846 = vmatprep.subr.mxu0 0.0
        %3847 = vmatpush1.msra.mxu0 0.0
        %3848 = vmatprep.subr.mxu0 0.0
        %3849 = vmatpush1.msra.mxu0 0.0
        %3850 = vmatprep.subr.mxu0 0.0
        %3851 = vmatpush1.msra.mxu0 0.0
        %3852 = vmatprep.subr.mxu0 0.0
        %3853 = vmatpush1.msra.mxu0 0.0
        %3854 = vmatprep.subr.mxu0 0.0
        %3855 = vmatpush1.msra.mxu0 0.0
        %3856 = vmatprep.subr.mxu0 0.0
        %3857 = vmatpush1.msra.mxu0 0.0
        %3858 = vmatprep.subr.mxu0 0.0
        %3859 = vmatpush1.msra.mxu0 0.0
        %3860 = vmatprep.subr.mxu0 0.0
        %3861 = vmatpush1.msra.mxu0 0.0
        %3862 = vmatprep.subr.mxu0 0.0
        %3863 = vmatpush1.msra.mxu0 0.0
        %3864 = vmatprep.subr.mxu0 0.0
        %3865 = vmatpush1.msra.mxu0 0.0
        %3866 = vmatprep.subr.mxu0 0.0
        %3867 = vmatpush1.msra.mxu0 0.0
        %3868 = vmatprep.subr.mxu0 0.0
        %3869 = vmatpush1.msra.mxu0 0.0
        %3870 = vmatprep.subr.mxu0 0.0
        %3871 = vmatpush1.msra.mxu0 0.0
        %3872 = vmatprep.subr.mxu0 0.0
        %3873 = vmatpush1.msra.mxu0 0.0
        %3874 = vmatprep.subr.mxu0 0.0
        %3875 = vmatpush1.msra.mxu0 0.0
        %3876 = vmatprep.subr.mxu0 0.0
        %3877 = vmatpush1.msra.mxu0 0.0
        %3878 = vmatprep.subr.mxu0 0.0
        %3879 = vmatpush1.msra.mxu0 0.0
        %3880 = vmatprep.subr.mxu0 0.0
        %3881 = vmatpush1.msra.mxu0 0.0
        %3882 = vmatprep.subr.mxu0 0.0
        %3883 = vmatpush1.msra.mxu0 0.0
        %3884 = vmatprep.mubr.f32.mxu0 0.0
        %3885 = vmatmul.mubr.f32.gmra.mrb[0].mxu0 %v3818
        %v3886 = vpop.f32.mrb[0].mxu0
        %v3887 = vadd.f32 %v3816, %v3886
        %v3888 = vpop.f32.mrb[0].mxu0
        %3889 = vdwg.mxu0
        %v3890 = vmax.f32 %v3887, 0.0
        %vm3891 = vcmp.ne.f32.partialorder %v3887, %v3887
        %v3892 = vadd.f32 %v3887, 0.0
        %v3893 = vand.u32 2147483647, %v3887
        %v3894 = vsub.f32 0.0, %v3893
        %v3895 = vmul.f32 %v3894, 1.442695
        %v3896 = vpow.pop %v3895
        %v3897 = vadd.f32 %v3896, 1.0
        %v3898 = vlog2.pop %v3897
        %v3899 = vmul.f32 %v3898, 0.6931472
        %v3900 = vmul.f32 -0.5, %v3896
        %v3901 = vadd.f32 %v3900, 1.0
        %v3902 = vmul.f32 %v3901, %v3896
        %v3903 = vand.u32 2147483647, %v3896
        %vm3904 = vcmp.lt.f32.partialorder %v3903, 0.0004427343
        %v3905 = vsel %vm3904, %v3902, %v3899
        %v3906 = vadd.f32 %v3890, %v3905
        %v3907 = vsel %vm3891, %v3892, %v3906
        %v3908 = verf.f32.pop %v3907
        %v3909 = vmul.f32 %v3887, %v3908
        %v3910 = vld [vmem:[%s67] sm:$0xff]
        %v3911 = vld [vmem:[%s67 + $0x8] sm:$0xff]
        %v3912 = vld [vmem:[%s67 + $0x10] sm:$0xff]
        %v3913 = vld [vmem:[%s67 + $0x18] sm:$0xff]
        %v3914 = vld [vmem:[%s69] sm:$0x1]
        %v3916 = vsel %vm1267, %v3909, 0
        %3918 = vmatprep.subr.mxu0 0.0
        %3919 = vmatpush1.msra.mxu0 %v3910
        %3920 = vmatprep.subr.mxu0 0.0
        %3921 = vmatpush1.msra.mxu0 %v3911
        %3922 = vmatprep.subr.mxu0 0.0
        %3923 = vmatpush1.msra.mxu0 %v3912
        %3924 = vmatprep.subr.mxu0 0.0
        %3925 = vmatpush1.msra.mxu0 %v3913
        %3926 = vmatprep.subr.mxu0 0.0
        %3927 = vmatpush1.msra.mxu0 0.0
        %3928 = vmatprep.subr.mxu0 0.0
        %3929 = vmatpush1.msra.mxu0 0.0
        %3930 = vmatprep.subr.mxu0 0.0
        %3931 = vmatpush1.msra.mxu0 0.0
        %3932 = vmatprep.subr.mxu0 0.0
        %3933 = vmatpush1.msra.mxu0 0.0
        %3934 = vmatprep.subr.mxu0 0.0
        %3935 = vmatpush1.msra.mxu0 0.0
        %3936 = vmatprep.subr.mxu0 0.0
        %3937 = vmatpush1.msra.mxu0 0.0
        %3938 = vmatprep.subr.mxu0 0.0
        %3939 = vmatpush1.msra.mxu0 0.0
        %3940 = vmatprep.subr.mxu0 0.0
        %3941 = vmatpush1.msra.mxu0 0.0
        %3942 = vmatprep.subr.mxu0 0.0
        %3943 = vmatpush1.msra.mxu0 0.0
        %3944 = vmatprep.subr.mxu0 0.0
        %3945 = vmatpush1.msra.mxu0 0.0
        %3946 = vmatprep.subr.mxu0 0.0
        %3947 = vmatpush1.msra.mxu0 0.0
        %3948 = vmatprep.subr.mxu0 0.0
        %3949 = vmatpush1.msra.mxu0 0.0
        %3950 = vmatprep.subr.mxu0 0.0
        %3951 = vmatpush1.msra.mxu0 0.0
        %3952 = vmatprep.subr.mxu0 0.0
        %3953 = vmatpush1.msra.mxu0 0.0
        %3954 = vmatprep.subr.mxu0 0.0
        %3955 = vmatpush1.msra.mxu0 0.0
        %3956 = vmatprep.subr.mxu0 0.0
        %3957 = vmatpush1.msra.mxu0 0.0
        %3958 = vmatprep.subr.mxu0 0.0
        %3959 = vmatpush1.msra.mxu0 0.0
        %3960 = vmatprep.subr.mxu0 0.0
        %3961 = vmatpush1.msra.mxu0 0.0
        %3962 = vmatprep.subr.mxu0 0.0
        %3963 = vmatpush1.msra.mxu0 0.0
        %3964 = vmatprep.subr.mxu0 0.0
        %3965 = vmatpush1.msra.mxu0 0.0
        %3966 = vmatprep.subr.mxu0 0.0
        %3967 = vmatpush1.msra.mxu0 0.0
        %3968 = vmatprep.subr.mxu0 0.0
        %3969 = vmatpush1.msra.mxu0 0.0
        %3970 = vmatprep.subr.mxu0 0.0
        %3971 = vmatpush1.msra.mxu0 0.0
        %3972 = vmatprep.subr.mxu0 0.0
        %3973 = vmatpush1.msra.mxu0 0.0
        %3974 = vmatprep.subr.mxu0 0.0
        %3975 = vmatpush1.msra.mxu0 0.0
        %3976 = vmatprep.subr.mxu0 0.0
        %3977 = vmatpush1.msra.mxu0 0.0
        %3978 = vmatprep.subr.mxu0 0.0
        %3979 = vmatpush1.msra.mxu0 0.0
        %3980 = vmatprep.subr.mxu0 0.0
        %3981 = vmatpush1.msra.mxu0 0.0
        %3982 = vmatprep.mubr.f32.mxu0 0.0
        %3983 = vmatmul.mubr.f32.gmra.mrb[0].mxu0 %v3916
        %v3984 = vpop.f32.mrb[0].mxu0
        %v3985 = vadd.f32 %v3914, %v3984
        %v3986 = vpop.f32.mrb[0].mxu0
        %3987 = vdwg.mxu0
        %v3988 = vmul.f32 %v3985, %v3985
        %vm3989 = vcmask 1040384
        %v3990 = vsel %vm3989, %v3988, 0.0
        %3991 = vadd.xlane.f32.xlu0 %v3990
        %v3992 = vpop.xlane.xlu0 %3991
        %v3993 = vrsqrt.pop %v3992
        %v3994 = vmul.f32 %v3992, %v3993
        %vm3995 = vcmp.eq.f32.partialorder %v3992, inf
        %v3996 = vsel %vm3995, %v3992, %v3994
        %vm3997 = vcmp.eq.f32.partialorder %v3992, 0.0
        %v3998 = vand.u32 %v3992, 2147483648
        %v3999 = vsel %vm3997, %v3998, %v3996
        %v4000 = vmax.f32 %v3999, 1e-12
        %v4001 = vrcp.pop %v4000
        %v4002 = vmul.f32 %v3985, %v4001
        %4003 = vst [vmem:[%s1130] sm:$0x1] %v4002
        %p4004 = scmp.lt.s32.totalorder %s88, 1
        %s4005 = scalar_select %p4004, %s88, 1
        %s4006 = smul.addr %s4005, 8
        %s4007 = scalar_lea.vmem %s71, %s4006
        %s4008 = sand.u32 %s877, 1
        %s4009 = scalar_lea.sflag [#allocation3], %s4008
        %s4010 = sand.u32 %s877, 1
        %s4011 = scalar_lea.vmem [#allocation2], %s4010
        // Predicated region
        $region161: #{model_forward.1} parent=159 // pred_check
          %p4012 = pneg %p861
        $region162: #{model_forward.1} parent=159 // pred_check_branch
          %4014 = sbr.rel (%p4012) target = $region164
        $region163: #{model_forward.1} parent=159 // pred_region
          _
        $region164: #{model_forward.1} parent=159 // pred_fallthru
          _
        // Predicated region
        $region165: #{model_forward.1} parent=159 // pred_check
          %p4015 = pneg %p887
        $region166: #{model_forward.1} parent=159 // pred_check_branch
          %4017 = sbr.rel (%p4015) target = $region168
        $region167: #{model_forward.1} parent=159 // pred_region
          %s4019 = ssub.s32 16, 16
          %4020 = vsyncadd %s4009, %s4019
          %s4021 = smul.addr %s88, 16
          %s4022 = scalar_lea.hbm %s73, %s4021
          %s4024 = sshll.u32 %s4011, 4
          %s4025 = int_to_ptr.vmem [resolvable:$true] %s4024
          %4027 = dma.vmem_to_hbm [thread:$0]  %s4025, 16, %s4022, %s4009
        $region168: #{model_forward.1} parent=159 // pred_fallthru
          _
      $region160: #{model_forward.1} parent=5 // pred_fallthru
        _
      %p4028 = scmp.le.s32.totalorder 2, %s83
      // Predicated region
      $region169: #{model_forward.1} parent=5 // pred_check
        %p4029 = pneg %p4028
      $region170: #{model_forward.1} parent=5 // pred_check_branch
        %4031 = sbr.rel (%p4029) target = $region172
      $region171: #{model_forward.1} parent=5 // pred_region
        %s4032 = ssub.s32 %s83, 2
        // Predicated region
        $region173: #{model_forward.1} parent=171 // pred_check
          %p4033 = pneg %p867
        $region174: #{model_forward.1} parent=171 // pred_check_branch
          %4035 = sbr.rel (%p4033) target = $region176
        $region175: #{model_forward.1} parent=171 // pred_region
          %p4036 = scmp.lt.s32.totalorder %s89, 1
          %s4037 = scalar_select %p4036, %s89, 1
          %s4038 = smul.addr %s4037, 8
          %s4039 = scalar_lea.vmem %s71, %s4038
        $region176: #{model_forward.1} parent=171 // pred_fallthru
          _
        // Predicated region
        $region177: #{model_forward.1} parent=171 // pred_check
          %p4040 = pneg %p893
        $region178: #{model_forward.1} parent=171 // pred_check_branch
          %4042 = sbr.rel (%p4040) target = $region180
        $region179: #{model_forward.1} parent=171 // pred_region
          %s4043 = sand.u32 %s878, 1
          %s4044 = scalar_lea.sflag [#allocation3], %s4043
          %s4045 = sand.u32 %s878, 1
          %s4046 = scalar_lea.vmem [#allocation2], %s4045
          %4047 = dma.done %s4044, 16
        $region180: #{model_forward.1} parent=171 // pred_fallthru
          _
      $region172: #{model_forward.1} parent=5 // pred_fallthru
        _
    $region6: #{model_forward.1} parent=1 // loop_footer
      %s87 = sadd.s32 1, %s83
    $region7: #{model_forward.1} parent=1 // loop_footer_branch
      %82 = sbr.rel target = $region3
    $region8: #{model_forward.1} parent=1 // loop_exit
      _
    %4048 = vsyncpa [#allocation3], 1
    %s4049 = scalar_lea.sflag [#allocation3], 1
    %4050 = vsyncpa %s4049, 1

</llo_original>
